<compile_context>
chip_gen: v6e
topology: v6e:2x2x1
jax: 0.10.0
libtpu: 0.0.40
codegen_flags: <defaults>
</compile_context>

<pallas_src>
import functools

import jax
import jax.numpy as jnp
from jax.experimental import pallas as pl
from jax.experimental.pallas import tpu as pltpu


def _round_up(x, m):
    return ((x + m - 1) // m) * m


def conv_block_forward(x_nchw, w1_oihw, w2_oihw, *, tile_h=None):
    """relu(conv2(relu(conv1(x)))), both 3x3 / stride 1 / padding 1 / no bias.

    x_nchw : (N, Cin, H, W) f32, w1: (Cout, Cin, 3, 3), w2: (Cout, Cout, 3, 3).
    Returns (N, Cout, H, W) f32.
    """
    N, Cin, H, W = x_nchw.shape
    Cout = w1_oihw.shape[0]

    # ---- module-boundary glue: layout + bf16 cast (f32 accumulation in-kernel) ----
    x = jnp.transpose(x_nchw, (0, 2, 3, 1)).astype(jnp.bfloat16)      # NHWC
    w1 = jnp.transpose(w1_oihw, (2, 3, 1, 0)).astype(jnp.bfloat16)    # HWIO
    w2 = jnp.transpose(w2_oihw, (2, 3, 1, 0)).astype(jnp.bfloat16)    # HWIO

    # ---- row tiling: block size independent of image height ----
    # v5e/v6e: pick the largest TH that fits VMEM with 2x buffering; on v7x
    # (64 MiB physical VMEM) use roughly half of that.
    if tile_h is None:
        tile_h = 128
    TH = min(tile_h, H)
    T = -(-H // TH)              # row tiles per image
    Hp = T * TH                  # padded height

    # Width bookkeeping: multiples of 16 so the in-kernel (rows, width, C) ->
    # (rows*width, C) reshapes are free re-blockings for bf16 operands.
    W2 = _round_up(W, 16)        # conv2 accumulator width (cols >= W discarded)
    W1 = W2 + 16                 # intermediate width (>= W2 + 2 halo cols)
    Wx = W1 + 2                  # input tile width (+2 halo cols for conv1)

    # Zero-extend the image (2-deep halo for the fused pair of 3x3 convs).
    x_pad = jnp.pad(x, ((0, 0), (2, Hp - H + 2), (2, Wx - W - 2), (0, 0)))
    # Overlapping row tiles with a 2-row halo on each side.
    tiles = jnp.stack(
        [x_pad[:, t * TH: t * TH + TH + 4] for t in range(T)], axis=1)
    tiles = tiles.reshape(N * T, TH + 4, Wx, Cin)

    def kernel(x_ref, w1_ref, w2_ref, o_ref, y_ref):
        # x_ref : (1, TH+4, Wx, Cin) bf16 -- rows [r0-2, r0+TH+2), cols [-2, Wx-2)
        # w1_ref: (3, 3, Cin, Cout)  bf16
        # w2_ref: (3, 3, Cout, Cout) bf16
        # o_ref : (1, TH, W, Cout)   f32  -- output rows [r0, r0+TH), cols [0, W)
        # y_ref : (TH+2, W1, Cout)   bf16 VMEM scratch (conv1 output + 1-halo)
        t = pl.program_id(0) % T          # row-tile index within this image
        r0 = t * TH                       # first output row of this tile

        # ---------- conv1 (3x3, pad=1) + ReLU -> y_ref ----------
        acc1 = jnp.zeros(((TH + 2) * W1, Cout), jnp.float32)
        for dw in range(3):
            # Hoisted column shift: one width-slice per dw; inside the tap loop
            # only cheap major-dim slices + free reshapes feed the MXU.
            xs = x_ref[0, :, dw:dw + W1, :]                  # (TH+4, W1, Cin)
            for dh in range(3):
                slab = xs[dh:dh + TH + 2].reshape((TH + 2) * W1, Cin)
                acc1 = acc1 + jnp.dot(slab, w1_ref[dh, dw],
                                      preferred_element_type=jnp.float32)
        y = jnp.maximum(acc1, 0.0).reshape(TH + 2, W1, Cout)

        # conv2 must see the TRUE zero padding of the intermediate: zero every
        # position that falls outside the original image (rows -1/H, cols -1/W).
        rid = jax.lax.broadcasted_iota(jnp.int32, (TH + 2, W1, Cout), 0)
        cid = jax.lax.broadcasted_iota(jnp.int32, (TH + 2, W1, Cout), 1)
        orow = rid + (r0 - 1)             # original row of this intermediate cell
        ocol = cid - 1                    # original column
        inside = (orow >= 0) & (orow < H) & (ocol >= 0) & (ocol < W)
        y_ref[...] = jnp.where(inside, y, 0.0).astype(y_ref.dtype)

        # ---------- conv2 (3x3, pad=1) + ReLU -> o_ref ----------
        acc2 = jnp.zeros((TH * W2, Cout), jnp.float32)
        for dw in range(3):
            ys = y_ref[:, dw:dw + W2, :]                     # (TH+2, W2, Cout)
            for dh in range(3):
                slab = ys[dh:dh + TH].reshape(TH * W2, Cout)
                acc2 = acc2 + jnp.dot(slab, w2_ref[dh, dw],
                                      preferred_element_type=jnp.float32)
        out = jnp.maximum(acc2, 0.0).reshape(TH, W2, Cout)
        # TODO(synk): for Cout < 128 this store is lane-masked; a lane-dense
        # (TH, W*Cout) output slab (or channel padding) would speed the vst path.
        o_ref[0] = out[:, :W, :].astype(o_ref.dtype)

    out = pl.pallas_call(
        kernel,
        out_shape=jax.ShapeDtypeStruct((N * T, TH, W, Cout), jnp.float32),
        grid_spec=pltpu.PrefetchScalarGridSpec(
            num_scalar_prefetch=0,
            grid=(N * T,),
            in_specs=[
                pl.BlockSpec((1, TH + 4, Wx, Cin), lambda i: (i, 0, 0, 0)),
                pl.BlockSpec((3, 3, Cin, Cout), lambda i: (0, 0, 0, 0)),
                pl.BlockSpec((3, 3, Cout, Cout), lambda i: (0, 0, 0, 0)),
            ],
            out_specs=pl.BlockSpec((1, TH, W, Cout), lambda i: (i, 0, 0, 0)),
            scratch_shapes=[pltpu.VMEM((TH + 2, W1, Cout), jnp.bfloat16)],
        ),
        compiler_params=pltpu.CompilerParams(
            dimension_semantics=("parallel",),
            vmem_limit_bytes=64 * 1024 * 1024,
        ),
    )(tiles, w1, w2)

    out = out.reshape(N, Hp, W, Cout)[:, :H]       # drop bottom padding rows
    return jnp.transpose(out, (0, 3, 1, 2))        # back to NCHW (PyTorch parity)


def _reference_forward(x_nchw, w1_oihw, w2_oihw):
    """Pure-JAX reference mirroring the kernel's bf16-in / f32-accumulate policy."""
    f32 = jnp.float32
    q = lambda a: a.astype(jnp.bfloat16).astype(f32)
    x, w1, w2 = q(x_nchw), q(w1_oihw), q(w2_oihw)
    dn = jax.lax.conv_dimension_numbers(x.shape, w1.shape, ("NCHW", "OIHW", "NCHW"))
    y = jax.lax.conv_general_dilated(
        x, w1, window_strides=(1, 1), padding=((1, 1), (1, 1)),
        dimension_numbers=dn, precision=jax.lax.Precision.HIGHEST)
    y = q(jnp.maximum(y, 0.0))          # kernel holds the intermediate in bf16
    y = jax.lax.conv_general_dilated(
        y, w2, window_strides=(1, 1), padding=((1, 1), (1, 1)),
        dimension_numbers=dn, precision=jax.lax.Precision.HIGHEST)
    return jnp.maximum(y, 0.0)


if __name__ == "__main__":
    # Small deterministic shapes: batch=2, in_channels=4, out_channels=8, 16x16.
    N, Cin, Cout, H, W = 2, 4, 8, 16, 16

    key = jax.random.PRNGKey(0)
    kx, kw1, kw2 = jax.random.split(key, 3)
    x = jax.random.normal(kx, (N, Cin, H, W), dtype=jnp.float32)
    w1 = jax.random.normal(kw1, (Cout, Cin, 3, 3), dtype=jnp.float32) * 0.1
    w2 = jax.random.normal(kw2, (Cout, Cout, 3, 3), dtype=jnp.float32) * 0.1

    # tile_h=8 -> 2 row tiles per image -> grid of 4 steps (exercises tiling).
    fwd = jax.jit(functools.partial(conv_block_forward, tile_h=8))
    out = jax.block_until_ready(fwd(x, w1, w2))

    ref = jax.block_until_ready(_reference_forward(x, w1, w2))
    assert out.shape == (N, Cout, H, W)
    max_err = float(jnp.max(jnp.abs(out - ref)))
    assert jnp.allclose(out, ref, atol=2e-2, rtol=2e-2), f"max abs err {max_err}"

    print("KERNEL_OK")
</pallas_src>

<mosaic_0001>
module attributes {stable_mosaic.version = 11 : i64} {
  func.func @kernel(%arg0: i32, %arg1: memref<1x12x34x4xbf16, #tpu.memory_space<vmem>>, %arg2: memref<3x3x4x8xbf16, #tpu.memory_space<vmem>>, %arg3: memref<3x3x8x8xbf16, #tpu.memory_space<vmem>>, %arg4: memref<1x8x16x8xf32, #tpu.memory_space<vmem>>, %arg5: memref<10x32x8xbf16, #tpu.memory_space<vmem>>) attributes {dimension_semantics = [#tpu.dimension_semantics<parallel>], iteration_bounds = array<i64: 4>, scalar_prefetch = 0 : i64, scratch_operands = 1 : i64, tpu.core_type = #tpu.core_type<tc>, window_params = [{transform_indices = @transform_0, window_bounds = array<i64: 1, 12, 34, 4>}, {pipeline_mode = #tpu.pipeline_mode<synchronous>, transform_indices = @transform_1, window_bounds = array<i64: 3, 3, 4, 8>}, {pipeline_mode = #tpu.pipeline_mode<synchronous>, transform_indices = @transform_2, window_bounds = array<i64: 3, 3, 8, 8>}, {transform_indices = @transform_3, window_bounds = array<i64: 1, 8, 16, 8>}]} {
    %c2_i32 = arith.constant 2 : i32
    %c0_i32 = arith.constant 0 : i32
    %0 = arith.cmpi eq, %c2_i32, %c0_i32 : i32
    %c1_i32 = arith.constant 1 : i32
    %1 = arith.select %0, %c1_i32, %c2_i32 : i32
    %2 = arith.remsi %arg0, %1 : i32
    %c0_i32_0 = arith.constant 0 : i32
    %3 = arith.cmpi ne, %2, %c0_i32_0 : i32
    %c0_i32_1 = arith.constant 0 : i32
    %4 = arith.cmpi slt, %2, %c0_i32_1 : i32
    %c0_i32_2 = arith.constant 0 : i32
    %5 = arith.cmpi slt, %1, %c0_i32_2 : i32
    %6 = arith.xori %4, %5 : i1
    %7 = arith.andi %6, %3 : i1
    %8 = arith.addi %2, %1 : i32
    %9 = arith.select %7, %8, %2 : i32
    %c8_i32 = arith.constant 8 : i32
    %10 = arith.muli %9, %c8_i32 : i32
    %cst = arith.constant 0.000000e+00 : f32
    %11 = vector.broadcast %cst : f32 to vector<320x8xf32>
    %c0 = arith.constant 0 : index
    %c0_3 = arith.constant 0 : index
    %c0_4 = arith.constant 0 : index
    %c0_5 = arith.constant 0 : index
    %12 = vector.load %arg1[%c0, %c0_3, %c0_4, %c0_5] : memref<1x12x34x4xbf16, #tpu.memory_space<vmem>>, vector<1x12x32x4xbf16>
    %13 = vector.shape_cast %12 : vector<1x12x32x4xbf16> to vector<12x32x4xbf16>
    %14 = vector.extract_strided_slice %13 {offsets = [0, 0, 0], sizes = [10, 32, 4], strides = [1, 1, 1]} : vector<12x32x4xbf16> to vector<10x32x4xbf16>
    %15 = vector.shape_cast %14 : vector<10x32x4xbf16> to vector<320x4xbf16>
    %c0_6 = arith.constant 0 : index
    %c0_7 = arith.constant 0 : index
    %c0_8 = arith.constant 0 : index
    %c0_9 = arith.constant 0 : index
    %16 = vector.load %arg2[%c0_6, %c0_7, %c0_8, %c0_9] : memref<3x3x4x8xbf16, #tpu.memory_space<vmem>>, vector<1x1x4x8xbf16>
    %17 = vector.shape_cast %16 : vector<1x1x4x8xbf16> to vector<4x8xbf16>
    %cst_10 = arith.constant dense<0.000000e+00> : vector<320x8xf32>
    %18 = tpu.matmul %15, %17, %cst_10 {dimension_numbers = #tpu.dot_dimension_numbers<[1], [0], [0], [1], [0, 0, 1, 1], [], []>} : vector<320x4xbf16>, vector<4x8xbf16>, vector<320x8xf32> -> vector<320x8xf32>
    %19 = arith.addf %11, %18 : vector<320x8xf32>
    %20 = vector.extract_strided_slice %13 {offsets = [1, 0, 0], sizes = [10, 32, 4], strides = [1, 1, 1]} : vector<12x32x4xbf16> to vector<10x32x4xbf16>
    %21 = vector.shape_cast %20 : vector<10x32x4xbf16> to vector<320x4xbf16>
    %c1 = arith.constant 1 : index
    %c0_11 = arith.constant 0 : index
    %c0_12 = arith.constant 0 : index
    %c0_13 = arith.constant 0 : index
    %22 = vector.load %arg2[%c1, %c0_11, %c0_12, %c0_13] : memref<3x3x4x8xbf16, #tpu.memory_space<vmem>>, vector<1x1x4x8xbf16>
    %23 = vector.shape_cast %22 : vector<1x1x4x8xbf16> to vector<4x8xbf16>
    %cst_14 = arith.constant dense<0.000000e+00> : vector<320x8xf32>
    %24 = tpu.matmul %21, %23, %cst_14 {dimension_numbers = #tpu.dot_dimension_numbers<[1], [0], [0], [1], [0, 0, 1, 1], [], []>} : vector<320x4xbf16>, vector<4x8xbf16>, vector<320x8xf32> -> vector<320x8xf32>
    %25 = arith.addf %19, %24 : vector<320x8xf32>
    %26 = vector.extract_strided_slice %13 {offsets = [2, 0, 0], sizes = [10, 32, 4], strides = [1, 1, 1]} : vector<12x32x4xbf16> to vector<10x32x4xbf16>
    %27 = vector.shape_cast %26 : vector<10x32x4xbf16> to vector<320x4xbf16>
    %c2 = arith.constant 2 : index
    %c0_15 = arith.constant 0 : index
    %c0_16 = arith.constant 0 : index
    %c0_17 = arith.constant 0 : index
    %28 = vector.load %arg2[%c2, %c0_15, %c0_16, %c0_17] : memref<3x3x4x8xbf16, #tpu.memory_space<vmem>>, vector<1x1x4x8xbf16>
    %29 = vector.shape_cast %28 : vector<1x1x4x8xbf16> to vector<4x8xbf16>
    %cst_18 = arith.constant dense<0.000000e+00> : vector<320x8xf32>
    %30 = tpu.matmul %27, %29, %cst_18 {dimension_numbers = #tpu.dot_dimension_numbers<[1], [0], [0], [1], [0, 0, 1, 1], [], []>} : vector<320x4xbf16>, vector<4x8xbf16>, vector<320x8xf32> -> vector<320x8xf32>
    %31 = arith.addf %25, %30 : vector<320x8xf32>
    %c0_19 = arith.constant 0 : index
    %c0_20 = arith.constant 0 : index
    %c1_21 = arith.constant 1 : index
    %c0_22 = arith.constant 0 : index
    %32 = vector.load %arg1[%c0_19, %c0_20, %c1_21, %c0_22] : memref<1x12x34x4xbf16, #tpu.memory_space<vmem>>, vector<1x12x32x4xbf16>
    %33 = vector.shape_cast %32 : vector<1x12x32x4xbf16> to vector<12x32x4xbf16>
    %34 = vector.extract_strided_slice %33 {offsets = [0, 0, 0], sizes = [10, 32, 4], strides = [1, 1, 1]} : vector<12x32x4xbf16> to vector<10x32x4xbf16>
    %35 = vector.shape_cast %34 : vector<10x32x4xbf16> to vector<320x4xbf16>
    %c0_23 = arith.constant 0 : index
    %c1_24 = arith.constant 1 : index
    %c0_25 = arith.constant 0 : index
    %c0_26 = arith.constant 0 : index
    %36 = vector.load %arg2[%c0_23, %c1_24, %c0_25, %c0_26] : memref<3x3x4x8xbf16, #tpu.memory_space<vmem>>, vector<1x1x4x8xbf16>
    %37 = vector.shape_cast %36 : vector<1x1x4x8xbf16> to vector<4x8xbf16>
    %cst_27 = arith.constant dense<0.000000e+00> : vector<320x8xf32>
    %38 = tpu.matmul %35, %37, %cst_27 {dimension_numbers = #tpu.dot_dimension_numbers<[1], [0], [0], [1], [0, 0, 1, 1], [], []>} : vector<320x4xbf16>, vector<4x8xbf16>, vector<320x8xf32> -> vector<320x8xf32>
    %39 = arith.addf %31, %38 : vector<320x8xf32>
    %40 = vector.extract_strided_slice %33 {offsets = [1, 0, 0], sizes = [10, 32, 4], strides = [1, 1, 1]} : vector<12x32x4xbf16> to vector<10x32x4xbf16>
    %41 = vector.shape_cast %40 : vector<10x32x4xbf16> to vector<320x4xbf16>
    %c1_28 = arith.constant 1 : index
    %c1_29 = arith.constant 1 : index
    %c0_30 = arith.constant 0 : index
    %c0_31 = arith.constant 0 : index
    %42 = vector.load %arg2[%c1_28, %c1_29, %c0_30, %c0_31] : memref<3x3x4x8xbf16, #tpu.memory_space<vmem>>, vector<1x1x4x8xbf16>
    %43 = vector.shape_cast %42 : vector<1x1x4x8xbf16> to vector<4x8xbf16>
    %cst_32 = arith.constant dense<0.000000e+00> : vector<320x8xf32>
    %44 = tpu.matmul %41, %43, %cst_32 {dimension_numbers = #tpu.dot_dimension_numbers<[1], [0], [0], [1], [0, 0, 1, 1], [], []>} : vector<320x4xbf16>, vector<4x8xbf16>, vector<320x8xf32> -> vector<320x8xf32>
    %45 = arith.addf %39, %44 : vector<320x8xf32>
    %46 = vector.extract_strided_slice %33 {offsets = [2, 0, 0], sizes = [10, 32, 4], strides = [1, 1, 1]} : vector<12x32x4xbf16> to vector<10x32x4xbf16>
    %47 = vector.shape_cast %46 : vector<10x32x4xbf16> to vector<320x4xbf16>
    %c2_33 = arith.constant 2 : index
    %c1_34 = arith.constant 1 : index
    %c0_35 = arith.constant 0 : index
    %c0_36 = arith.constant 0 : index
    %48 = vector.load %arg2[%c2_33, %c1_34, %c0_35, %c0_36] : memref<3x3x4x8xbf16, #tpu.memory_space<vmem>>, vector<1x1x4x8xbf16>
    %49 = vector.shape_cast %48 : vector<1x1x4x8xbf16> to vector<4x8xbf16>
    %cst_37 = arith.constant dense<0.000000e+00> : vector<320x8xf32>
    %50 = tpu.matmul %47, %49, %cst_37 {dimension_numbers = #tpu.dot_dimension_numbers<[1], [0], [0], [1], [0, 0, 1, 1], [], []>} : vector<320x4xbf16>, vector<4x8xbf16>, vector<320x8xf32> -> vector<320x8xf32>
    %51 = arith.addf %45, %50 : vector<320x8xf32>
    %c0_38 = arith.constant 0 : index
    %c0_39 = arith.constant 0 : index
    %c2_40 = arith.constant 2 : index
    %c0_41 = arith.constant 0 : index
    %52 = vector.load %arg1[%c0_38, %c0_39, %c2_40, %c0_41] : memref<1x12x34x4xbf16, #tpu.memory_space<vmem>>, vector<1x12x32x4xbf16>
    %53 = vector.shape_cast %52 : vector<1x12x32x4xbf16> to vector<12x32x4xbf16>
    %54 = vector.extract_strided_slice %53 {offsets = [0, 0, 0], sizes = [10, 32, 4], strides = [1, 1, 1]} : vector<12x32x4xbf16> to vector<10x32x4xbf16>
    %55 = vector.shape_cast %54 : vector<10x32x4xbf16> to vector<320x4xbf16>
    %c0_42 = arith.constant 0 : index
    %c2_43 = arith.constant 2 : index
    %c0_44 = arith.constant 0 : index
    %c0_45 = arith.constant 0 : index
    %56 = vector.load %arg2[%c0_42, %c2_43, %c0_44, %c0_45] : memref<3x3x4x8xbf16, #tpu.memory_space<vmem>>, vector<1x1x4x8xbf16>
    %57 = vector.shape_cast %56 : vector<1x1x4x8xbf16> to vector<4x8xbf16>
    %cst_46 = arith.constant dense<0.000000e+00> : vector<320x8xf32>
    %58 = tpu.matmul %55, %57, %cst_46 {dimension_numbers = #tpu.dot_dimension_numbers<[1], [0], [0], [1], [0, 0, 1, 1], [], []>} : vector<320x4xbf16>, vector<4x8xbf16>, vector<320x8xf32> -> vector<320x8xf32>
    %59 = arith.addf %51, %58 : vector<320x8xf32>
    %60 = vector.extract_strided_slice %53 {offsets = [1, 0, 0], sizes = [10, 32, 4], strides = [1, 1, 1]} : vector<12x32x4xbf16> to vector<10x32x4xbf16>
    %61 = vector.shape_cast %60 : vector<10x32x4xbf16> to vector<320x4xbf16>
    %c1_47 = arith.constant 1 : index
    %c2_48 = arith.constant 2 : index
    %c0_49 = arith.constant 0 : index
    %c0_50 = arith.constant 0 : index
    %62 = vector.load %arg2[%c1_47, %c2_48, %c0_49, %c0_50] : memref<3x3x4x8xbf16, #tpu.memory_space<vmem>>, vector<1x1x4x8xbf16>
    %63 = vector.shape_cast %62 : vector<1x1x4x8xbf16> to vector<4x8xbf16>
    %cst_51 = arith.constant dense<0.000000e+00> : vector<320x8xf32>
    %64 = tpu.matmul %61, %63, %cst_51 {dimension_numbers = #tpu.dot_dimension_numbers<[1], [0], [0], [1], [0, 0, 1, 1], [], []>} : vector<320x4xbf16>, vector<4x8xbf16>, vector<320x8xf32> -> vector<320x8xf32>
    %65 = arith.addf %59, %64 : vector<320x8xf32>
    %66 = vector.extract_strided_slice %53 {offsets = [2, 0, 0], sizes = [10, 32, 4], strides = [1, 1, 1]} : vector<12x32x4xbf16> to vector<10x32x4xbf16>
    %67 = vector.shape_cast %66 : vector<10x32x4xbf16> to vector<320x4xbf16>
    %c2_52 = arith.constant 2 : index
    %c2_53 = arith.constant 2 : index
    %c0_54 = arith.constant 0 : index
    %c0_55 = arith.constant 0 : index
    %68 = vector.load %arg2[%c2_52, %c2_53, %c0_54, %c0_55] : memref<3x3x4x8xbf16, #tpu.memory_space<vmem>>, vector<1x1x4x8xbf16>
    %69 = vector.shape_cast %68 : vector<1x1x4x8xbf16> to vector<4x8xbf16>
    %cst_56 = arith.constant dense<0.000000e+00> : vector<320x8xf32>
    %70 = tpu.matmul %67, %69, %cst_56 {dimension_numbers = #tpu.dot_dimension_numbers<[1], [0], [0], [1], [0, 0, 1, 1], [], []>} : vector<320x4xbf16>, vector<4x8xbf16>, vector<320x8xf32> -> vector<320x8xf32>
    %71 = arith.addf %65, %70 : vector<320x8xf32>
    %cst_57 = arith.constant 0.000000e+00 : f32
    %72 = vector.broadcast %cst_57 : f32 to vector<320x8xf32>
    %73 = arith.maximumf %71, %72 : vector<320x8xf32>
    %74 = vector.shape_cast %73 : vector<320x8xf32> to vector<10x32x8xf32>
    %75 = tpu.iota {dimensions = array<i32: 0>} : vector<10x32x8xi32>
    %76 = tpu.iota {dimensions = array<i32: 1>} : vector<10x32x8xi32>
    %c1_i32_58 = arith.constant 1 : i32
    %77 = arith.subi %10, %c1_i32_58 : i32
    %78 = vector.broadcast %77 : i32 to vector<10x32x8xi32>
    %79 = arith.addi %75, %78 : vector<10x32x8xi32>
    %c1_i32_59 = arith.constant 1 : i32
    %80 = vector.broadcast %c1_i32_59 : i32 to vector<10x32x8xi32>
    %81 = arith.subi %76, %80 : vector<10x32x8xi32>
    %c0_i32_60 = arith.constant 0 : i32
    %82 = vector.broadcast %c0_i32_60 : i32 to vector<10x32x8xi32>
    %83 = arith.cmpi sge, %79, %82 : vector<10x32x8xi32>
    %c16_i32 = arith.constant 16 : i32
    %84 = vector.broadcast %c16_i32 : i32 to vector<10x32x8xi32>
    %85 = arith.cmpi slt, %79, %84 : vector<10x32x8xi32>
    %86 = arith.andi %83, %85 : vector<10x32x8xi1>
    %c0_i32_61 = arith.constant 0 : i32
    %87 = vector.broadcast %c0_i32_61 : i32 to vector<10x32x8xi32>
    %88 = arith.cmpi sge, %81, %87 : vector<10x32x8xi32>
    %89 = arith.andi %86, %88 : vector<10x32x8xi1>
    %c16_i32_62 = arith.constant 16 : i32
    %90 = vector.broadcast %c16_i32_62 : i32 to vector<10x32x8xi32>
    %91 = arith.cmpi slt, %81, %90 : vector<10x32x8xi32>
    %92 = arith.andi %89, %91 : vector<10x32x8xi1>
    %cst_63 = arith.constant 0.000000e+00 : f32
    %93 = vector.broadcast %cst_63 : f32 to vector<10x32x8xf32>
    %94 = arith.select %92, %74, %93 : vector<10x32x8xi1>, vector<10x32x8xf32>
    %95 = arith.truncf %94 : vector<10x32x8xf32> to vector<10x32x8xbf16>
    %c0_64 = arith.constant 0 : index
    %c0_65 = arith.constant 0 : index
    %c0_66 = arith.constant 0 : index
    %96 = vector.load %arg5[%c0_64, %c0_65, %c0_66] : memref<10x32x8xbf16, #tpu.memory_space<vmem>>, vector<10x32x8xbf16>
    tpu.vector_store %arg5[%c0_64, %c0_65, %c0_66], %95 {strides = array<i32>} : memref<10x32x8xbf16, #tpu.memory_space<vmem>>, vector<10x32x8xbf16>,
    %cst_67 = arith.constant 0.000000e+00 : f32
    %97 = vector.broadcast %cst_67 : f32 to vector<128x8xf32>
    %c0_68 = arith.constant 0 : index
    %c0_69 = arith.constant 0 : index
    %c0_70 = arith.constant 0 : index
    %98 = vector.load %arg5[%c0_68, %c0_69, %c0_70] : memref<10x32x8xbf16, #tpu.memory_space<vmem>>, vector<10x16x8xbf16>
    %99 = vector.extract_strided_slice %98 {offsets = [0, 0, 0], sizes = [8, 16, 8], strides = [1, 1, 1]} : vector<10x16x8xbf16> to vector<8x16x8xbf16>
    %100 = vector.shape_cast %99 : vector<8x16x8xbf16> to vector<128x8xbf16>
    %c0_71 = arith.constant 0 : index
    %c0_72 = arith.constant 0 : index
    %c0_73 = arith.constant 0 : index
    %c0_74 = arith.constant 0 : index
    %101 = vector.load %arg3[%c0_71, %c0_72, %c0_73, %c0_74] : memref<3x3x8x8xbf16, #tpu.memory_space<vmem>>, vector<1x1x8x8xbf16>
    %102 = vector.shape_cast %101 : vector<1x1x8x8xbf16> to vector<8x8xbf16>
    %cst_75 = arith.constant dense<0.000000e+00> : vector<128x8xf32>
    %103 = tpu.matmul %100, %102, %cst_75 {dimension_numbers = #tpu.dot_dimension_numbers<[1], [0], [0], [1], [0, 0, 1, 1], [], []>} : vector<128x8xbf16>, vector<8x8xbf16>, vector<128x8xf32> -> vector<128x8xf32>
    %104 = arith.addf %97, %103 : vector<128x8xf32>
    %105 = vector.extract_strided_slice %98 {offsets = [1, 0, 0], sizes = [8, 16, 8], strides = [1, 1, 1]} : vector<10x16x8xbf16> to vector<8x16x8xbf16>
    %106 = vector.shape_cast %105 : vector<8x16x8xbf16> to vector<128x8xbf16>
    %c1_76 = arith.constant 1 : index
    %c0_77 = arith.constant 0 : index
    %c0_78 = arith.constant 0 : index
    %c0_79 = arith.constant 0 : index
    %107 = vector.load %arg3[%c1_76, %c0_77, %c0_78, %c0_79] : memref<3x3x8x8xbf16, #tpu.memory_space<vmem>>, vector<1x1x8x8xbf16>
    %108 = vector.shape_cast %107 : vector<1x1x8x8xbf16> to vector<8x8xbf16>
    %cst_80 = arith.constant dense<0.000000e+00> : vector<128x8xf32>
    %109 = tpu.matmul %106, %108, %cst_80 {dimension_numbers = #tpu.dot_dimension_numbers<[1], [0], [0], [1], [0, 0, 1, 1], [], []>} : vector<128x8xbf16>, vector<8x8xbf16>, vector<128x8xf32> -> vector<128x8xf32>
    %110 = arith.addf %104, %109 : vector<128x8xf32>
    %111 = vector.extract_strided_slice %98 {offsets = [2, 0, 0], sizes = [8, 16, 8], strides = [1, 1, 1]} : vector<10x16x8xbf16> to vector<8x16x8xbf16>
    %112 = vector.shape_cast %111 : vector<8x16x8xbf16> to vector<128x8xbf16>
    %c2_81 = arith.constant 2 : index
    %c0_82 = arith.constant 0 : index
    %c0_83 = arith.constant 0 : index
    %c0_84 = arith.constant 0 : index
    %113 = vector.load %arg3[%c2_81, %c0_82, %c0_83, %c0_84] : memref<3x3x8x8xbf16, #tpu.memory_space<vmem>>, vector<1x1x8x8xbf16>
    %114 = vector.shape_cast %113 : vector<1x1x8x8xbf16> to vector<8x8xbf16>
    %cst_85 = arith.constant dense<0.000000e+00> : vector<128x8xf32>
    %115 = tpu.matmul %112, %114, %cst_85 {dimension_numbers = #tpu.dot_dimension_numbers<[1], [0], [0], [1], [0, 0, 1, 1], [], []>} : vector<128x8xbf16>, vector<8x8xbf16>, vector<128x8xf32> -> vector<128x8xf32>
    %116 = arith.addf %110, %115 : vector<128x8xf32>
    %c0_86 = arith.constant 0 : index
    %c1_87 = arith.constant 1 : index
    %c0_88 = arith.constant 0 : index
    %117 = vector.load %arg5[%c0_86, %c1_87, %c0_88] : memref<10x32x8xbf16, #tpu.memory_space<vmem>>, vector<10x16x8xbf16>
    %118 = vector.extract_strided_slice %117 {offsets = [0, 0, 0], sizes = [8, 16, 8], strides = [1, 1, 1]} : vector<10x16x8xbf16> to vector<8x16x8xbf16>
    %119 = vector.shape_cast %118 : vector<8x16x8xbf16> to vector<128x8xbf16>
    %c0_89 = arith.constant 0 : index
    %c1_90 = arith.constant 1 : index
    %c0_91 = arith.constant 0 : index
    %c0_92 = arith.constant 0 : index
    %120 = vector.load %arg3[%c0_89, %c1_90, %c0_91, %c0_92] : memref<3x3x8x8xbf16, #tpu.memory_space<vmem>>, vector<1x1x8x8xbf16>
    %121 = vector.shape_cast %120 : vector<1x1x8x8xbf16> to vector<8x8xbf16>
    %cst_93 = arith.constant dense<0.000000e+00> : vector<128x8xf32>
    %122 = tpu.matmul %119, %121, %cst_93 {dimension_numbers = #tpu.dot_dimension_numbers<[1], [0], [0], [1], [0, 0, 1, 1], [], []>} : vector<128x8xbf16>, vector<8x8xbf16>, vector<128x8xf32> -> vector<128x8xf32>
    %123 = arith.addf %116, %122 : vector<128x8xf32>
    %124 = vector.extract_strided_slice %117 {offsets = [1, 0, 0], sizes = [8, 16, 8], strides = [1, 1, 1]} : vector<10x16x8xbf16> to vector<8x16x8xbf16>
    %125 = vector.shape_cast %124 : vector<8x16x8xbf16> to vector<128x8xbf16>
    %c1_94 = arith.constant 1 : index
    %c1_95 = arith.constant 1 : index
    %c0_96 = arith.constant 0 : index
    %c0_97 = arith.constant 0 : index
    %126 = vector.load %arg3[%c1_94, %c1_95, %c0_96, %c0_97] : memref<3x3x8x8xbf16, #tpu.memory_space<vmem>>, vector<1x1x8x8xbf16>
    %127 = vector.shape_cast %126 : vector<1x1x8x8xbf16> to vector<8x8xbf16>
    %cst_98 = arith.constant dense<0.000000e+00> : vector<128x8xf32>
    %128 = tpu.matmul %125, %127, %cst_98 {dimension_numbers = #tpu.dot_dimension_numbers<[1], [0], [0], [1], [0, 0, 1, 1], [], []>} : vector<128x8xbf16>, vector<8x8xbf16>, vector<128x8xf32> -> vector<128x8xf32>
    %129 = arith.addf %123, %128 : vector<128x8xf32>
    %130 = vector.extract_strided_slice %117 {offsets = [2, 0, 0], sizes = [8, 16, 8], strides = [1, 1, 1]} : vector<10x16x8xbf16> to vector<8x16x8xbf16>
    %131 = vector.shape_cast %130 : vector<8x16x8xbf16> to vector<128x8xbf16>
    %c2_99 = arith.constant 2 : index
    %c1_100 = arith.constant 1 : index
    %c0_101 = arith.constant 0 : index
    %c0_102 = arith.constant 0 : index
    %132 = vector.load %arg3[%c2_99, %c1_100, %c0_101, %c0_102] : memref<3x3x8x8xbf16, #tpu.memory_space<vmem>>, vector<1x1x8x8xbf16>
    %133 = vector.shape_cast %132 : vector<1x1x8x8xbf16> to vector<8x8xbf16>
    %cst_103 = arith.constant dense<0.000000e+00> : vector<128x8xf32>
    %134 = tpu.matmul %131, %133, %cst_103 {dimension_numbers = #tpu.dot_dimension_numbers<[1], [0], [0], [1], [0, 0, 1, 1], [], []>} : vector<128x8xbf16>, vector<8x8xbf16>, vector<128x8xf32> -> vector<128x8xf32>
    %135 = arith.addf %129, %134 : vector<128x8xf32>
    %c0_104 = arith.constant 0 : index
    %c2_105 = arith.constant 2 : index
    %c0_106 = arith.constant 0 : index
    %136 = vector.load %arg5[%c0_104, %c2_105, %c0_106] : memref<10x32x8xbf16, #tpu.memory_space<vmem>>, vector<10x16x8xbf16>
    %137 = vector.extract_strided_slice %136 {offsets = [0, 0, 0], sizes = [8, 16, 8], strides = [1, 1, 1]} : vector<10x16x8xbf16> to vector<8x16x8xbf16>
    %138 = vector.shape_cast %137 : vector<8x16x8xbf16> to vector<128x8xbf16>
    %c0_107 = arith.constant 0 : index
    %c2_108 = arith.constant 2 : index
    %c0_109 = arith.constant 0 : index
    %c0_110 = arith.constant 0 : index
    %139 = vector.load %arg3[%c0_107, %c2_108, %c0_109, %c0_110] : memref<3x3x8x8xbf16, #tpu.memory_space<vmem>>, vector<1x1x8x8xbf16>
    %140 = vector.shape_cast %139 : vector<1x1x8x8xbf16> to vector<8x8xbf16>
    %cst_111 = arith.constant dense<0.000000e+00> : vector<128x8xf32>
    %141 = tpu.matmul %138, %140, %cst_111 {dimension_numbers = #tpu.dot_dimension_numbers<[1], [0], [0], [1], [0, 0, 1, 1], [], []>} : vector<128x8xbf16>, vector<8x8xbf16>, vector<128x8xf32> -> vector<128x8xf32>
    %142 = arith.addf %135, %141 : vector<128x8xf32>
    %143 = vector.extract_strided_slice %136 {offsets = [1, 0, 0], sizes = [8, 16, 8], strides = [1, 1, 1]} : vector<10x16x8xbf16> to vector<8x16x8xbf16>
    %144 = vector.shape_cast %143 : vector<8x16x8xbf16> to vector<128x8xbf16>
    %c1_112 = arith.constant 1 : index
    %c2_113 = arith.constant 2 : index
    %c0_114 = arith.constant 0 : index
    %c0_115 = arith.constant 0 : index
    %145 = vector.load %arg3[%c1_112, %c2_113, %c0_114, %c0_115] : memref<3x3x8x8xbf16, #tpu.memory_space<vmem>>, vector<1x1x8x8xbf16>
    %146 = vector.shape_cast %145 : vector<1x1x8x8xbf16> to vector<8x8xbf16>
    %cst_116 = arith.constant dense<0.000000e+00> : vector<128x8xf32>
    %147 = tpu.matmul %144, %146, %cst_116 {dimension_numbers = #tpu.dot_dimension_numbers<[1], [0], [0], [1], [0, 0, 1, 1], [], []>} : vector<128x8xbf16>, vector<8x8xbf16>, vector<128x8xf32> -> vector<128x8xf32>
    %148 = arith.addf %142, %147 : vector<128x8xf32>
    %149 = vector.extract_strided_slice %136 {offsets = [2, 0, 0], sizes = [8, 16, 8], strides = [1, 1, 1]} : vector<10x16x8xbf16> to vector<8x16x8xbf16>
    %150 = vector.shape_cast %149 : vector<8x16x8xbf16> to vector<128x8xbf16>
    %c2_117 = arith.constant 2 : index
    %c2_118 = arith.constant 2 : index
    %c0_119 = arith.constant 0 : index
    %c0_120 = arith.constant 0 : index
    %151 = vector.load %arg3[%c2_117, %c2_118, %c0_119, %c0_120] : memref<3x3x8x8xbf16, #tpu.memory_space<vmem>>, vector<1x1x8x8xbf16>
    %152 = vector.shape_cast %151 : vector<1x1x8x8xbf16> to vector<8x8xbf16>
    %cst_121 = arith.constant dense<0.000000e+00> : vector<128x8xf32>
    %153 = tpu.matmul %150, %152, %cst_121 {dimension_numbers = #tpu.dot_dimension_numbers<[1], [0], [0], [1], [0, 0, 1, 1], [], []>} : vector<128x8xbf16>, vector<8x8xbf16>, vector<128x8xf32> -> vector<128x8xf32>
    %154 = arith.addf %148, %153 : vector<128x8xf32>
    %cst_122 = arith.constant 0.000000e+00 : f32
    %155 = vector.broadcast %cst_122 : f32 to vector<128x8xf32>
    %156 = arith.maximumf %154, %155 : vector<128x8xf32>
    %157 = vector.shape_cast %156 : vector<128x8xf32> to vector<8x16x8xf32>
    %c0_123 = arith.constant 0 : index
    %c0_124 = arith.constant 0 : index
    %c0_125 = arith.constant 0 : index
    %c0_126 = arith.constant 0 : index
    %158 = vector.load %arg4[%c0_123, %c0_124, %c0_125, %c0_126] : memref<1x8x16x8xf32, #tpu.memory_space<vmem>>, vector<1x8x16x8xf32>
    %159 = vector.shape_cast %158 : vector<1x8x16x8xf32> to vector<8x16x8xf32>
    %160 = vector.shape_cast %157 : vector<8x16x8xf32> to vector<1x8x16x8xf32>
    tpu.vector_store %arg4[%c0_123, %c0_124, %c0_125, %c0_126], %160 {strides = array<i32>} : memref<1x8x16x8xf32, #tpu.memory_space<vmem>>, vector<1x8x16x8xf32>,
    return
  }
  func.func @transform_0(%arg0: i32) -> (i32, i32, i32, i32) {
    %c0_i32 = arith.constant 0 : i32
    %c0_i32_0 = arith.constant 0 : i32
    %c0_i32_1 = arith.constant 0 : i32
    %c0_i32_2 = arith.constant 0 : i32
    return %arg0, %c0_i32, %c0_i32_0, %c0_i32_1 : i32, i32, i32, i32
  }
  func.func @transform_1(%arg0: i32) -> (i32, i32, i32, i32) {
    %c0_i32 = arith.constant 0 : i32
    %c0_i32_0 = arith.constant 0 : i32
    %c0_i32_1 = arith.constant 0 : i32
    %c0_i32_2 = arith.constant 0 : i32
    %c0_i32_3 = arith.constant 0 : i32
    return %c0_i32, %c0_i32_0, %c0_i32_1, %c0_i32_2 : i32, i32, i32, i32
  }
  func.func @transform_2(%arg0: i32) -> (i32, i32, i32, i32) {
    %c0_i32 = arith.constant 0 : i32
    %c0_i32_0 = arith.constant 0 : i32
    %c0_i32_1 = arith.constant 0 : i32
    %c0_i32_2 = arith.constant 0 : i32
    %c0_i32_3 = arith.constant 0 : i32
    return %c0_i32, %c0_i32_0, %c0_i32_1, %c0_i32_2 : i32, i32, i32, i32
  }
  func.func @transform_3(%arg0: i32) -> (i32, i32, i32, i32) {
    %c0_i32 = arith.constant 0 : i32
    %c0_i32_0 = arith.constant 0 : i32
    %c0_i32_1 = arith.constant 0 : i32
    %c0_i32_2 = arith.constant 0 : i32
    return %arg0, %c0_i32, %c0_i32_0, %c0_i32_1 : i32, i32, i32, i32
  }
}

</mosaic_0001>

<llo_original>
// kernel: conv_block_forward.1
$region0: #{conv_block_forward.1}
  #allocation0 [shape = 'u32[]', space=smem, size = 0x4, offset = 0x4, fixed_abs, tag = 'smem constant byte address 0x4 - core index']
  #allocation1 [shape = 'u32[144,128]{1,0:T(1,128)}', space=vmem, size = 0x12000, scoped, tag = 'internal scratch']
  #allocation2 [shape = 'bf16[10,32,8]{2,1,0:T(8,128)(2,1)}', space=vmem, size = 0x14000, scoped, tag = 'scratch operand']
  %s0 = inlined_call_operand.vmem [shape: bf16[4,12,34,4], index: 0, kind: input, shape index: {}]
  %s1 = inlined_call_operand.vmem [shape: bf16[3,3,4,8], index: 1, kind: input, shape index: {}]
  %s2 = inlined_call_operand.vmem [shape: bf16[3,3,8,8], index: 2, kind: input, shape index: {}]
  %s3 = inlined_call_operand.vmem [shape: f32[4,8,16,8], index: 3, kind: output, shape index: {}]
  %s4 = sld [smem:[#allocation0]]
  $region45: #{conv_block_forward.1} parent=0
    _
  %s6 = ssub.s32 1, %s4
  %s7 = scalar_select 0, %s6, %s4
  loop: start=0, step=1, limit=6
  $region2: #{conv_block_forward.1} parent=0 // loop_pre_header
    _
  $region3: #{conv_block_forward.1} parent=0 // loop_header
    %s9 = sphi 0, %s13
    %p10 = scmp.ge.s32.totalorder %s9, 6
    %s19 = sphi 0, %s21
    %s22 = sphi 0, %s19
    %s23 = sphi 0, %s22
    %s39 = sphi 0, %s23
    %s43 = sphi 0, %s43
    %s45 = sphi 0, %s43
    %s46 = sphi 0, %s45
    %s60 = sphi 0, %s46
    %s64 = sphi 0, %s64
    %s66 = sphi 0, %s64
    %s67 = sphi 0, %s66
    %s81 = sphi 0, %s67
    %s87 = sphi 0, %s89
    %s90 = sphi 0, %s87
    %s91 = sphi 0, %s90
    %s107 = sphi 0, %s91
  $region4: #{conv_block_forward.1} parent=0 // loop_header_branch
    %12 = sbr.rel (%p10) target = $region8
  $region5: #{conv_block_forward.1} parent=0 // loop_body
    %s14 = ssub.s32 %s9, 1
    %s15 = ssub.s32 %s9, 2
    %s16 = sadd.s32 %s9, 1
    %s17 = ssub.s32 %s9, %s16
    %p18 = scmp.eq.s32.totalorder %s17, 0
    %s20 = sadd.s32 %s19, 1
    %s21 = scalar_select %p18, %s19, %s20
    %p24 = pneg %p18
    %p25 = scmp.eq.s32.totalorder %s9, 3
    %p26 = por %p24, %p25
    %p27 = scmp.ne.s32.totalorder %s19, %s22
    %p28 = scmp.eq.s32.totalorder %s9, 0
    %p29 = por %p27, %p28
    %p30 = scmp.ne.s32.totalorder %s19, %s22
    %p31 = scmp.eq.s32.totalorder %s14, 3
    %p32 = por %p30, %p31
    %p33 = scmp.ne.s32.totalorder %s22, %s23
    %p34 = scmp.eq.s32.totalorder %s14, 0
    %p35 = por %p33, %p34
    %p36 = scmp.ne.s32.totalorder %s22, %s23
    %p37 = scmp.eq.s32.totalorder %s15, 3
    %p38 = por %p36, %p37
    %p40 = scmp.ne.s32.totalorder %s23, %s39
    %p41 = scmp.eq.s32.totalorder %s15, 0
    %p42 = por %p40, %p41
    %s44 = sadd.s32 %s43, 1
    %p47 = scmp.eq.s32.totalorder %s9, 3
    %p48 = scmp.ne.s32.totalorder %s43, %s45
    %p49 = scmp.eq.s32.totalorder %s9, 0
    %p50 = por %p48, %p49
    %p51 = scmp.ne.s32.totalorder %s43, %s45
    %p52 = scmp.eq.s32.totalorder %s14, 3
    %p53 = por %p51, %p52
    %p54 = scmp.ne.s32.totalorder %s45, %s46
    %p55 = scmp.eq.s32.totalorder %s14, 0
    %p56 = por %p54, %p55
    %p57 = scmp.ne.s32.totalorder %s45, %s46
    %p58 = scmp.eq.s32.totalorder %s15, 3
    %p59 = por %p57, %p58
    %p61 = scmp.ne.s32.totalorder %s46, %s60
    %p62 = scmp.eq.s32.totalorder %s15, 0
    %p63 = por %p61, %p62
    %s65 = sadd.s32 %s64, 1
    %p68 = scmp.eq.s32.totalorder %s9, 3
    %p69 = scmp.ne.s32.totalorder %s64, %s66
    %p70 = scmp.eq.s32.totalorder %s9, 0
    %p71 = por %p69, %p70
    %p72 = scmp.ne.s32.totalorder %s64, %s66
    %p73 = scmp.eq.s32.totalorder %s14, 3
    %p74 = por %p72, %p73
    %p75 = scmp.ne.s32.totalorder %s66, %s67
    %p76 = scmp.eq.s32.totalorder %s14, 0
    %p77 = por %p75, %p76
    %p78 = scmp.ne.s32.totalorder %s66, %s67
    %p79 = scmp.eq.s32.totalorder %s15, 3
    %p80 = por %p78, %p79
    %p82 = scmp.ne.s32.totalorder %s67, %s81
    %p83 = scmp.eq.s32.totalorder %s15, 0
    %p84 = por %p82, %p83
    %s85 = ssub.s32 %s9, %s16
    %p86 = scmp.eq.s32.totalorder %s85, 0
    %s88 = sadd.s32 %s87, 1
    %s89 = scalar_select %p86, %s87, %s88
    %p92 = pneg %p86
    %p93 = scmp.eq.s32.totalorder %s9, 3
    %p94 = por %p92, %p93
    %p95 = scmp.ne.s32.totalorder %s87, %s90
    %p96 = scmp.eq.s32.totalorder %s9, 0
    %p97 = por %p95, %p96
    %p98 = scmp.ne.s32.totalorder %s87, %s90
    %p99 = scmp.eq.s32.totalorder %s14, 3
    %p100 = por %p98, %p99
    %p101 = scmp.ne.s32.totalorder %s90, %s91
    %p102 = scmp.eq.s32.totalorder %s14, 0
    %p103 = por %p101, %p102
    %p104 = scmp.ne.s32.totalorder %s90, %s91
    %p105 = scmp.eq.s32.totalorder %s15, 3
    %p106 = por %p104, %p105
    %p108 = scmp.ne.s32.totalorder %s91, %s107
    %p109 = scmp.eq.s32.totalorder %s15, 0
    %p110 = por %p108, %p109
    %p111 = scmp.le.s32.totalorder 1, %s9
    %p112 = scmp.lt.s32.totalorder %s9, 5
    %p113 = pnand %p111, %p112
    %p114 = pneg %p113
    // Predicated region
    $region9: #{conv_block_forward.1} parent=5 // pred_check
      _
    $region10: #{conv_block_forward.1} parent=5 // pred_check_branch
      %116 = sbr.rel (%p113) target = $region12
    $region11: #{conv_block_forward.1} parent=5 // pred_region
      %s117 = ssub.s32 %s9, 1
      // Predicated region
      $region13: #{conv_block_forward.1} parent=11 // pred_check
        %p118 = pneg %p56
      $region14: #{conv_block_forward.1} parent=11 // pred_check_branch
        %120 = sbr.rel (%p118) target = $region16
      $region15: #{conv_block_forward.1} parent=11 // pred_region
        _
      $region16: #{conv_block_forward.1} parent=11 // pred_fallthru
        _
      // Predicated region
      $region17: #{conv_block_forward.1} parent=11 // pred_check
        %p121 = pneg %p77
      $region18: #{conv_block_forward.1} parent=11 // pred_check_branch
        %123 = sbr.rel (%p121) target = $region20
      $region19: #{conv_block_forward.1} parent=11 // pred_region
        _
      $region20: #{conv_block_forward.1} parent=11 // pred_fallthru
        _
    $region12: #{conv_block_forward.1} parent=5 // pred_fallthru
      _
    %p124 = scmp.lt.s32.totalorder %s9, 4
    // Predicated region
    $region21: #{conv_block_forward.1} parent=5 // pred_check
      %p125 = pneg %p124
    $region22: #{conv_block_forward.1} parent=5 // pred_check_branch
      %127 = sbr.rel (%p125) target = $region24
    $region23: #{conv_block_forward.1} parent=5 // pred_region
      // Predicated region
      $region25: #{conv_block_forward.1} parent=23 // pred_check
        %p128 = pneg %p29
      $region26: #{conv_block_forward.1} parent=23 // pred_check_branch
        %130 = sbr.rel (%p128) target = $region28
      $region27: #{conv_block_forward.1} parent=23 // pred_region
        %p131 = scmp.lt.s32.totalorder %s9, 3
        %s132 = scalar_select %p131, %s9, 3
        %s133 = smul.addr %s132, 60
        %s134 = smul.addr %s133, 4
        %s135 = scalar_lea.vmem %s0, %s134
      $region28: #{conv_block_forward.1} parent=23 // pred_fallthru
        _
    $region24: #{conv_block_forward.1} parent=5 // pred_fallthru
      _
    %p136 = scmp.le.s32.totalorder 1, %s9
    %p137 = scmp.lt.s32.totalorder %s9, 5
    %p138 = pnand %p136, %p137
    %p139 = pneg %p138
    // Predicated region
    $region29: #{conv_block_forward.1} parent=5 // pred_check
      _
    $region30: #{conv_block_forward.1} parent=5 // pred_check_branch
      %141 = sbr.rel (%p138) target = $region32
    $region31: #{conv_block_forward.1} parent=5 // pred_region
      %s142 = ssub.s32 %s9, 1
      %p143 = scmp.lt.s32.totalorder %s14, 3
      %s144 = scalar_select %p143, %s14, 3
      %s145 = smul.addr %s144, 60
      %s146 = smul.addr %s145, 4
      %s147 = scalar_lea.vmem %s0, %s146
      %p148 = pneg %p35
      %p149 = pneg %p32
      %p150 = pneg %p56
      %p151 = pneg %p53
      %p152 = pneg %p77
      %p153 = pneg %p74
      %p154 = pneg %p103
      %p155 = pneg %p100
      %p156 = scmp.lt.s32.totalorder %s14, 3
      %s157 = scalar_select %p156, %s14, 3
      %s158 = smul.addr %s157, 16
      %s159 = smul.addr %s158, 8
      %s160 = scalar_lea.vmem %s3, %s159
      %p161 = scmp.lt.s32.totalorder %s14, 3
      %s162 = scalar_select %p161, %s14, 3
      %s163 = smul.addr %s162, 60
      %s164 = smul.addr %s163, 4
      %s165 = scalar_lea.vmem %s0, %s164
      %p166 = scmp.lt.s32.totalorder %s14, 3
      %s167 = scalar_select %p166, %s14, 3
      %s168 = smul.addr %s167, 16
      %s169 = smul.addr %s168, 8
      %s170 = scalar_lea.vmem %s3, %s169
      %p172 = scmp.lt.s32.totalorder %s14, 0
      %s173 = ssub.s32 0, %s14
      %s174 = scalar_select %p172, %s173, %s14
      %s175 = sand.u32 %s174, 1
      %s176 = ssub.s32 0, %s175
      %s177 = scalar_select %p172, %s176, %s175
      %p178 = scmp.ne.s32.totalorder %s177, 0
      %p179 = scmp.lt.s32.totalorder %s177, 0
      %p180 = pnand %p179, %p178
      %p181 = pneg %p180
      %s182 = sadd.s32 %s177, 2
      %s183 = scalar_select %p181, %s182, %s177
      %s184 = smul.u32 %s183, 8
      %v185 = vld [vmem:[%s165] sm:$0xf]
      %v186 = vld [vmem:[%s165 + $0x4] sm:$0xf]
      %v187 = vld [vmem:[%s165 + $0x8] sm:$0xf]
      %v188 = vld [vmem:[%s165 + $0xc] sm:$0xf]
      %v189 = vld [vmem:[%s165 + $0x14] sm:$0xf]
      %v190 = vld [vmem:[%s165 + $0x18] sm:$0xf]
      %v191 = vld [vmem:[%s165 + $0x1c] sm:$0xf]
      %v192 = vld [vmem:[%s165 + $0x20] sm:$0xf]
      %v193 = vld [vmem:[%s165 + $0x28] sm:$0xf]
      %v194 = vld [vmem:[%s165 + $0x2c] sm:$0xf]
      %v195 = vld [vmem:[%s165 + $0x30] sm:$0xf]
      %v196 = vld [vmem:[%s165 + $0x34] sm:$0xf]
      %v197 = vld [vmem:[%s165 + $0x3c] sm:$0xf]
      %v198 = vld [vmem:[%s165 + $0x40] sm:$0xf]
      %v199 = vld [vmem:[%s165 + $0x44] sm:$0xf]
      %v200 = vld [vmem:[%s165 + $0x48] sm:$0xf]
      %v201 = vld [vmem:[%s165 + $0x50] sm:$0xf]
      %v202 = vld [vmem:[%s165 + $0x54] sm:$0xf]
      %v203 = vld [vmem:[%s165 + $0x58] sm:$0xf]
      %v204 = vld [vmem:[%s165 + $0x5c] sm:$0xf]
      %v205 = vld [vmem:[%s165 + $0x64] sm:$0xf]
      %v206 = vld [vmem:[%s165 + $0x68] sm:$0xf]
      %v207 = vld [vmem:[%s165 + $0x6c] sm:$0xf]
      %v208 = vld [vmem:[%s165 + $0x70] sm:$0xf]
      %v209 = vld [vmem:[%s165 + $0x78] sm:$0xf]
      %v210 = vld [vmem:[%s165 + $0x7c] sm:$0xf]
      %v211 = vld [vmem:[%s165 + $0x80] sm:$0xf]
      %v212 = vld [vmem:[%s165 + $0x84] sm:$0xf]
      %v213 = vld [vmem:[%s165 + $0x8c] sm:$0xf]
      %v214 = vld [vmem:[%s165 + $0x90] sm:$0xf]
      %v215 = vld [vmem:[%s165 + $0x94] sm:$0xf]
      %v216 = vld [vmem:[%s165 + $0x98] sm:$0xf]
      %v217 = vld [vmem:[%s165 + $0xa0] sm:$0xf]
      %v218 = vld [vmem:[%s165 + $0xa4] sm:$0xf]
      %v219 = vld [vmem:[%s165 + $0xa8] sm:$0xf]
      %v220 = vld [vmem:[%s165 + $0xac] sm:$0xf]
      %v221 = vld [vmem:[%s165 + $0xb4] sm:$0xf]
      %v222 = vld [vmem:[%s165 + $0xb8] sm:$0xf]
      %v223 = vld [vmem:[%s165 + $0xbc] sm:$0xf]
      %v224 = vld [vmem:[%s165 + $0xc0] sm:$0xf]
      %v225 = vld [vmem:[%s165 + $0xc8] sm:$0xf]
      %v226 = vld [vmem:[%s165 + $0xcc] sm:$0xf]
      %v227 = vld [vmem:[%s165 + $0xd0] sm:$0xf]
      %v228 = vld [vmem:[%s165 + $0xd4] sm:$0xf]
      %v229 = vld [vmem:[%s165 + $0xdc] sm:$0xf]
      %v230 = vld [vmem:[%s165 + $0xe0] sm:$0xf]
      %v231 = vld [vmem:[%s165 + $0xe4] sm:$0xf]
      %v232 = vld [vmem:[%s165 + $0xe8] sm:$0xf]
      %v233 = vld [vmem:[%s1] sm:$0x3]
      %s234 = scalar_lea.vmem %s1, 6
      %v235 = vld [vmem:[%s234] sm:$0x3]
      %v276 = vunpack.c.l.b16 %v189
      %v277 = vunpack.c.l.b16 %v190
      %v278 = vunpack.c.l.b16 %v191
      %v279 = vunpack.c.l.b16 %v192
      %v280 = vunpack.c.l.b16 %v193
      %v281 = vunpack.c.l.b16 %v194
      %v282 = vunpack.c.l.b16 %v195
      %v283 = vunpack.c.l.b16 %v196
      %v284 = vunpack.c.l.b16 %v197
      %v285 = vunpack.c.l.b16 %v198
      %v286 = vunpack.c.l.b16 %v199
      %v287 = vunpack.c.l.b16 %v200
      %v288 = vunpack.c.l.b16 %v201
      %v289 = vunpack.c.l.b16 %v202
      %v290 = vunpack.c.l.b16 %v203
      %v291 = vunpack.c.l.b16 %v204
      %v292 = vunpack.c.l.b16 %v205
      %v293 = vunpack.c.l.b16 %v206
      %v294 = vunpack.c.l.b16 %v207
      %v295 = vunpack.c.l.b16 %v208
      %v296 = vunpack.c.l.b16 %v209
      %v297 = vunpack.c.l.b16 %v210
      %v298 = vunpack.c.l.b16 %v211
      %v299 = vunpack.c.l.b16 %v212
      %v300 = vunpack.c.l.b16 %v213
      %v301 = vunpack.c.l.b16 %v214
      %v302 = vunpack.c.l.b16 %v215
      %v303 = vunpack.c.l.b16 %v216
      %v304 = vunpack.c.l.b16 %v217
      %v305 = vunpack.c.l.b16 %v218
      %v306 = vunpack.c.l.b16 %v219
      %v307 = vunpack.c.l.b16 %v220
      %v308 = vunpack.c.l.b16 %v221
      %v309 = vunpack.c.l.b16 %v222
      %v310 = vunpack.c.l.b16 %v223
      %v311 = vunpack.c.l.b16 %v224
      %v312 = vunpack.c.l.b16 %v225
      %v313 = vunpack.c.l.b16 %v226
      %v314 = vunpack.c.l.b16 %v227
      %v315 = vunpack.c.l.b16 %v228
      %v316 = vpack.c.b16 %v277, %v276
      %v317 = vpack.c.b16 %v279, %v278
      %v318 = vpack.c.b16 %v281, %v280
      %v319 = vpack.c.b16 %v283, %v282
      %v320 = vpack.c.b16 %v285, %v284
      %v321 = vpack.c.b16 %v287, %v286
      %v322 = vpack.c.b16 %v289, %v288
      %v323 = vpack.c.b16 %v291, %v290
      %v324 = vpack.c.b16 %v293, %v292
      %v325 = vpack.c.b16 %v295, %v294
      %v326 = vpack.c.b16 %v297, %v296
      %v327 = vpack.c.b16 %v299, %v298
      %v328 = vpack.c.b16 %v301, %v300
      %v329 = vpack.c.b16 %v303, %v302
      %v330 = vpack.c.b16 %v305, %v304
      %v331 = vpack.c.b16 %v307, %v306
      %v332 = vpack.c.b16 %v309, %v308
      %v333 = vpack.c.b16 %v311, %v310
      %v334 = vpack.c.b16 %v313, %v312
      %v335 = vpack.c.b16 %v315, %v314
      %vm336 = vcmask 31744
      %v338 = vsel %vm336, %v316, 0
      %v341 = vsel %vm336, %v317, 0
      %v344 = vsel %vm336, %v318, 0
      %v347 = vsel %vm336, %v319, 0
      %v350 = vsel %vm336, %v320, 0
      %v353 = vsel %vm336, %v321, 0
      %v356 = vsel %vm336, %v322, 0
      %v359 = vsel %vm336, %v323, 0
      %v362 = vsel %vm336, %v324, 0
      %v365 = vsel %vm336, %v325, 0
      %v368 = vsel %vm336, %v326, 0
      %v371 = vsel %vm336, %v327, 0
      %v374 = vsel %vm336, %v328, 0
      %v377 = vsel %vm336, %v329, 0
      %v380 = vsel %vm336, %v330, 0
      %v383 = vsel %vm336, %v331, 0
      %v386 = vsel %vm336, %v332, 0
      %v389 = vsel %vm336, %v333, 0
      %v392 = vsel %vm336, %v334, 0
      %v395 = vsel %vm336, %v335, 0
      %vm397 = vcmask 1041408
      %v399 = vsel %vm397, %v235, 0
      %401 = vmatprep.subr.bf16.mxu0 0
      %402 = vmatpush1.bf16.msra.mxu0 0
      %403 = vmatprep.subr.bf16.mxu0 0
      %404 = vmatpush1.bf16.msra.mxu0 0
      %405 = vmatprep.subr.bf16.mxu0 0
      %406 = vmatpush1.bf16.msra.mxu0 0
      %407 = vmatprep.subr.bf16.mxu0 0
      %408 = vmatpush1.bf16.msra.mxu0 0
      %409 = vmatprep.subr.bf16.mxu0 0
      %410 = vmatpush1.bf16.msra.mxu0 0
      %411 = vmatprep.subr.bf16.mxu0 0
      %412 = vmatpush1.bf16.msra.mxu0 0
      %413 = vmatprep.subr.bf16.mxu0 0
      %414 = vmatpush1.bf16.msra.mxu0 0
      %415 = vmatprep.subr.bf16.mxu0 0
      %416 = vmatpush1.bf16.msra.mxu0 %v399
      %417 = vmatprep.subr.bf16.mxu0 0
      %418 = vmatpush2.bf16.msra.mxu0 0
      %419 = vmatprep.subr.bf16.mxu0 0
      %420 = vmatpush2.bf16.msra.mxu0 0
      %421 = vmatprep.subr.bf16.mxu0 0
      %422 = vmatpush2.bf16.msra.mxu0 0
      %423 = vmatprep.subr.bf16.mxu0 0
      %424 = vmatpush2.bf16.msra.mxu0 0
      %425 = vmatprep.subr.bf16.mxu0 0
      %426 = vmatpush2.bf16.msra.mxu0 0
      %427 = vmatprep.subr.bf16.mxu0 0
      %428 = vmatpush2.bf16.msra.mxu0 0
      %429 = vmatprep.subr.bf16.mxu0 0
      %430 = vmatpush2.bf16.msra.mxu0 0
      %431 = vmatprep.subr.bf16.mxu0 0
      %432 = vmatpush2.bf16.msra.mxu0 0
      %433 = vmatprep.mubr.bf16.mxu0 0
      %434 = vmatmul.mubr.bf16.gmra.mxu0 %v338
      %v435 = vpop.f32.mrf.mxu0
      %v436 = vadd.f32 0.0, %v435
      %v437 = vpop.f32.mrf.mxu0
      %v438 = vpop.f32.mrf.mxu0
      %v439 = vadd.f32 0.0, %v438
      %v440 = vpop.f32.mrf.mxu0
      %441 = vmatprep.mubr.bf16.mxu0 0
      %442 = vmatmul.mubr.bf16.gmra.mxu0 %v341
      %v443 = vpop.f32.mrf.mxu0
      %v444 = vadd.f32 0.0, %v443
      %v445 = vpop.f32.mrf.mxu0
      %v446 = vpop.f32.mrf.mxu0
      %v447 = vadd.f32 0.0, %v446
      %v448 = vpop.f32.mrf.mxu0
      %449 = vmatprep.mubr.bf16.mxu0 0
      %450 = vmatmul.mubr.bf16.gmra.mxu0 %v344
      %v451 = vpop.f32.mrf.mxu0
      %v452 = vadd.f32 0.0, %v451
      %v453 = vpop.f32.mrf.mxu0
      %v454 = vpop.f32.mrf.mxu0
      %v455 = vadd.f32 0.0, %v454
      %v456 = vpop.f32.mrf.mxu0
      %457 = vmatprep.mubr.bf16.mxu0 0
      %458 = vmatmul.mubr.bf16.gmra.mxu0 %v347
      %v459 = vpop.f32.mrf.mxu0
      %v460 = vadd.f32 0.0, %v459
      %v461 = vpop.f32.mrf.mxu0
      %v462 = vpop.f32.mrf.mxu0
      %v463 = vadd.f32 0.0, %v462
      %v464 = vpop.f32.mrf.mxu0
      %465 = vmatprep.mubr.bf16.mxu0 0
      %466 = vmatmul.mubr.bf16.gmra.mxu0 %v350
      %v467 = vpop.f32.mrf.mxu0
      %v468 = vadd.f32 0.0, %v467
      %v469 = vpop.f32.mrf.mxu0
      %v470 = vpop.f32.mrf.mxu0
      %v471 = vadd.f32 0.0, %v470
      %v472 = vpop.f32.mrf.mxu0
      %473 = vmatprep.mubr.bf16.mxu0 0
      %474 = vmatmul.mubr.bf16.gmra.mxu0 %v353
      %v475 = vpop.f32.mrf.mxu0
      %v476 = vadd.f32 0.0, %v475
      %v477 = vpop.f32.mrf.mxu0
      %v478 = vpop.f32.mrf.mxu0
      %v479 = vadd.f32 0.0, %v478
      %v480 = vpop.f32.mrf.mxu0
      %481 = vmatprep.mubr.bf16.mxu0 0
      %482 = vmatmul.mubr.bf16.gmra.mxu0 %v356
      %v483 = vpop.f32.mrf.mxu0
      %v484 = vadd.f32 0.0, %v483
      %v485 = vpop.f32.mrf.mxu0
      %v486 = vpop.f32.mrf.mxu0
      %v487 = vadd.f32 0.0, %v486
      %v488 = vpop.f32.mrf.mxu0
      %489 = vmatprep.mubr.bf16.mxu0 0
      %490 = vmatmul.mubr.bf16.gmra.mxu0 %v359
      %v491 = vpop.f32.mrf.mxu0
      %v492 = vadd.f32 0.0, %v491
      %v493 = vpop.f32.mrf.mxu0
      %v494 = vpop.f32.mrf.mxu0
      %v495 = vadd.f32 0.0, %v494
      %v496 = vpop.f32.mrf.mxu0
      %497 = vmatprep.mubr.bf16.mxu0 0
      %498 = vmatmul.mubr.bf16.gmra.mxu0 %v362
      %v499 = vpop.f32.mrf.mxu0
      %v500 = vadd.f32 0.0, %v499
      %v501 = vpop.f32.mrf.mxu0
      %v502 = vpop.f32.mrf.mxu0
      %v503 = vadd.f32 0.0, %v502
      %v504 = vpop.f32.mrf.mxu0
      %505 = vmatprep.mubr.bf16.mxu0 0
      %506 = vmatmul.mubr.bf16.gmra.mxu0 %v365
      %v507 = vpop.f32.mrf.mxu0
      %v508 = vadd.f32 0.0, %v507
      %v509 = vpop.f32.mrf.mxu0
      %v510 = vpop.f32.mrf.mxu0
      %v511 = vadd.f32 0.0, %v510
      %v512 = vpop.f32.mrf.mxu0
      %513 = vmatprep.mubr.bf16.mxu0 0
      %514 = vmatmul.mubr.bf16.gmra.mxu0 %v368
      %v515 = vpop.f32.mrf.mxu0
      %v516 = vadd.f32 0.0, %v515
      %v517 = vpop.f32.mrf.mxu0
      %v518 = vpop.f32.mrf.mxu0
      %v519 = vadd.f32 0.0, %v518
      %v520 = vpop.f32.mrf.mxu0
      %521 = vmatprep.mubr.bf16.mxu0 0
      %522 = vmatmul.mubr.bf16.gmra.mxu0 %v371
      %v523 = vpop.f32.mrf.mxu0
      %v524 = vadd.f32 0.0, %v523
      %v525 = vpop.f32.mrf.mxu0
      %v526 = vpop.f32.mrf.mxu0
      %v527 = vadd.f32 0.0, %v526
      %v528 = vpop.f32.mrf.mxu0
      %529 = vmatprep.mubr.bf16.mxu0 0
      %530 = vmatmul.mubr.bf16.gmra.mxu0 %v374
      %v531 = vpop.f32.mrf.mxu0
      %v532 = vadd.f32 0.0, %v531
      %v533 = vpop.f32.mrf.mxu0
      %v534 = vpop.f32.mrf.mxu0
      %v535 = vadd.f32 0.0, %v534
      %v536 = vpop.f32.mrf.mxu0
      %537 = vmatprep.mubr.bf16.mxu0 0
      %538 = vmatmul.mubr.bf16.gmra.mxu0 %v377
      %v539 = vpop.f32.mrf.mxu0
      %v540 = vadd.f32 0.0, %v539
      %v541 = vpop.f32.mrf.mxu0
      %v542 = vpop.f32.mrf.mxu0
      %v543 = vadd.f32 0.0, %v542
      %v544 = vpop.f32.mrf.mxu0
      %545 = vmatprep.mubr.bf16.mxu0 0
      %546 = vmatmul.mubr.bf16.gmra.mxu0 %v380
      %v547 = vpop.f32.mrf.mxu0
      %v548 = vadd.f32 0.0, %v547
      %v549 = vpop.f32.mrf.mxu0
      %v550 = vpop.f32.mrf.mxu0
      %v551 = vadd.f32 0.0, %v550
      %v552 = vpop.f32.mrf.mxu0
      %553 = vmatprep.mubr.bf16.mxu0 0
      %554 = vmatmul.mubr.bf16.gmra.mxu0 %v383
      %v555 = vpop.f32.mrf.mxu0
      %v556 = vadd.f32 0.0, %v555
      %v557 = vpop.f32.mrf.mxu0
      %v558 = vpop.f32.mrf.mxu0
      %v559 = vadd.f32 0.0, %v558
      %v560 = vpop.f32.mrf.mxu0
      %561 = vmatprep.mubr.bf16.mxu0 0
      %562 = vmatmul.mubr.bf16.gmra.mxu0 %v386
      %v563 = vpop.f32.mrf.mxu0
      %v564 = vadd.f32 0.0, %v563
      %v565 = vpop.f32.mrf.mxu0
      %v566 = vpop.f32.mrf.mxu0
      %v567 = vadd.f32 0.0, %v566
      %v568 = vpop.f32.mrf.mxu0
      %569 = vmatprep.mubr.bf16.mxu0 0
      %570 = vmatmul.mubr.bf16.gmra.mxu0 %v389
      %v571 = vpop.f32.mrf.mxu0
      %v572 = vadd.f32 0.0, %v571
      %v573 = vpop.f32.mrf.mxu0
      %v574 = vpop.f32.mrf.mxu0
      %v575 = vadd.f32 0.0, %v574
      %v576 = vpop.f32.mrf.mxu0
      %577 = vmatprep.mubr.bf16.mxu0 0
      %578 = vmatmul.mubr.bf16.gmra.mxu0 %v392
      %v579 = vpop.f32.mrf.mxu0
      %v580 = vadd.f32 0.0, %v579
      %v581 = vpop.f32.mrf.mxu0
      %v582 = vpop.f32.mrf.mxu0
      %v583 = vadd.f32 0.0, %v582
      %v584 = vpop.f32.mrf.mxu0
      %585 = vmatprep.mubr.bf16.mxu0 0
      %586 = vmatmul.mubr.bf16.gmra.mxu0 %v395
      %v587 = vpop.f32.mrf.mxu0
      %v588 = vadd.f32 0.0, %v587
      %v589 = vpop.f32.mrf.mxu0
      %v590 = vpop.f32.mrf.mxu0
      %v591 = vadd.f32 0.0, %v590
      %v592 = vpop.f32.mrf.mxu0
      %593 = vdwg.mxu0
      %v598 = vunpack.c.l.b16 %v185
      %v599 = vunpack.c.l.b16 %v186
      %v600 = vunpack.c.l.b16 %v187
      %v601 = vunpack.c.l.b16 %v188
      %v602 = vpack.c.b16 %v599, %v598
      %v603 = vpack.c.b16 %v601, %v600
      %v605 = vsel %vm336, %v602, 0
      %v608 = vsel %vm336, %v603, 0
      %v611 = vsel %vm397, %v233, 0
      %613 = vmatprep.subr.bf16.mxu0 0
      %614 = vmatpush1.bf16.msra.mxu0 0
      %615 = vmatprep.subr.bf16.mxu0 0
      %616 = vmatpush1.bf16.msra.mxu0 0
      %617 = vmatprep.subr.bf16.mxu0 0
      %618 = vmatpush1.bf16.msra.mxu0 0
      %619 = vmatprep.subr.bf16.mxu0 0
      %620 = vmatpush1.bf16.msra.mxu0 0
      %621 = vmatprep.subr.bf16.mxu0 0
      %622 = vmatpush1.bf16.msra.mxu0 0
      %623 = vmatprep.subr.bf16.mxu0 0
      %624 = vmatpush1.bf16.msra.mxu0 0
      %625 = vmatprep.subr.bf16.mxu0 0
      %626 = vmatpush1.bf16.msra.mxu0 0
      %627 = vmatprep.subr.bf16.mxu0 0
      %628 = vmatpush1.bf16.msra.mxu0 %v611
      %629 = vmatprep.subr.bf16.mxu0 0
      %630 = vmatpush2.bf16.msra.mxu0 0
      %631 = vmatprep.subr.bf16.mxu0 0
      %632 = vmatpush2.bf16.msra.mxu0 0
      %633 = vmatprep.subr.bf16.mxu0 0
      %634 = vmatpush2.bf16.msra.mxu0 0
      %635 = vmatprep.subr.bf16.mxu0 0
      %636 = vmatpush2.bf16.msra.mxu0 0
      %637 = vmatprep.subr.bf16.mxu0 0
      %638 = vmatpush2.bf16.msra.mxu0 0
      %639 = vmatprep.subr.bf16.mxu0 0
      %640 = vmatpush2.bf16.msra.mxu0 0
      %641 = vmatprep.subr.bf16.mxu0 0
      %642 = vmatpush2.bf16.msra.mxu0 0
      %643 = vmatprep.subr.bf16.mxu0 0
      %644 = vmatpush2.bf16.msra.mxu0 0
      %645 = vmatprep.mubr.bf16.mxu0 0
      %646 = vmatmul.mubr.bf16.gmra.mxu0 %v605
      %v647 = vpop.f32.mrf.mxu0
      %v648 = vadd.f32 %v436, %v647
      %v649 = vpop.f32.mrf.mxu0
      %v650 = vpop.f32.mrf.mxu0
      %v651 = vadd.f32 %v439, %v650
      %v652 = vpop.f32.mrf.mxu0
      %653 = vmatprep.mubr.bf16.mxu0 0
      %654 = vmatmul.mubr.bf16.gmra.mxu0 %v608
      %v655 = vpop.f32.mrf.mxu0
      %v656 = vadd.f32 %v444, %v655
      %v657 = vpop.f32.mrf.mxu0
      %v658 = vpop.f32.mrf.mxu0
      %v659 = vadd.f32 %v447, %v658
      %v660 = vpop.f32.mrf.mxu0
      %661 = vmatprep.mubr.bf16.mxu0 0
      %662 = vmatmul.mubr.bf16.gmra.mxu0 %v338
      %v663 = vpop.f32.mrf.mxu0
      %v664 = vadd.f32 %v452, %v663
      %v665 = vpop.f32.mrf.mxu0
      %v666 = vpop.f32.mrf.mxu0
      %v667 = vadd.f32 %v455, %v666
      %v668 = vpop.f32.mrf.mxu0
      %669 = vmatprep.mubr.bf16.mxu0 0
      %670 = vmatmul.mubr.bf16.gmra.mxu0 %v341
      %v671 = vpop.f32.mrf.mxu0
      %v672 = vadd.f32 %v460, %v671
      %v673 = vpop.f32.mrf.mxu0
      %v674 = vpop.f32.mrf.mxu0
      %v675 = vadd.f32 %v463, %v674
      %v676 = vpop.f32.mrf.mxu0
      %677 = vmatprep.mubr.bf16.mxu0 0
      %678 = vmatmul.mubr.bf16.gmra.mxu0 %v344
      %v679 = vpop.f32.mrf.mxu0
      %v680 = vadd.f32 %v468, %v679
      %v681 = vpop.f32.mrf.mxu0
      %v682 = vpop.f32.mrf.mxu0
      %v683 = vadd.f32 %v471, %v682
      %v684 = vpop.f32.mrf.mxu0
      %685 = vmatprep.mubr.bf16.mxu0 0
      %686 = vmatmul.mubr.bf16.gmra.mxu0 %v347
      %v687 = vpop.f32.mrf.mxu0
      %v688 = vadd.f32 %v476, %v687
      %v689 = vpop.f32.mrf.mxu0
      %v690 = vpop.f32.mrf.mxu0
      %v691 = vadd.f32 %v479, %v690
      %v692 = vpop.f32.mrf.mxu0
      %693 = vmatprep.mubr.bf16.mxu0 0
      %694 = vmatmul.mubr.bf16.gmra.mxu0 %v350
      %v695 = vpop.f32.mrf.mxu0
      %v696 = vadd.f32 %v484, %v695
      %v697 = vpop.f32.mrf.mxu0
      %v698 = vpop.f32.mrf.mxu0
      %v699 = vadd.f32 %v487, %v698
      %v700 = vpop.f32.mrf.mxu0
      %701 = vmatprep.mubr.bf16.mxu0 0
      %702 = vmatmul.mubr.bf16.gmra.mxu0 %v353
      %v703 = vpop.f32.mrf.mxu0
      %v704 = vadd.f32 %v492, %v703
      %v705 = vpop.f32.mrf.mxu0
      %v706 = vpop.f32.mrf.mxu0
      %v707 = vadd.f32 %v495, %v706
      %v708 = vpop.f32.mrf.mxu0
      %709 = vmatprep.mubr.bf16.mxu0 0
      %710 = vmatmul.mubr.bf16.gmra.mxu0 %v356
      %v711 = vpop.f32.mrf.mxu0
      %v712 = vadd.f32 %v500, %v711
      %v713 = vpop.f32.mrf.mxu0
      %v714 = vpop.f32.mrf.mxu0
      %v715 = vadd.f32 %v503, %v714
      %v716 = vpop.f32.mrf.mxu0
      %717 = vmatprep.mubr.bf16.mxu0 0
      %718 = vmatmul.mubr.bf16.gmra.mxu0 %v359
      %v719 = vpop.f32.mrf.mxu0
      %v720 = vadd.f32 %v508, %v719
      %v721 = vpop.f32.mrf.mxu0
      %v722 = vpop.f32.mrf.mxu0
      %v723 = vadd.f32 %v511, %v722
      %v724 = vpop.f32.mrf.mxu0
      %725 = vmatprep.mubr.bf16.mxu0 0
      %726 = vmatmul.mubr.bf16.gmra.mxu0 %v362
      %v727 = vpop.f32.mrf.mxu0
      %v728 = vadd.f32 %v516, %v727
      %v729 = vpop.f32.mrf.mxu0
      %v730 = vpop.f32.mrf.mxu0
      %v731 = vadd.f32 %v519, %v730
      %v732 = vpop.f32.mrf.mxu0
      %733 = vmatprep.mubr.bf16.mxu0 0
      %734 = vmatmul.mubr.bf16.gmra.mxu0 %v365
      %v735 = vpop.f32.mrf.mxu0
      %v736 = vadd.f32 %v524, %v735
      %v737 = vpop.f32.mrf.mxu0
      %v738 = vpop.f32.mrf.mxu0
      %v739 = vadd.f32 %v527, %v738
      %v740 = vpop.f32.mrf.mxu0
      %741 = vmatprep.mubr.bf16.mxu0 0
      %742 = vmatmul.mubr.bf16.gmra.mxu0 %v368
      %v743 = vpop.f32.mrf.mxu0
      %v744 = vadd.f32 %v532, %v743
      %v745 = vpop.f32.mrf.mxu0
      %v746 = vpop.f32.mrf.mxu0
      %v747 = vadd.f32 %v535, %v746
      %v748 = vpop.f32.mrf.mxu0
      %749 = vmatprep.mubr.bf16.mxu0 0
      %750 = vmatmul.mubr.bf16.gmra.mxu0 %v371
      %v751 = vpop.f32.mrf.mxu0
      %v752 = vadd.f32 %v540, %v751
      %v753 = vpop.f32.mrf.mxu0
      %v754 = vpop.f32.mrf.mxu0
      %v755 = vadd.f32 %v543, %v754
      %v756 = vpop.f32.mrf.mxu0
      %757 = vmatprep.mubr.bf16.mxu0 0
      %758 = vmatmul.mubr.bf16.gmra.mxu0 %v374
      %v759 = vpop.f32.mrf.mxu0
      %v760 = vadd.f32 %v548, %v759
      %v761 = vpop.f32.mrf.mxu0
      %v762 = vpop.f32.mrf.mxu0
      %v763 = vadd.f32 %v551, %v762
      %v764 = vpop.f32.mrf.mxu0
      %765 = vmatprep.mubr.bf16.mxu0 0
      %766 = vmatmul.mubr.bf16.gmra.mxu0 %v377
      %v767 = vpop.f32.mrf.mxu0
      %v768 = vadd.f32 %v556, %v767
      %v769 = vpop.f32.mrf.mxu0
      %v770 = vpop.f32.mrf.mxu0
      %v771 = vadd.f32 %v559, %v770
      %v772 = vpop.f32.mrf.mxu0
      %773 = vmatprep.mubr.bf16.mxu0 0
      %774 = vmatmul.mubr.bf16.gmra.mxu0 %v380
      %v775 = vpop.f32.mrf.mxu0
      %v776 = vadd.f32 %v564, %v775
      %v777 = vpop.f32.mrf.mxu0
      %v778 = vpop.f32.mrf.mxu0
      %v779 = vadd.f32 %v567, %v778
      %v780 = vpop.f32.mrf.mxu0
      %781 = vmatprep.mubr.bf16.mxu0 0
      %782 = vmatmul.mubr.bf16.gmra.mxu0 %v383
      %v783 = vpop.f32.mrf.mxu0
      %v784 = vadd.f32 %v572, %v783
      %v785 = vpop.f32.mrf.mxu0
      %v786 = vpop.f32.mrf.mxu0
      %v787 = vadd.f32 %v575, %v786
      %v788 = vpop.f32.mrf.mxu0
      %789 = vmatprep.mubr.bf16.mxu0 0
      %790 = vmatmul.mubr.bf16.gmra.mxu0 %v386
      %v791 = vpop.f32.mrf.mxu0
      %v792 = vadd.f32 %v580, %v791
      %v793 = vpop.f32.mrf.mxu0
      %v794 = vpop.f32.mrf.mxu0
      %v795 = vadd.f32 %v583, %v794
      %v796 = vpop.f32.mrf.mxu0
      %797 = vmatprep.mubr.bf16.mxu0 0
      %798 = vmatmul.mubr.bf16.gmra.mxu0 %v389
      %v799 = vpop.f32.mrf.mxu0
      %v800 = vadd.f32 %v588, %v799
      %v801 = vpop.f32.mrf.mxu0
      %v802 = vpop.f32.mrf.mxu0
      %v803 = vadd.f32 %v591, %v802
      %v804 = vpop.f32.mrf.mxu0
      %805 = vdwg.mxu0
      %s806 = scalar_lea.vmem %s1, 12
      %v807 = vld [vmem:[%s806] sm:$0x3]
      %v812 = vunpack.c.l.b16 %v229
      %v813 = vunpack.c.l.b16 %v230
      %v814 = vunpack.c.l.b16 %v231
      %v815 = vunpack.c.l.b16 %v232
      %v816 = vpack.c.b16 %v813, %v812
      %v817 = vpack.c.b16 %v815, %v814
      %v819 = vsel %vm336, %v816, 0
      %v822 = vsel %vm336, %v817, 0
      %v825 = vsel %vm397, %v807, 0
      %827 = vmatprep.subr.bf16.mxu0 0
      %828 = vmatpush1.bf16.msra.mxu0 0
      %829 = vmatprep.subr.bf16.mxu0 0
      %830 = vmatpush1.bf16.msra.mxu0 0
      %831 = vmatprep.subr.bf16.mxu0 0
      %832 = vmatpush1.bf16.msra.mxu0 0
      %833 = vmatprep.subr.bf16.mxu0 0
      %834 = vmatpush1.bf16.msra.mxu0 0
      %835 = vmatprep.subr.bf16.mxu0 0
      %836 = vmatpush1.bf16.msra.mxu0 0
      %837 = vmatprep.subr.bf16.mxu0 0
      %838 = vmatpush1.bf16.msra.mxu0 0
      %839 = vmatprep.subr.bf16.mxu0 0
      %840 = vmatpush1.bf16.msra.mxu0 0
      %841 = vmatprep.subr.bf16.mxu0 0
      %842 = vmatpush1.bf16.msra.mxu0 %v825
      %843 = vmatprep.subr.bf16.mxu0 0
      %844 = vmatpush2.bf16.msra.mxu0 0
      %845 = vmatprep.subr.bf16.mxu0 0
      %846 = vmatpush2.bf16.msra.mxu0 0
      %847 = vmatprep.subr.bf16.mxu0 0
      %848 = vmatpush2.bf16.msra.mxu0 0
      %849 = vmatprep.subr.bf16.mxu0 0
      %850 = vmatpush2.bf16.msra.mxu0 0
      %851 = vmatprep.subr.bf16.mxu0 0
      %852 = vmatpush2.bf16.msra.mxu0 0
      %853 = vmatprep.subr.bf16.mxu0 0
      %854 = vmatpush2.bf16.msra.mxu0 0
      %855 = vmatprep.subr.bf16.mxu0 0
      %856 = vmatpush2.bf16.msra.mxu0 0
      %857 = vmatprep.subr.bf16.mxu0 0
      %858 = vmatpush2.bf16.msra.mxu0 0
      %859 = vmatprep.mubr.bf16.mxu0 0
      %860 = vmatmul.mubr.bf16.gmra.mxu0 %v344
      %v861 = vpop.f32.mrf.mxu0
      %v862 = vadd.f32 0.0, %v861
      %v863 = vpop.f32.mrf.mxu0
      %v864 = vpop.f32.mrf.mxu0
      %v865 = vadd.f32 0.0, %v864
      %v866 = vpop.f32.mrf.mxu0
      %867 = vmatprep.mubr.bf16.mxu0 0
      %868 = vmatmul.mubr.bf16.gmra.mxu0 %v347
      %v869 = vpop.f32.mrf.mxu0
      %v870 = vadd.f32 0.0, %v869
      %v871 = vpop.f32.mrf.mxu0
      %v872 = vpop.f32.mrf.mxu0
      %v873 = vadd.f32 0.0, %v872
      %v874 = vpop.f32.mrf.mxu0
      %875 = vmatprep.mubr.bf16.mxu0 0
      %876 = vmatmul.mubr.bf16.gmra.mxu0 %v350
      %v877 = vpop.f32.mrf.mxu0
      %v878 = vadd.f32 0.0, %v877
      %v879 = vpop.f32.mrf.mxu0
      %v880 = vpop.f32.mrf.mxu0
      %v881 = vadd.f32 0.0, %v880
      %v882 = vpop.f32.mrf.mxu0
      %883 = vmatprep.mubr.bf16.mxu0 0
      %884 = vmatmul.mubr.bf16.gmra.mxu0 %v353
      %v885 = vpop.f32.mrf.mxu0
      %v886 = vadd.f32 0.0, %v885
      %v887 = vpop.f32.mrf.mxu0
      %v888 = vpop.f32.mrf.mxu0
      %v889 = vadd.f32 0.0, %v888
      %v890 = vpop.f32.mrf.mxu0
      %891 = vmatprep.mubr.bf16.mxu0 0
      %892 = vmatmul.mubr.bf16.gmra.mxu0 %v356
      %v893 = vpop.f32.mrf.mxu0
      %v894 = vadd.f32 0.0, %v893
      %v895 = vpop.f32.mrf.mxu0
      %v896 = vpop.f32.mrf.mxu0
      %v897 = vadd.f32 0.0, %v896
      %v898 = vpop.f32.mrf.mxu0
      %899 = vmatprep.mubr.bf16.mxu0 0
      %900 = vmatmul.mubr.bf16.gmra.mxu0 %v359
      %v901 = vpop.f32.mrf.mxu0
      %v902 = vadd.f32 0.0, %v901
      %v903 = vpop.f32.mrf.mxu0
      %v904 = vpop.f32.mrf.mxu0
      %v905 = vadd.f32 0.0, %v904
      %v906 = vpop.f32.mrf.mxu0
      %907 = vmatprep.mubr.bf16.mxu0 0
      %908 = vmatmul.mubr.bf16.gmra.mxu0 %v362
      %v909 = vpop.f32.mrf.mxu0
      %v910 = vadd.f32 0.0, %v909
      %v911 = vpop.f32.mrf.mxu0
      %v912 = vpop.f32.mrf.mxu0
      %v913 = vadd.f32 0.0, %v912
      %v914 = vpop.f32.mrf.mxu0
      %915 = vmatprep.mubr.bf16.mxu0 0
      %916 = vmatmul.mubr.bf16.gmra.mxu0 %v365
      %v917 = vpop.f32.mrf.mxu0
      %v918 = vadd.f32 0.0, %v917
      %v919 = vpop.f32.mrf.mxu0
      %v920 = vpop.f32.mrf.mxu0
      %v921 = vadd.f32 0.0, %v920
      %v922 = vpop.f32.mrf.mxu0
      %923 = vmatprep.mubr.bf16.mxu0 0
      %924 = vmatmul.mubr.bf16.gmra.mxu0 %v368
      %v925 = vpop.f32.mrf.mxu0
      %v926 = vadd.f32 0.0, %v925
      %v927 = vpop.f32.mrf.mxu0
      %v928 = vpop.f32.mrf.mxu0
      %v929 = vadd.f32 0.0, %v928
      %v930 = vpop.f32.mrf.mxu0
      %931 = vmatprep.mubr.bf16.mxu0 0
      %932 = vmatmul.mubr.bf16.gmra.mxu0 %v371
      %v933 = vpop.f32.mrf.mxu0
      %v934 = vadd.f32 0.0, %v933
      %v935 = vpop.f32.mrf.mxu0
      %v936 = vpop.f32.mrf.mxu0
      %v937 = vadd.f32 0.0, %v936
      %v938 = vpop.f32.mrf.mxu0
      %939 = vmatprep.mubr.bf16.mxu0 0
      %940 = vmatmul.mubr.bf16.gmra.mxu0 %v374
      %v941 = vpop.f32.mrf.mxu0
      %v942 = vadd.f32 0.0, %v941
      %v943 = vpop.f32.mrf.mxu0
      %v944 = vpop.f32.mrf.mxu0
      %v945 = vadd.f32 0.0, %v944
      %v946 = vpop.f32.mrf.mxu0
      %947 = vmatprep.mubr.bf16.mxu0 0
      %948 = vmatmul.mubr.bf16.gmra.mxu0 %v377
      %v949 = vpop.f32.mrf.mxu0
      %v950 = vadd.f32 0.0, %v949
      %v951 = vpop.f32.mrf.mxu0
      %v952 = vpop.f32.mrf.mxu0
      %v953 = vadd.f32 0.0, %v952
      %v954 = vpop.f32.mrf.mxu0
      %955 = vmatprep.mubr.bf16.mxu0 0
      %956 = vmatmul.mubr.bf16.gmra.mxu0 %v380
      %v957 = vpop.f32.mrf.mxu0
      %v958 = vadd.f32 0.0, %v957
      %v959 = vpop.f32.mrf.mxu0
      %v960 = vpop.f32.mrf.mxu0
      %v961 = vadd.f32 0.0, %v960
      %v962 = vpop.f32.mrf.mxu0
      %963 = vmatprep.mubr.bf16.mxu0 0
      %964 = vmatmul.mubr.bf16.gmra.mxu0 %v383
      %v965 = vpop.f32.mrf.mxu0
      %v966 = vadd.f32 0.0, %v965
      %v967 = vpop.f32.mrf.mxu0
      %v968 = vpop.f32.mrf.mxu0
      %v969 = vadd.f32 0.0, %v968
      %v970 = vpop.f32.mrf.mxu0
      %971 = vmatprep.mubr.bf16.mxu0 0
      %972 = vmatmul.mubr.bf16.gmra.mxu0 %v386
      %v973 = vpop.f32.mrf.mxu0
      %v974 = vadd.f32 0.0, %v973
      %v975 = vpop.f32.mrf.mxu0
      %v976 = vpop.f32.mrf.mxu0
      %v977 = vadd.f32 0.0, %v976
      %v978 = vpop.f32.mrf.mxu0
      %979 = vmatprep.mubr.bf16.mxu0 0
      %980 = vmatmul.mubr.bf16.gmra.mxu0 %v389
      %v981 = vpop.f32.mrf.mxu0
      %v982 = vadd.f32 0.0, %v981
      %v983 = vpop.f32.mrf.mxu0
      %v984 = vpop.f32.mrf.mxu0
      %v985 = vadd.f32 0.0, %v984
      %v986 = vpop.f32.mrf.mxu0
      %987 = vmatprep.mubr.bf16.mxu0 0
      %988 = vmatmul.mubr.bf16.gmra.mxu0 %v392
      %v989 = vpop.f32.mrf.mxu0
      %v990 = vadd.f32 0.0, %v989
      %v991 = vpop.f32.mrf.mxu0
      %v992 = vpop.f32.mrf.mxu0
      %v993 = vadd.f32 0.0, %v992
      %v994 = vpop.f32.mrf.mxu0
      %995 = vmatprep.mubr.bf16.mxu0 0
      %996 = vmatmul.mubr.bf16.gmra.mxu0 %v395
      %v997 = vpop.f32.mrf.mxu0
      %v998 = vadd.f32 0.0, %v997
      %v999 = vpop.f32.mrf.mxu0
      %v1000 = vpop.f32.mrf.mxu0
      %v1001 = vadd.f32 0.0, %v1000
      %v1002 = vpop.f32.mrf.mxu0
      %1003 = vmatprep.mubr.bf16.mxu0 0
      %1004 = vmatmul.mubr.bf16.gmra.mxu0 %v819
      %v1005 = vpop.f32.mrf.mxu0
      %v1006 = vadd.f32 0.0, %v1005
      %v1007 = vpop.f32.mrf.mxu0
      %v1008 = vpop.f32.mrf.mxu0
      %v1009 = vadd.f32 0.0, %v1008
      %v1010 = vpop.f32.mrf.mxu0
      %1011 = vmatprep.mubr.bf16.mxu0 0
      %1012 = vmatmul.mubr.bf16.gmra.mxu0 %v822
      %v1013 = vpop.f32.mrf.mxu0
      %v1014 = vadd.f32 0.0, %v1013
      %v1015 = vpop.f32.mrf.mxu0
      %v1016 = vpop.f32.mrf.mxu0
      %v1017 = vadd.f32 0.0, %v1016
      %v1018 = vpop.f32.mrf.mxu0
      %1019 = vdwg.mxu0
      %v1020 = vadd.f32 %v648, %v862
      %v1021 = vadd.f32 %v651, %v865
      %v1022 = vadd.f32 %v656, %v870
      %v1023 = vadd.f32 %v659, %v873
      %v1024 = vadd.f32 %v664, %v878
      %v1025 = vadd.f32 %v667, %v881
      %v1026 = vadd.f32 %v672, %v886
      %v1027 = vadd.f32 %v675, %v889
      %v1028 = vadd.f32 %v680, %v894
      %v1029 = vadd.f32 %v683, %v897
      %v1030 = vadd.f32 %v688, %v902
      %v1031 = vadd.f32 %v691, %v905
      %v1032 = vadd.f32 %v696, %v910
      %v1033 = vadd.f32 %v699, %v913
      %v1034 = vadd.f32 %v704, %v918
      %v1035 = vadd.f32 %v707, %v921
      %v1036 = vadd.f32 %v712, %v926
      %v1037 = vadd.f32 %v715, %v929
      %v1038 = vadd.f32 %v720, %v934
      %v1039 = vadd.f32 %v723, %v937
      %v1040 = vadd.f32 %v728, %v942
      %v1041 = vadd.f32 %v731, %v945
      %v1042 = vadd.f32 %v736, %v950
      %v1043 = vadd.f32 %v739, %v953
      %v1044 = vadd.f32 %v744, %v958
      %v1045 = vadd.f32 %v747, %v961
      %v1046 = vadd.f32 %v752, %v966
      %v1047 = vadd.f32 %v755, %v969
      %v1048 = vadd.f32 %v760, %v974
      %v1049 = vadd.f32 %v763, %v977
      %v1050 = vadd.f32 %v768, %v982
      %v1051 = vadd.f32 %v771, %v985
      %v1052 = vadd.f32 %v776, %v990
      %v1053 = vadd.f32 %v779, %v993
      %v1054 = vadd.f32 %v784, %v998
      %v1055 = vadd.f32 %v787, %v1001
      %v1056 = vadd.f32 %v792, %v1006
      %v1057 = vadd.f32 %v795, %v1009
      %v1058 = vadd.f32 %v800, %v1014
      %v1059 = vadd.f32 %v803, %v1017
      %v1060 = vld [vmem:[%s165] sm:$0xf]
      %v1061 = vld [vmem:[%s165 + $0x4] sm:$0xf]
      %v1062 = vld [vmem:[%s165 + $0x8] sm:$0xf]
      %v1063 = vld [vmem:[%s165 + $0xc] sm:$0xf]
      %v1064 = vld [vmem:[%s165 + $0x10] sm:$0x1]
      %v1065 = vld [vmem:[%s165 + $0x14] sm:$0xf]
      %v1066 = vld [vmem:[%s165 + $0x18] sm:$0xf]
      %v1067 = vld [vmem:[%s165 + $0x1c] sm:$0xf]
      %v1068 = vld [vmem:[%s165 + $0x20] sm:$0xf]
      %v1069 = vld [vmem:[%s165 + $0x24] sm:$0x1]
      %v1070 = vld [vmem:[%s165 + $0x28] sm:$0xf]
      %v1071 = vld [vmem:[%s165 + $0x2c] sm:$0xf]
      %v1072 = vld [vmem:[%s165 + $0x30] sm:$0xf]
      %v1073 = vld [vmem:[%s165 + $0x34] sm:$0xf]
      %v1074 = vld [vmem:[%s165 + $0x38] sm:$0x1]
      %v1075 = vld [vmem:[%s165 + $0x3c] sm:$0xf]
      %v1076 = vld [vmem:[%s165 + $0x40] sm:$0xf]
      %v1077 = vld [vmem:[%s165 + $0x44] sm:$0xf]
      %v1078 = vld [vmem:[%s165 + $0x48] sm:$0xf]
      %v1079 = vld [vmem:[%s165 + $0x4c] sm:$0x1]
      %v1080 = vld [vmem:[%s165 + $0x50] sm:$0xf]
      %v1081 = vld [vmem:[%s165 + $0x54] sm:$0xf]
      %v1082 = vld [vmem:[%s165 + $0x58] sm:$0xf]
      %v1083 = vld [vmem:[%s165 + $0x5c] sm:$0xf]
      %v1084 = vld [vmem:[%s165 + $0x60] sm:$0x1]
      %v1085 = vld [vmem:[%s165 + $0x64] sm:$0xf]
      %v1086 = vld [vmem:[%s165 + $0x68] sm:$0xf]
      %v1087 = vld [vmem:[%s165 + $0x6c] sm:$0xf]
      %v1088 = vld [vmem:[%s165 + $0x70] sm:$0xf]
      %v1089 = vld [vmem:[%s165 + $0x74] sm:$0x1]
      %v1090 = vld [vmem:[%s165 + $0x78] sm:$0xf]
      %v1091 = vld [vmem:[%s165 + $0x7c] sm:$0xf]
      %v1092 = vld [vmem:[%s165 + $0x80] sm:$0xf]
      %v1093 = vld [vmem:[%s165 + $0x84] sm:$0xf]
      %v1094 = vld [vmem:[%s165 + $0x88] sm:$0x1]
      %v1095 = vld [vmem:[%s165 + $0x8c] sm:$0xf]
      %v1096 = vld [vmem:[%s165 + $0x90] sm:$0xf]
      %v1097 = vld [vmem:[%s165 + $0x94] sm:$0xf]
      %v1098 = vld [vmem:[%s165 + $0x98] sm:$0xf]
      %v1099 = vld [vmem:[%s165 + $0x9c] sm:$0x1]
      %v1100 = vld [vmem:[%s165 + $0xa0] sm:$0xf]
      %v1101 = vld [vmem:[%s165 + $0xa4] sm:$0xf]
      %v1102 = vld [vmem:[%s165 + $0xa8] sm:$0xf]
      %v1103 = vld [vmem:[%s165 + $0xac] sm:$0xf]
      %v1104 = vld [vmem:[%s165 + $0xb0] sm:$0x1]
      %v1105 = vld [vmem:[%s165 + $0xb4] sm:$0xf]
      %v1106 = vld [vmem:[%s165 + $0xb8] sm:$0xf]
      %v1107 = vld [vmem:[%s165 + $0xbc] sm:$0xf]
      %v1108 = vld [vmem:[%s165 + $0xc0] sm:$0xf]
      %v1109 = vld [vmem:[%s165 + $0xc4] sm:$0x1]
      %v1110 = vld [vmem:[%s165 + $0xc8] sm:$0xf]
      %v1111 = vld [vmem:[%s165 + $0xcc] sm:$0xf]
      %v1112 = vld [vmem:[%s165 + $0xd0] sm:$0xf]
      %v1113 = vld [vmem:[%s165 + $0xd4] sm:$0xf]
      %v1114 = vld [vmem:[%s165 + $0xd8] sm:$0x1]
      %v1115 = vld [vmem:[%s165 + $0xdc] sm:$0xf]
      %v1116 = vld [vmem:[%s165 + $0xe0] sm:$0xf]
      %v1117 = vld [vmem:[%s165 + $0xe4] sm:$0xf]
      %v1118 = vld [vmem:[%s165 + $0xe8] sm:$0xf]
      %v1119 = vld [vmem:[%s165 + $0xec] sm:$0x1]
      %vm1120 = vsmask.f32 3328
      %vm1121 = vsmask.f32 7440
      %vm1122 = vmor %vm1120, %vm1121
      %v1124 = vshrl.u32 %v1060, 16
      %v1126 = vrot.slane %v1124, 4
      %v1127 = vshll.u32 %v1060, 16
      %v1129 = vrot.slane %v1127, 5
      %v1130 = vor.u32 %v1126, %v1129
      %v1131 = vrot.slane %v1130, 4
      %v1133 = vshll.u32 %v1061, 16
      %v1135 = vrot.slane %v1133, 5
      %v1136 = vsel %vm1122, %v1131, %v1135
      %v1137 = vshrl.u32 %v1061, 16
      %v1139 = vrot.slane %v1137, 4
      %v1140 = vor.u32 %v1139, %v1135
      %v1141 = vrot.slane %v1140, 4
      %v1143 = vshll.u32 %v1062, 16
      %v1145 = vrot.slane %v1143, 5
      %v1146 = vsel %vm1122, %v1141, %v1145
      %v1147 = vshrl.u32 %v1062, 16
      %v1149 = vrot.slane %v1147, 4
      %v1150 = vor.u32 %v1149, %v1145
      %v1151 = vrot.slane %v1150, 4
      %v1153 = vshll.u32 %v1063, 16
      %v1155 = vrot.slane %v1153, 5
      %v1156 = vsel %vm1122, %v1151, %v1155
      %v1157 = vshrl.u32 %v1063, 16
      %v1159 = vrot.slane %v1157, 4
      %v1160 = vor.u32 %v1159, %v1155
      %v1161 = vrot.slane %v1160, 4
      %v1163 = vshll.u32 %v1064, 16
      %v1165 = vrot.slane %v1163, 5
      %v1166 = vsel %vm1122, %v1161, %v1165
      %v1168 = vshrl.u32 %v1065, 16
      %v1170 = vrot.slane %v1168, 4
      %v1171 = vshll.u32 %v1065, 16
      %v1173 = vrot.slane %v1171, 5
      %v1174 = vor.u32 %v1170, %v1173
      %v1175 = vrot.slane %v1174, 4
      %v1177 = vshll.u32 %v1066, 16
      %v1179 = vrot.slane %v1177, 5
      %v1180 = vsel %vm1122, %v1175, %v1179
      %v1181 = vshrl.u32 %v1066, 16
      %v1183 = vrot.slane %v1181, 4
      %v1184 = vor.u32 %v1183, %v1179
      %v1185 = vrot.slane %v1184, 4
      %v1187 = vshll.u32 %v1067, 16
      %v1189 = vrot.slane %v1187, 5
      %v1190 = vsel %vm1122, %v1185, %v1189
      %v1191 = vshrl.u32 %v1067, 16
      %v1193 = vrot.slane %v1191, 4
      %v1194 = vor.u32 %v1193, %v1189
      %v1195 = vrot.slane %v1194, 4
      %v1197 = vshll.u32 %v1068, 16
      %v1199 = vrot.slane %v1197, 5
      %v1200 = vsel %vm1122, %v1195, %v1199
      %v1201 = vshrl.u32 %v1068, 16
      %v1203 = vrot.slane %v1201, 4
      %v1204 = vor.u32 %v1203, %v1199
      %v1205 = vrot.slane %v1204, 4
      %v1207 = vshll.u32 %v1069, 16
      %v1209 = vrot.slane %v1207, 5
      %v1210 = vsel %vm1122, %v1205, %v1209
      %v1212 = vshrl.u32 %v1070, 16
      %v1214 = vrot.slane %v1212, 4
      %v1215 = vshll.u32 %v1070, 16
      %v1217 = vrot.slane %v1215, 5
      %v1218 = vor.u32 %v1214, %v1217
      %v1219 = vrot.slane %v1218, 4
      %v1221 = vshll.u32 %v1071, 16
      %v1223 = vrot.slane %v1221, 5
      %v1224 = vsel %vm1122, %v1219, %v1223
      %v1225 = vshrl.u32 %v1071, 16
      %v1227 = vrot.slane %v1225, 4
      %v1228 = vor.u32 %v1227, %v1223
      %v1229 = vrot.slane %v1228, 4
      %v1231 = vshll.u32 %v1072, 16
      %v1233 = vrot.slane %v1231, 5
      %v1234 = vsel %vm1122, %v1229, %v1233
      %v1235 = vshrl.u32 %v1072, 16
      %v1237 = vrot.slane %v1235, 4
      %v1238 = vor.u32 %v1237, %v1233
      %v1239 = vrot.slane %v1238, 4
      %v1241 = vshll.u32 %v1073, 16
      %v1243 = vrot.slane %v1241, 5
      %v1244 = vsel %vm1122, %v1239, %v1243
      %v1245 = vshrl.u32 %v1073, 16
      %v1247 = vrot.slane %v1245, 4
      %v1248 = vor.u32 %v1247, %v1243
      %v1249 = vrot.slane %v1248, 4
      %v1251 = vshll.u32 %v1074, 16
      %v1253 = vrot.slane %v1251, 5
      %v1254 = vsel %vm1122, %v1249, %v1253
      %v1256 = vshrl.u32 %v1075, 16
      %v1258 = vrot.slane %v1256, 4
      %v1259 = vshll.u32 %v1075, 16
      %v1261 = vrot.slane %v1259, 5
      %v1262 = vor.u32 %v1258, %v1261
      %v1263 = vrot.slane %v1262, 4
      %v1265 = vshll.u32 %v1076, 16
      %v1267 = vrot.slane %v1265, 5
      %v1268 = vsel %vm1122, %v1263, %v1267
      %v1269 = vshrl.u32 %v1076, 16
      %v1271 = vrot.slane %v1269, 4
      %v1272 = vor.u32 %v1271, %v1267
      %v1273 = vrot.slane %v1272, 4
      %v1275 = vshll.u32 %v1077, 16
      %v1277 = vrot.slane %v1275, 5
      %v1278 = vsel %vm1122, %v1273, %v1277
      %v1279 = vshrl.u32 %v1077, 16
      %v1281 = vrot.slane %v1279, 4
      %v1282 = vor.u32 %v1281, %v1277
      %v1283 = vrot.slane %v1282, 4
      %v1285 = vshll.u32 %v1078, 16
      %v1287 = vrot.slane %v1285, 5
      %v1288 = vsel %vm1122, %v1283, %v1287
      %v1289 = vshrl.u32 %v1078, 16
      %v1291 = vrot.slane %v1289, 4
      %v1292 = vor.u32 %v1291, %v1287
      %v1293 = vrot.slane %v1292, 4
      %v1295 = vshll.u32 %v1079, 16
      %v1297 = vrot.slane %v1295, 5
      %v1298 = vsel %vm1122, %v1293, %v1297
      %v1300 = vshrl.u32 %v1080, 16
      %v1302 = vrot.slane %v1300, 4
      %v1303 = vshll.u32 %v1080, 16
      %v1305 = vrot.slane %v1303, 5
      %v1306 = vor.u32 %v1302, %v1305
      %v1307 = vrot.slane %v1306, 4
      %v1309 = vshll.u32 %v1081, 16
      %v1311 = vrot.slane %v1309, 5
      %v1312 = vsel %vm1122, %v1307, %v1311
      %v1313 = vshrl.u32 %v1081, 16
      %v1315 = vrot.slane %v1313, 4
      %v1316 = vor.u32 %v1315, %v1311
      %v1317 = vrot.slane %v1316, 4
      %v1319 = vshll.u32 %v1082, 16
      %v1321 = vrot.slane %v1319, 5
      %v1322 = vsel %vm1122, %v1317, %v1321
      %v1323 = vshrl.u32 %v1082, 16
      %v1325 = vrot.slane %v1323, 4
      %v1326 = vor.u32 %v1325, %v1321
      %v1327 = vrot.slane %v1326, 4
      %v1329 = vshll.u32 %v1083, 16
      %v1331 = vrot.slane %v1329, 5
      %v1332 = vsel %vm1122, %v1327, %v1331
      %v1333 = vshrl.u32 %v1083, 16
      %v1335 = vrot.slane %v1333, 4
      %v1336 = vor.u32 %v1335, %v1331
      %v1337 = vrot.slane %v1336, 4
      %v1339 = vshll.u32 %v1084, 16
      %v1341 = vrot.slane %v1339, 5
      %v1342 = vsel %vm1122, %v1337, %v1341
      %v1344 = vshrl.u32 %v1085, 16
      %v1346 = vrot.slane %v1344, 4
      %v1347 = vshll.u32 %v1085, 16
      %v1349 = vrot.slane %v1347, 5
      %v1350 = vor.u32 %v1346, %v1349
      %v1351 = vrot.slane %v1350, 4
      %v1353 = vshll.u32 %v1086, 16
      %v1355 = vrot.slane %v1353, 5
      %v1356 = vsel %vm1122, %v1351, %v1355
      %v1357 = vshrl.u32 %v1086, 16
      %v1359 = vrot.slane %v1357, 4
      %v1360 = vor.u32 %v1359, %v1355
      %v1361 = vrot.slane %v1360, 4
      %v1363 = vshll.u32 %v1087, 16
      %v1365 = vrot.slane %v1363, 5
      %v1366 = vsel %vm1122, %v1361, %v1365
      %v1367 = vshrl.u32 %v1087, 16
      %v1369 = vrot.slane %v1367, 4
      %v1370 = vor.u32 %v1369, %v1365
      %v1371 = vrot.slane %v1370, 4
      %v1373 = vshll.u32 %v1088, 16
      %v1375 = vrot.slane %v1373, 5
      %v1376 = vsel %vm1122, %v1371, %v1375
      %v1377 = vshrl.u32 %v1088, 16
      %v1379 = vrot.slane %v1377, 4
      %v1380 = vor.u32 %v1379, %v1375
      %v1381 = vrot.slane %v1380, 4
      %v1383 = vshll.u32 %v1089, 16
      %v1385 = vrot.slane %v1383, 5
      %v1386 = vsel %vm1122, %v1381, %v1385
      %v1388 = vshrl.u32 %v1090, 16
      %v1390 = vrot.slane %v1388, 4
      %v1391 = vshll.u32 %v1090, 16
      %v1393 = vrot.slane %v1391, 5
      %v1394 = vor.u32 %v1390, %v1393
      %v1395 = vrot.slane %v1394, 4
      %v1397 = vshll.u32 %v1091, 16
      %v1399 = vrot.slane %v1397, 5
      %v1400 = vsel %vm1122, %v1395, %v1399
      %v1401 = vshrl.u32 %v1091, 16
      %v1403 = vrot.slane %v1401, 4
      %v1404 = vor.u32 %v1403, %v1399
      %v1405 = vrot.slane %v1404, 4
      %v1407 = vshll.u32 %v1092, 16
      %v1409 = vrot.slane %v1407, 5
      %v1410 = vsel %vm1122, %v1405, %v1409
      %v1411 = vshrl.u32 %v1092, 16
      %v1413 = vrot.slane %v1411, 4
      %v1414 = vor.u32 %v1413, %v1409
      %v1415 = vrot.slane %v1414, 4
      %v1417 = vshll.u32 %v1093, 16
      %v1419 = vrot.slane %v1417, 5
      %v1420 = vsel %vm1122, %v1415, %v1419
      %v1421 = vshrl.u32 %v1093, 16
      %v1423 = vrot.slane %v1421, 4
      %v1424 = vor.u32 %v1423, %v1419
      %v1425 = vrot.slane %v1424, 4
      %v1427 = vshll.u32 %v1094, 16
      %v1429 = vrot.slane %v1427, 5
      %v1430 = vsel %vm1122, %v1425, %v1429
      %v1432 = vshrl.u32 %v1095, 16
      %v1434 = vrot.slane %v1432, 4
      %v1435 = vshll.u32 %v1095, 16
      %v1437 = vrot.slane %v1435, 5
      %v1438 = vor.u32 %v1434, %v1437
      %v1439 = vrot.slane %v1438, 4
      %v1441 = vshll.u32 %v1096, 16
      %v1443 = vrot.slane %v1441, 5
      %v1444 = vsel %vm1122, %v1439, %v1443
      %v1445 = vshrl.u32 %v1096, 16
      %v1447 = vrot.slane %v1445, 4
      %v1448 = vor.u32 %v1447, %v1443
      %v1449 = vrot.slane %v1448, 4
      %v1451 = vshll.u32 %v1097, 16
      %v1453 = vrot.slane %v1451, 5
      %v1454 = vsel %vm1122, %v1449, %v1453
      %v1455 = vshrl.u32 %v1097, 16
      %v1457 = vrot.slane %v1455, 4
      %v1458 = vor.u32 %v1457, %v1453
      %v1459 = vrot.slane %v1458, 4
      %v1461 = vshll.u32 %v1098, 16
      %v1463 = vrot.slane %v1461, 5
      %v1464 = vsel %vm1122, %v1459, %v1463
      %v1465 = vshrl.u32 %v1098, 16
      %v1467 = vrot.slane %v1465, 4
      %v1468 = vor.u32 %v1467, %v1463
      %v1469 = vrot.slane %v1468, 4
      %v1471 = vshll.u32 %v1099, 16
      %v1473 = vrot.slane %v1471, 5
      %v1474 = vsel %vm1122, %v1469, %v1473
      %v1476 = vshrl.u32 %v1100, 16
      %v1478 = vrot.slane %v1476, 4
      %v1479 = vshll.u32 %v1100, 16
      %v1481 = vrot.slane %v1479, 5
      %v1482 = vor.u32 %v1478, %v1481
      %v1483 = vrot.slane %v1482, 4
      %v1485 = vshll.u32 %v1101, 16
      %v1487 = vrot.slane %v1485, 5
      %v1488 = vsel %vm1122, %v1483, %v1487
      %v1489 = vshrl.u32 %v1101, 16
      %v1491 = vrot.slane %v1489, 4
      %v1492 = vor.u32 %v1491, %v1487
      %v1493 = vrot.slane %v1492, 4
      %v1495 = vshll.u32 %v1102, 16
      %v1497 = vrot.slane %v1495, 5
      %v1498 = vsel %vm1122, %v1493, %v1497
      %v1499 = vshrl.u32 %v1102, 16
      %v1501 = vrot.slane %v1499, 4
      %v1502 = vor.u32 %v1501, %v1497
      %v1503 = vrot.slane %v1502, 4
      %v1505 = vshll.u32 %v1103, 16
      %v1507 = vrot.slane %v1505, 5
      %v1508 = vsel %vm1122, %v1503, %v1507
      %v1509 = vshrl.u32 %v1103, 16
      %v1511 = vrot.slane %v1509, 4
      %v1512 = vor.u32 %v1511, %v1507
      %v1513 = vrot.slane %v1512, 4
      %v1515 = vshll.u32 %v1104, 16
      %v1517 = vrot.slane %v1515, 5
      %v1518 = vsel %vm1122, %v1513, %v1517
      %v1520 = vshrl.u32 %v1105, 16
      %v1522 = vrot.slane %v1520, 4
      %v1523 = vshll.u32 %v1105, 16
      %v1525 = vrot.slane %v1523, 5
      %v1526 = vor.u32 %v1522, %v1525
      %v1527 = vrot.slane %v1526, 4
      %v1529 = vshll.u32 %v1106, 16
      %v1531 = vrot.slane %v1529, 5
      %v1532 = vsel %vm1122, %v1527, %v1531
      %v1533 = vshrl.u32 %v1106, 16
      %v1535 = vrot.slane %v1533, 4
      %v1536 = vor.u32 %v1535, %v1531
      %v1537 = vrot.slane %v1536, 4
      %v1539 = vshll.u32 %v1107, 16
      %v1541 = vrot.slane %v1539, 5
      %v1542 = vsel %vm1122, %v1537, %v1541
      %v1543 = vshrl.u32 %v1107, 16
      %v1545 = vrot.slane %v1543, 4
      %v1546 = vor.u32 %v1545, %v1541
      %v1547 = vrot.slane %v1546, 4
      %v1549 = vshll.u32 %v1108, 16
      %v1551 = vrot.slane %v1549, 5
      %v1552 = vsel %vm1122, %v1547, %v1551
      %v1553 = vshrl.u32 %v1108, 16
      %v1555 = vrot.slane %v1553, 4
      %v1556 = vor.u32 %v1555, %v1551
      %v1557 = vrot.slane %v1556, 4
      %v1559 = vshll.u32 %v1109, 16
      %v1561 = vrot.slane %v1559, 5
      %v1562 = vsel %vm1122, %v1557, %v1561
      %s1563 = scalar_lea.vmem %s1, 2
      %v1564 = vld [vmem:[%s1563] sm:$0x3]
      %v1565 = vunpack.c.l.b16 %v1136
      %v1566 = vunpack.c.l.b16 %v1146
      %v1567 = vunpack.c.l.b16 %v1156
      %v1568 = vunpack.c.l.b16 %v1166
      %v1569 = vunpack.c.l.b16 %v1180
      %v1570 = vunpack.c.l.b16 %v1190
      %v1571 = vunpack.c.l.b16 %v1200
      %v1572 = vunpack.c.l.b16 %v1210
      %v1573 = vunpack.c.l.b16 %v1224
      %v1574 = vunpack.c.l.b16 %v1234
      %v1575 = vunpack.c.l.b16 %v1244
      %v1576 = vunpack.c.l.b16 %v1254
      %v1577 = vunpack.c.l.b16 %v1268
      %v1578 = vunpack.c.l.b16 %v1278
      %v1579 = vunpack.c.l.b16 %v1288
      %v1580 = vunpack.c.l.b16 %v1298
      %v1581 = vunpack.c.l.b16 %v1312
      %v1582 = vunpack.c.l.b16 %v1322
      %v1583 = vunpack.c.l.b16 %v1332
      %v1584 = vunpack.c.l.b16 %v1342
      %v1585 = vunpack.c.l.b16 %v1356
      %v1586 = vunpack.c.l.b16 %v1366
      %v1587 = vunpack.c.l.b16 %v1376
      %v1588 = vunpack.c.l.b16 %v1386
      %v1589 = vunpack.c.l.b16 %v1400
      %v1590 = vunpack.c.l.b16 %v1410
      %v1591 = vunpack.c.l.b16 %v1420
      %v1592 = vunpack.c.l.b16 %v1430
      %v1593 = vunpack.c.l.b16 %v1444
      %v1594 = vunpack.c.l.b16 %v1454
      %v1595 = vunpack.c.l.b16 %v1464
      %v1596 = vunpack.c.l.b16 %v1474
      %v1597 = vunpack.c.l.b16 %v1488
      %v1598 = vunpack.c.l.b16 %v1498
      %v1599 = vunpack.c.l.b16 %v1508
      %v1600 = vunpack.c.l.b16 %v1518
      %v1601 = vunpack.c.l.b16 %v1532
      %v1602 = vunpack.c.l.b16 %v1542
      %v1603 = vunpack.c.l.b16 %v1552
      %v1604 = vunpack.c.l.b16 %v1562
      %v1605 = vpack.c.b16 %v1566, %v1565
      %v1606 = vpack.c.b16 %v1568, %v1567
      %v1607 = vpack.c.b16 %v1570, %v1569
      %v1608 = vpack.c.b16 %v1572, %v1571
      %v1609 = vpack.c.b16 %v1574, %v1573
      %v1610 = vpack.c.b16 %v1576, %v1575
      %v1611 = vpack.c.b16 %v1578, %v1577
      %v1612 = vpack.c.b16 %v1580, %v1579
      %v1613 = vpack.c.b16 %v1582, %v1581
      %v1614 = vpack.c.b16 %v1584, %v1583
      %v1615 = vpack.c.b16 %v1586, %v1585
      %v1616 = vpack.c.b16 %v1588, %v1587
      %v1617 = vpack.c.b16 %v1590, %v1589
      %v1618 = vpack.c.b16 %v1592, %v1591
      %v1619 = vpack.c.b16 %v1594, %v1593
      %v1620 = vpack.c.b16 %v1596, %v1595
      %v1621 = vpack.c.b16 %v1598, %v1597
      %v1622 = vpack.c.b16 %v1600, %v1599
      %v1623 = vpack.c.b16 %v1602, %v1601
      %v1624 = vpack.c.b16 %v1604, %v1603
      %v1626 = vsel %vm336, %v1605, 0
      %v1629 = vsel %vm336, %v1606, 0
      %v1632 = vsel %vm336, %v1607, 0
      %v1635 = vsel %vm336, %v1608, 0
      %v1638 = vsel %vm336, %v1609, 0
      %v1641 = vsel %vm336, %v1610, 0
      %v1644 = vsel %vm336, %v1611, 0
      %v1647 = vsel %vm336, %v1612, 0
      %v1650 = vsel %vm336, %v1613, 0
      %v1653 = vsel %vm336, %v1614, 0
      %v1656 = vsel %vm336, %v1615, 0
      %v1659 = vsel %vm336, %v1616, 0
      %v1662 = vsel %vm336, %v1617, 0
      %v1665 = vsel %vm336, %v1618, 0
      %v1668 = vsel %vm336, %v1619, 0
      %v1671 = vsel %vm336, %v1620, 0
      %v1674 = vsel %vm336, %v1621, 0
      %v1677 = vsel %vm336, %v1622, 0
      %v1680 = vsel %vm336, %v1623, 0
      %v1683 = vsel %vm336, %v1624, 0
      %v1686 = vsel %vm397, %v1564, 0
      %1688 = vmatprep.subr.bf16.mxu0 0
      %1689 = vmatpush1.bf16.msra.mxu0 0
      %1690 = vmatprep.subr.bf16.mxu0 0
      %1691 = vmatpush1.bf16.msra.mxu0 0
      %1692 = vmatprep.subr.bf16.mxu0 0
      %1693 = vmatpush1.bf16.msra.mxu0 0
      %1694 = vmatprep.subr.bf16.mxu0 0
      %1695 = vmatpush1.bf16.msra.mxu0 0
      %1696 = vmatprep.subr.bf16.mxu0 0
      %1697 = vmatpush1.bf16.msra.mxu0 0
      %1698 = vmatprep.subr.bf16.mxu0 0
      %1699 = vmatpush1.bf16.msra.mxu0 0
      %1700 = vmatprep.subr.bf16.mxu0 0
      %1701 = vmatpush1.bf16.msra.mxu0 0
      %1702 = vmatprep.subr.bf16.mxu0 0
      %1703 = vmatpush1.bf16.msra.mxu0 %v1686
      %1704 = vmatprep.subr.bf16.mxu0 0
      %1705 = vmatpush2.bf16.msra.mxu0 0
      %1706 = vmatprep.subr.bf16.mxu0 0
      %1707 = vmatpush2.bf16.msra.mxu0 0
      %1708 = vmatprep.subr.bf16.mxu0 0
      %1709 = vmatpush2.bf16.msra.mxu0 0
      %1710 = vmatprep.subr.bf16.mxu0 0
      %1711 = vmatpush2.bf16.msra.mxu0 0
      %1712 = vmatprep.subr.bf16.mxu0 0
      %1713 = vmatpush2.bf16.msra.mxu0 0
      %1714 = vmatprep.subr.bf16.mxu0 0
      %1715 = vmatpush2.bf16.msra.mxu0 0
      %1716 = vmatprep.subr.bf16.mxu0 0
      %1717 = vmatpush2.bf16.msra.mxu0 0
      %1718 = vmatprep.subr.bf16.mxu0 0
      %1719 = vmatpush2.bf16.msra.mxu0 0
      %1720 = vmatprep.mubr.bf16.mxu0 0
      %1721 = vmatmul.mubr.bf16.gmra.mxu0 %v1626
      %v1722 = vpop.f32.mrf.mxu0
      %v1723 = vadd.f32 0.0, %v1722
      %v1724 = vpop.f32.mrf.mxu0
      %v1725 = vpop.f32.mrf.mxu0
      %v1726 = vadd.f32 0.0, %v1725
      %v1727 = vpop.f32.mrf.mxu0
      %1728 = vmatprep.mubr.bf16.mxu0 0
      %1729 = vmatmul.mubr.bf16.gmra.mxu0 %v1629
      %v1730 = vpop.f32.mrf.mxu0
      %v1731 = vadd.f32 0.0, %v1730
      %v1732 = vpop.f32.mrf.mxu0
      %v1733 = vpop.f32.mrf.mxu0
      %v1734 = vadd.f32 0.0, %v1733
      %v1735 = vpop.f32.mrf.mxu0
      %1736 = vmatprep.mubr.bf16.mxu0 0
      %1737 = vmatmul.mubr.bf16.gmra.mxu0 %v1632
      %v1738 = vpop.f32.mrf.mxu0
      %v1739 = vadd.f32 0.0, %v1738
      %v1740 = vpop.f32.mrf.mxu0
      %v1741 = vpop.f32.mrf.mxu0
      %v1742 = vadd.f32 0.0, %v1741
      %v1743 = vpop.f32.mrf.mxu0
      %1744 = vmatprep.mubr.bf16.mxu0 0
      %1745 = vmatmul.mubr.bf16.gmra.mxu0 %v1635
      %v1746 = vpop.f32.mrf.mxu0
      %v1747 = vadd.f32 0.0, %v1746
      %v1748 = vpop.f32.mrf.mxu0
      %v1749 = vpop.f32.mrf.mxu0
      %v1750 = vadd.f32 0.0, %v1749
      %v1751 = vpop.f32.mrf.mxu0
      %1752 = vmatprep.mubr.bf16.mxu0 0
      %1753 = vmatmul.mubr.bf16.gmra.mxu0 %v1638
      %v1754 = vpop.f32.mrf.mxu0
      %v1755 = vadd.f32 0.0, %v1754
      %v1756 = vpop.f32.mrf.mxu0
      %v1757 = vpop.f32.mrf.mxu0
      %v1758 = vadd.f32 0.0, %v1757
      %v1759 = vpop.f32.mrf.mxu0
      %1760 = vmatprep.mubr.bf16.mxu0 0
      %1761 = vmatmul.mubr.bf16.gmra.mxu0 %v1641
      %v1762 = vpop.f32.mrf.mxu0
      %v1763 = vadd.f32 0.0, %v1762
      %v1764 = vpop.f32.mrf.mxu0
      %v1765 = vpop.f32.mrf.mxu0
      %v1766 = vadd.f32 0.0, %v1765
      %v1767 = vpop.f32.mrf.mxu0
      %1768 = vmatprep.mubr.bf16.mxu0 0
      %1769 = vmatmul.mubr.bf16.gmra.mxu0 %v1644
      %v1770 = vpop.f32.mrf.mxu0
      %v1771 = vadd.f32 0.0, %v1770
      %v1772 = vpop.f32.mrf.mxu0
      %v1773 = vpop.f32.mrf.mxu0
      %v1774 = vadd.f32 0.0, %v1773
      %v1775 = vpop.f32.mrf.mxu0
      %1776 = vmatprep.mubr.bf16.mxu0 0
      %1777 = vmatmul.mubr.bf16.gmra.mxu0 %v1647
      %v1778 = vpop.f32.mrf.mxu0
      %v1779 = vadd.f32 0.0, %v1778
      %v1780 = vpop.f32.mrf.mxu0
      %v1781 = vpop.f32.mrf.mxu0
      %v1782 = vadd.f32 0.0, %v1781
      %v1783 = vpop.f32.mrf.mxu0
      %1784 = vmatprep.mubr.bf16.mxu0 0
      %1785 = vmatmul.mubr.bf16.gmra.mxu0 %v1650
      %v1786 = vpop.f32.mrf.mxu0
      %v1787 = vadd.f32 0.0, %v1786
      %v1788 = vpop.f32.mrf.mxu0
      %v1789 = vpop.f32.mrf.mxu0
      %v1790 = vadd.f32 0.0, %v1789
      %v1791 = vpop.f32.mrf.mxu0
      %1792 = vmatprep.mubr.bf16.mxu0 0
      %1793 = vmatmul.mubr.bf16.gmra.mxu0 %v1653
      %v1794 = vpop.f32.mrf.mxu0
      %v1795 = vadd.f32 0.0, %v1794
      %v1796 = vpop.f32.mrf.mxu0
      %v1797 = vpop.f32.mrf.mxu0
      %v1798 = vadd.f32 0.0, %v1797
      %v1799 = vpop.f32.mrf.mxu0
      %1800 = vmatprep.mubr.bf16.mxu0 0
      %1801 = vmatmul.mubr.bf16.gmra.mxu0 %v1656
      %v1802 = vpop.f32.mrf.mxu0
      %v1803 = vadd.f32 0.0, %v1802
      %v1804 = vpop.f32.mrf.mxu0
      %v1805 = vpop.f32.mrf.mxu0
      %v1806 = vadd.f32 0.0, %v1805
      %v1807 = vpop.f32.mrf.mxu0
      %1808 = vmatprep.mubr.bf16.mxu0 0
      %1809 = vmatmul.mubr.bf16.gmra.mxu0 %v1659
      %v1810 = vpop.f32.mrf.mxu0
      %v1811 = vadd.f32 0.0, %v1810
      %v1812 = vpop.f32.mrf.mxu0
      %v1813 = vpop.f32.mrf.mxu0
      %v1814 = vadd.f32 0.0, %v1813
      %v1815 = vpop.f32.mrf.mxu0
      %1816 = vmatprep.mubr.bf16.mxu0 0
      %1817 = vmatmul.mubr.bf16.gmra.mxu0 %v1662
      %v1818 = vpop.f32.mrf.mxu0
      %v1819 = vadd.f32 0.0, %v1818
      %v1820 = vpop.f32.mrf.mxu0
      %v1821 = vpop.f32.mrf.mxu0
      %v1822 = vadd.f32 0.0, %v1821
      %v1823 = vpop.f32.mrf.mxu0
      %1824 = vmatprep.mubr.bf16.mxu0 0
      %1825 = vmatmul.mubr.bf16.gmra.mxu0 %v1665
      %v1826 = vpop.f32.mrf.mxu0
      %v1827 = vadd.f32 0.0, %v1826
      %v1828 = vpop.f32.mrf.mxu0
      %v1829 = vpop.f32.mrf.mxu0
      %v1830 = vadd.f32 0.0, %v1829
      %v1831 = vpop.f32.mrf.mxu0
      %1832 = vmatprep.mubr.bf16.mxu0 0
      %1833 = vmatmul.mubr.bf16.gmra.mxu0 %v1668
      %v1834 = vpop.f32.mrf.mxu0
      %v1835 = vadd.f32 0.0, %v1834
      %v1836 = vpop.f32.mrf.mxu0
      %v1837 = vpop.f32.mrf.mxu0
      %v1838 = vadd.f32 0.0, %v1837
      %v1839 = vpop.f32.mrf.mxu0
      %1840 = vmatprep.mubr.bf16.mxu0 0
      %1841 = vmatmul.mubr.bf16.gmra.mxu0 %v1671
      %v1842 = vpop.f32.mrf.mxu0
      %v1843 = vadd.f32 0.0, %v1842
      %v1844 = vpop.f32.mrf.mxu0
      %v1845 = vpop.f32.mrf.mxu0
      %v1846 = vadd.f32 0.0, %v1845
      %v1847 = vpop.f32.mrf.mxu0
      %1848 = vmatprep.mubr.bf16.mxu0 0
      %1849 = vmatmul.mubr.bf16.gmra.mxu0 %v1674
      %v1850 = vpop.f32.mrf.mxu0
      %v1851 = vadd.f32 0.0, %v1850
      %v1852 = vpop.f32.mrf.mxu0
      %v1853 = vpop.f32.mrf.mxu0
      %v1854 = vadd.f32 0.0, %v1853
      %v1855 = vpop.f32.mrf.mxu0
      %1856 = vmatprep.mubr.bf16.mxu0 0
      %1857 = vmatmul.mubr.bf16.gmra.mxu0 %v1677
      %v1858 = vpop.f32.mrf.mxu0
      %v1859 = vadd.f32 0.0, %v1858
      %v1860 = vpop.f32.mrf.mxu0
      %v1861 = vpop.f32.mrf.mxu0
      %v1862 = vadd.f32 0.0, %v1861
      %v1863 = vpop.f32.mrf.mxu0
      %1864 = vmatprep.mubr.bf16.mxu0 0
      %1865 = vmatmul.mubr.bf16.gmra.mxu0 %v1680
      %v1866 = vpop.f32.mrf.mxu0
      %v1867 = vadd.f32 0.0, %v1866
      %v1868 = vpop.f32.mrf.mxu0
      %v1869 = vpop.f32.mrf.mxu0
      %v1870 = vadd.f32 0.0, %v1869
      %v1871 = vpop.f32.mrf.mxu0
      %1872 = vmatprep.mubr.bf16.mxu0 0
      %1873 = vmatmul.mubr.bf16.gmra.mxu0 %v1683
      %v1874 = vpop.f32.mrf.mxu0
      %v1875 = vadd.f32 0.0, %v1874
      %v1876 = vpop.f32.mrf.mxu0
      %v1877 = vpop.f32.mrf.mxu0
      %v1878 = vadd.f32 0.0, %v1877
      %v1879 = vpop.f32.mrf.mxu0
      %1880 = vdwg.mxu0
      %v1881 = vadd.f32 %v1020, %v1723
      %v1882 = vadd.f32 %v1021, %v1726
      %v1883 = vadd.f32 %v1022, %v1731
      %v1884 = vadd.f32 %v1023, %v1734
      %v1885 = vadd.f32 %v1024, %v1739
      %v1886 = vadd.f32 %v1025, %v1742
      %v1887 = vadd.f32 %v1026, %v1747
      %v1888 = vadd.f32 %v1027, %v1750
      %v1889 = vadd.f32 %v1028, %v1755
      %v1890 = vadd.f32 %v1029, %v1758
      %v1891 = vadd.f32 %v1030, %v1763
      %v1892 = vadd.f32 %v1031, %v1766
      %v1893 = vadd.f32 %v1032, %v1771
      %v1894 = vadd.f32 %v1033, %v1774
      %v1895 = vadd.f32 %v1034, %v1779
      %v1896 = vadd.f32 %v1035, %v1782
      %v1897 = vadd.f32 %v1036, %v1787
      %v1898 = vadd.f32 %v1037, %v1790
      %v1899 = vadd.f32 %v1038, %v1795
      %v1900 = vadd.f32 %v1039, %v1798
      %v1901 = vadd.f32 %v1040, %v1803
      %v1902 = vadd.f32 %v1041, %v1806
      %v1903 = vadd.f32 %v1042, %v1811
      %v1904 = vadd.f32 %v1043, %v1814
      %v1905 = vadd.f32 %v1044, %v1819
      %v1906 = vadd.f32 %v1045, %v1822
      %v1907 = vadd.f32 %v1046, %v1827
      %v1908 = vadd.f32 %v1047, %v1830
      %v1909 = vadd.f32 %v1048, %v1835
      %v1910 = vadd.f32 %v1049, %v1838
      %v1911 = vadd.f32 %v1050, %v1843
      %v1912 = vadd.f32 %v1051, %v1846
      %v1913 = vadd.f32 %v1052, %v1851
      %v1914 = vadd.f32 %v1053, %v1854
      %v1915 = vadd.f32 %v1054, %v1859
      %v1916 = vadd.f32 %v1055, %v1862
      %v1917 = vadd.f32 %v1056, %v1867
      %v1918 = vadd.f32 %v1057, %v1870
      %v1919 = vadd.f32 %v1058, %v1875
      %v1920 = vadd.f32 %v1059, %v1878
      %v1922 = vshrl.u32 %v1110, 16
      %v1924 = vrot.slane %v1922, 4
      %v1925 = vshll.u32 %v1110, 16
      %v1927 = vrot.slane %v1925, 5
      %v1928 = vor.u32 %v1924, %v1927
      %v1929 = vrot.slane %v1928, 4
      %v1931 = vshll.u32 %v1111, 16
      %v1933 = vrot.slane %v1931, 5
      %v1934 = vsel %vm1122, %v1929, %v1933
      %v1935 = vshrl.u32 %v1111, 16
      %v1937 = vrot.slane %v1935, 4
      %v1938 = vor.u32 %v1937, %v1933
      %v1939 = vrot.slane %v1938, 4
      %v1941 = vshll.u32 %v1112, 16
      %v1943 = vrot.slane %v1941, 5
      %v1944 = vsel %vm1122, %v1939, %v1943
      %v1945 = vshrl.u32 %v1112, 16
      %v1947 = vrot.slane %v1945, 4
      %v1948 = vor.u32 %v1947, %v1943
      %v1949 = vrot.slane %v1948, 4
      %v1951 = vshll.u32 %v1113, 16
      %v1953 = vrot.slane %v1951, 5
      %v1954 = vsel %vm1122, %v1949, %v1953
      %v1955 = vshrl.u32 %v1113, 16
      %v1957 = vrot.slane %v1955, 4
      %v1958 = vor.u32 %v1957, %v1953
      %v1959 = vrot.slane %v1958, 4
      %v1961 = vshll.u32 %v1114, 16
      %v1963 = vrot.slane %v1961, 5
      %v1964 = vsel %vm1122, %v1959, %v1963
      %s1965 = scalar_lea.vmem %s1, 8
      %v1966 = vld [vmem:[%s1965] sm:$0x3]
      %v1967 = vunpack.c.l.b16 %v1934
      %v1968 = vunpack.c.l.b16 %v1944
      %v1969 = vunpack.c.l.b16 %v1954
      %v1970 = vunpack.c.l.b16 %v1964
      %v1971 = vpack.c.b16 %v1968, %v1967
      %v1972 = vpack.c.b16 %v1970, %v1969
      %v1974 = vsel %vm336, %v1971, 0
      %v1977 = vsel %vm336, %v1972, 0
      %v1980 = vsel %vm397, %v1966, 0
      %1982 = vmatprep.subr.bf16.mxu0 0
      %1983 = vmatpush1.bf16.msra.mxu0 0
      %1984 = vmatprep.subr.bf16.mxu0 0
      %1985 = vmatpush1.bf16.msra.mxu0 0
      %1986 = vmatprep.subr.bf16.mxu0 0
      %1987 = vmatpush1.bf16.msra.mxu0 0
      %1988 = vmatprep.subr.bf16.mxu0 0
      %1989 = vmatpush1.bf16.msra.mxu0 0
      %1990 = vmatprep.subr.bf16.mxu0 0
      %1991 = vmatpush1.bf16.msra.mxu0 0
      %1992 = vmatprep.subr.bf16.mxu0 0
      %1993 = vmatpush1.bf16.msra.mxu0 0
      %1994 = vmatprep.subr.bf16.mxu0 0
      %1995 = vmatpush1.bf16.msra.mxu0 0
      %1996 = vmatprep.subr.bf16.mxu0 0
      %1997 = vmatpush1.bf16.msra.mxu0 %v1980
      %1998 = vmatprep.subr.bf16.mxu0 0
      %1999 = vmatpush2.bf16.msra.mxu0 0
      %2000 = vmatprep.subr.bf16.mxu0 0
      %2001 = vmatpush2.bf16.msra.mxu0 0
      %2002 = vmatprep.subr.bf16.mxu0 0
      %2003 = vmatpush2.bf16.msra.mxu0 0
      %2004 = vmatprep.subr.bf16.mxu0 0
      %2005 = vmatpush2.bf16.msra.mxu0 0
      %2006 = vmatprep.subr.bf16.mxu0 0
      %2007 = vmatpush2.bf16.msra.mxu0 0
      %2008 = vmatprep.subr.bf16.mxu0 0
      %2009 = vmatpush2.bf16.msra.mxu0 0
      %2010 = vmatprep.subr.bf16.mxu0 0
      %2011 = vmatpush2.bf16.msra.mxu0 0
      %2012 = vmatprep.subr.bf16.mxu0 0
      %2013 = vmatpush2.bf16.msra.mxu0 0
      %2014 = vmatprep.mubr.bf16.mxu0 0
      %2015 = vmatmul.mubr.bf16.gmra.mxu0 %v1632
      %v2016 = vpop.f32.mrf.mxu0
      %v2017 = vadd.f32 0.0, %v2016
      %v2018 = vpop.f32.mrf.mxu0
      %v2019 = vpop.f32.mrf.mxu0
      %v2020 = vadd.f32 0.0, %v2019
      %v2021 = vpop.f32.mrf.mxu0
      %2022 = vmatprep.mubr.bf16.mxu0 0
      %2023 = vmatmul.mubr.bf16.gmra.mxu0 %v1635
      %v2024 = vpop.f32.mrf.mxu0
      %v2025 = vadd.f32 0.0, %v2024
      %v2026 = vpop.f32.mrf.mxu0
      %v2027 = vpop.f32.mrf.mxu0
      %v2028 = vadd.f32 0.0, %v2027
      %v2029 = vpop.f32.mrf.mxu0
      %2030 = vmatprep.mubr.bf16.mxu0 0
      %2031 = vmatmul.mubr.bf16.gmra.mxu0 %v1638
      %v2032 = vpop.f32.mrf.mxu0
      %v2033 = vadd.f32 0.0, %v2032
      %v2034 = vpop.f32.mrf.mxu0
      %v2035 = vpop.f32.mrf.mxu0
      %v2036 = vadd.f32 0.0, %v2035
      %v2037 = vpop.f32.mrf.mxu0
      %2038 = vmatprep.mubr.bf16.mxu0 0
      %2039 = vmatmul.mubr.bf16.gmra.mxu0 %v1641
      %v2040 = vpop.f32.mrf.mxu0
      %v2041 = vadd.f32 0.0, %v2040
      %v2042 = vpop.f32.mrf.mxu0
      %v2043 = vpop.f32.mrf.mxu0
      %v2044 = vadd.f32 0.0, %v2043
      %v2045 = vpop.f32.mrf.mxu0
      %2046 = vmatprep.mubr.bf16.mxu0 0
      %2047 = vmatmul.mubr.bf16.gmra.mxu0 %v1644
      %v2048 = vpop.f32.mrf.mxu0
      %v2049 = vadd.f32 0.0, %v2048
      %v2050 = vpop.f32.mrf.mxu0
      %v2051 = vpop.f32.mrf.mxu0
      %v2052 = vadd.f32 0.0, %v2051
      %v2053 = vpop.f32.mrf.mxu0
      %2054 = vmatprep.mubr.bf16.mxu0 0
      %2055 = vmatmul.mubr.bf16.gmra.mxu0 %v1647
      %v2056 = vpop.f32.mrf.mxu0
      %v2057 = vadd.f32 0.0, %v2056
      %v2058 = vpop.f32.mrf.mxu0
      %v2059 = vpop.f32.mrf.mxu0
      %v2060 = vadd.f32 0.0, %v2059
      %v2061 = vpop.f32.mrf.mxu0
      %2062 = vmatprep.mubr.bf16.mxu0 0
      %2063 = vmatmul.mubr.bf16.gmra.mxu0 %v1650
      %v2064 = vpop.f32.mrf.mxu0
      %v2065 = vadd.f32 0.0, %v2064
      %v2066 = vpop.f32.mrf.mxu0
      %v2067 = vpop.f32.mrf.mxu0
      %v2068 = vadd.f32 0.0, %v2067
      %v2069 = vpop.f32.mrf.mxu0
      %2070 = vmatprep.mubr.bf16.mxu0 0
      %2071 = vmatmul.mubr.bf16.gmra.mxu0 %v1653
      %v2072 = vpop.f32.mrf.mxu0
      %v2073 = vadd.f32 0.0, %v2072
      %v2074 = vpop.f32.mrf.mxu0
      %v2075 = vpop.f32.mrf.mxu0
      %v2076 = vadd.f32 0.0, %v2075
      %v2077 = vpop.f32.mrf.mxu0
      %2078 = vmatprep.mubr.bf16.mxu0 0
      %2079 = vmatmul.mubr.bf16.gmra.mxu0 %v1656
      %v2080 = vpop.f32.mrf.mxu0
      %v2081 = vadd.f32 0.0, %v2080
      %v2082 = vpop.f32.mrf.mxu0
      %v2083 = vpop.f32.mrf.mxu0
      %v2084 = vadd.f32 0.0, %v2083
      %v2085 = vpop.f32.mrf.mxu0
      %2086 = vmatprep.mubr.bf16.mxu0 0
      %2087 = vmatmul.mubr.bf16.gmra.mxu0 %v1659
      %v2088 = vpop.f32.mrf.mxu0
      %v2089 = vadd.f32 0.0, %v2088
      %v2090 = vpop.f32.mrf.mxu0
      %v2091 = vpop.f32.mrf.mxu0
      %v2092 = vadd.f32 0.0, %v2091
      %v2093 = vpop.f32.mrf.mxu0
      %2094 = vmatprep.mubr.bf16.mxu0 0
      %2095 = vmatmul.mubr.bf16.gmra.mxu0 %v1662
      %v2096 = vpop.f32.mrf.mxu0
      %v2097 = vadd.f32 0.0, %v2096
      %v2098 = vpop.f32.mrf.mxu0
      %v2099 = vpop.f32.mrf.mxu0
      %v2100 = vadd.f32 0.0, %v2099
      %v2101 = vpop.f32.mrf.mxu0
      %2102 = vmatprep.mubr.bf16.mxu0 0
      %2103 = vmatmul.mubr.bf16.gmra.mxu0 %v1665
      %v2104 = vpop.f32.mrf.mxu0
      %v2105 = vadd.f32 0.0, %v2104
      %v2106 = vpop.f32.mrf.mxu0
      %v2107 = vpop.f32.mrf.mxu0
      %v2108 = vadd.f32 0.0, %v2107
      %v2109 = vpop.f32.mrf.mxu0
      %2110 = vmatprep.mubr.bf16.mxu0 0
      %2111 = vmatmul.mubr.bf16.gmra.mxu0 %v1668
      %v2112 = vpop.f32.mrf.mxu0
      %v2113 = vadd.f32 0.0, %v2112
      %v2114 = vpop.f32.mrf.mxu0
      %v2115 = vpop.f32.mrf.mxu0
      %v2116 = vadd.f32 0.0, %v2115
      %v2117 = vpop.f32.mrf.mxu0
      %2118 = vmatprep.mubr.bf16.mxu0 0
      %2119 = vmatmul.mubr.bf16.gmra.mxu0 %v1671
      %v2120 = vpop.f32.mrf.mxu0
      %v2121 = vadd.f32 0.0, %v2120
      %v2122 = vpop.f32.mrf.mxu0
      %v2123 = vpop.f32.mrf.mxu0
      %v2124 = vadd.f32 0.0, %v2123
      %v2125 = vpop.f32.mrf.mxu0
      %2126 = vmatprep.mubr.bf16.mxu0 0
      %2127 = vmatmul.mubr.bf16.gmra.mxu0 %v1674
      %v2128 = vpop.f32.mrf.mxu0
      %v2129 = vadd.f32 0.0, %v2128
      %v2130 = vpop.f32.mrf.mxu0
      %v2131 = vpop.f32.mrf.mxu0
      %v2132 = vadd.f32 0.0, %v2131
      %v2133 = vpop.f32.mrf.mxu0
      %2134 = vmatprep.mubr.bf16.mxu0 0
      %2135 = vmatmul.mubr.bf16.gmra.mxu0 %v1677
      %v2136 = vpop.f32.mrf.mxu0
      %v2137 = vadd.f32 0.0, %v2136
      %v2138 = vpop.f32.mrf.mxu0
      %v2139 = vpop.f32.mrf.mxu0
      %v2140 = vadd.f32 0.0, %v2139
      %v2141 = vpop.f32.mrf.mxu0
      %2142 = vmatprep.mubr.bf16.mxu0 0
      %2143 = vmatmul.mubr.bf16.gmra.mxu0 %v1680
      %v2144 = vpop.f32.mrf.mxu0
      %v2145 = vadd.f32 0.0, %v2144
      %v2146 = vpop.f32.mrf.mxu0
      %v2147 = vpop.f32.mrf.mxu0
      %v2148 = vadd.f32 0.0, %v2147
      %v2149 = vpop.f32.mrf.mxu0
      %2150 = vmatprep.mubr.bf16.mxu0 0
      %2151 = vmatmul.mubr.bf16.gmra.mxu0 %v1683
      %v2152 = vpop.f32.mrf.mxu0
      %v2153 = vadd.f32 0.0, %v2152
      %v2154 = vpop.f32.mrf.mxu0
      %v2155 = vpop.f32.mrf.mxu0
      %v2156 = vadd.f32 0.0, %v2155
      %v2157 = vpop.f32.mrf.mxu0
      %2158 = vmatprep.mubr.bf16.mxu0 0
      %2159 = vmatmul.mubr.bf16.gmra.mxu0 %v1974
      %v2160 = vpop.f32.mrf.mxu0
      %v2161 = vadd.f32 0.0, %v2160
      %v2162 = vpop.f32.mrf.mxu0
      %v2163 = vpop.f32.mrf.mxu0
      %v2164 = vadd.f32 0.0, %v2163
      %v2165 = vpop.f32.mrf.mxu0
      %2166 = vmatprep.mubr.bf16.mxu0 0
      %2167 = vmatmul.mubr.bf16.gmra.mxu0 %v1977
      %v2168 = vpop.f32.mrf.mxu0
      %v2169 = vadd.f32 0.0, %v2168
      %v2170 = vpop.f32.mrf.mxu0
      %v2171 = vpop.f32.mrf.mxu0
      %v2172 = vadd.f32 0.0, %v2171
      %v2173 = vpop.f32.mrf.mxu0
      %2174 = vdwg.mxu0
      %v2175 = vadd.f32 %v1881, %v2017
      %v2176 = vadd.f32 %v1882, %v2020
      %v2177 = vadd.f32 %v1883, %v2025
      %v2178 = vadd.f32 %v1884, %v2028
      %v2179 = vadd.f32 %v1885, %v2033
      %v2180 = vadd.f32 %v1886, %v2036
      %v2181 = vadd.f32 %v1887, %v2041
      %v2182 = vadd.f32 %v1888, %v2044
      %v2183 = vadd.f32 %v1889, %v2049
      %v2184 = vadd.f32 %v1890, %v2052
      %v2185 = vadd.f32 %v1891, %v2057
      %v2186 = vadd.f32 %v1892, %v2060
      %v2187 = vadd.f32 %v1893, %v2065
      %v2188 = vadd.f32 %v1894, %v2068
      %v2189 = vadd.f32 %v1895, %v2073
      %v2190 = vadd.f32 %v1896, %v2076
      %v2191 = vadd.f32 %v1897, %v2081
      %v2192 = vadd.f32 %v1898, %v2084
      %v2193 = vadd.f32 %v1899, %v2089
      %v2194 = vadd.f32 %v1900, %v2092
      %v2195 = vadd.f32 %v1901, %v2097
      %v2196 = vadd.f32 %v1902, %v2100
      %v2197 = vadd.f32 %v1903, %v2105
      %v2198 = vadd.f32 %v1904, %v2108
      %v2199 = vadd.f32 %v1905, %v2113
      %v2200 = vadd.f32 %v1906, %v2116
      %v2201 = vadd.f32 %v1907, %v2121
      %v2202 = vadd.f32 %v1908, %v2124
      %v2203 = vadd.f32 %v1909, %v2129
      %v2204 = vadd.f32 %v1910, %v2132
      %v2205 = vadd.f32 %v1911, %v2137
      %v2206 = vadd.f32 %v1912, %v2140
      %v2207 = vadd.f32 %v1913, %v2145
      %v2208 = vadd.f32 %v1914, %v2148
      %v2209 = vadd.f32 %v1915, %v2153
      %v2210 = vadd.f32 %v1916, %v2156
      %v2211 = vadd.f32 %v1917, %v2161
      %v2212 = vadd.f32 %v1918, %v2164
      %v2213 = vadd.f32 %v1919, %v2169
      %v2214 = vadd.f32 %v1920, %v2172
      %v2216 = vshrl.u32 %v1115, 16
      %v2218 = vrot.slane %v2216, 4
      %v2219 = vshll.u32 %v1115, 16
      %v2221 = vrot.slane %v2219, 5
      %v2222 = vor.u32 %v2218, %v2221
      %v2223 = vrot.slane %v2222, 4
      %v2225 = vshll.u32 %v1116, 16
      %v2227 = vrot.slane %v2225, 5
      %v2228 = vsel %vm1122, %v2223, %v2227
      %v2229 = vshrl.u32 %v1116, 16
      %v2231 = vrot.slane %v2229, 4
      %v2232 = vor.u32 %v2231, %v2227
      %v2233 = vrot.slane %v2232, 4
      %v2235 = vshll.u32 %v1117, 16
      %v2237 = vrot.slane %v2235, 5
      %v2238 = vsel %vm1122, %v2233, %v2237
      %v2239 = vshrl.u32 %v1117, 16
      %v2241 = vrot.slane %v2239, 4
      %v2242 = vor.u32 %v2241, %v2237
      %v2243 = vrot.slane %v2242, 4
      %v2245 = vshll.u32 %v1118, 16
      %v2247 = vrot.slane %v2245, 5
      %v2248 = vsel %vm1122, %v2243, %v2247
      %v2249 = vshrl.u32 %v1118, 16
      %v2251 = vrot.slane %v2249, 4
      %v2252 = vor.u32 %v2251, %v2247
      %v2253 = vrot.slane %v2252, 4
      %v2255 = vshll.u32 %v1119, 16
      %v2257 = vrot.slane %v2255, 5
      %v2258 = vsel %vm1122, %v2253, %v2257
      %s2259 = scalar_lea.vmem %s1, 14
      %v2260 = vld [vmem:[%s2259] sm:$0x3]
      %v2261 = vunpack.c.l.b16 %v2228
      %v2262 = vunpack.c.l.b16 %v2238
      %v2263 = vunpack.c.l.b16 %v2248
      %v2264 = vunpack.c.l.b16 %v2258
      %v2265 = vpack.c.b16 %v2262, %v2261
      %v2266 = vpack.c.b16 %v2264, %v2263
      %v2268 = vsel %vm336, %v2265, 0
      %v2271 = vsel %vm336, %v2266, 0
      %v2274 = vsel %vm397, %v2260, 0
      %2276 = vmatprep.subr.bf16.mxu0 0
      %2277 = vmatpush1.bf16.msra.mxu0 0
      %2278 = vmatprep.subr.bf16.mxu0 0
      %2279 = vmatpush1.bf16.msra.mxu0 0
      %2280 = vmatprep.subr.bf16.mxu0 0
      %2281 = vmatpush1.bf16.msra.mxu0 0
      %2282 = vmatprep.subr.bf16.mxu0 0
      %2283 = vmatpush1.bf16.msra.mxu0 0
      %2284 = vmatprep.subr.bf16.mxu0 0
      %2285 = vmatpush1.bf16.msra.mxu0 0
      %2286 = vmatprep.subr.bf16.mxu0 0
      %2287 = vmatpush1.bf16.msra.mxu0 0
      %2288 = vmatprep.subr.bf16.mxu0 0
      %2289 = vmatpush1.bf16.msra.mxu0 0
      %2290 = vmatprep.subr.bf16.mxu0 0
      %2291 = vmatpush1.bf16.msra.mxu0 %v2274
      %2292 = vmatprep.subr.bf16.mxu0 0
      %2293 = vmatpush2.bf16.msra.mxu0 0
      %2294 = vmatprep.subr.bf16.mxu0 0
      %2295 = vmatpush2.bf16.msra.mxu0 0
      %2296 = vmatprep.subr.bf16.mxu0 0
      %2297 = vmatpush2.bf16.msra.mxu0 0
      %2298 = vmatprep.subr.bf16.mxu0 0
      %2299 = vmatpush2.bf16.msra.mxu0 0
      %2300 = vmatprep.subr.bf16.mxu0 0
      %2301 = vmatpush2.bf16.msra.mxu0 0
      %2302 = vmatprep.subr.bf16.mxu0 0
      %2303 = vmatpush2.bf16.msra.mxu0 0
      %2304 = vmatprep.subr.bf16.mxu0 0
      %2305 = vmatpush2.bf16.msra.mxu0 0
      %2306 = vmatprep.subr.bf16.mxu0 0
      %2307 = vmatpush2.bf16.msra.mxu0 0
      %2308 = vmatprep.mubr.bf16.mxu0 0
      %2309 = vmatmul.mubr.bf16.gmra.mxu0 %v1638
      %v2310 = vpop.f32.mrf.mxu0
      %v2311 = vadd.f32 0.0, %v2310
      %v2312 = vpop.f32.mrf.mxu0
      %v2313 = vpop.f32.mrf.mxu0
      %v2314 = vadd.f32 0.0, %v2313
      %v2315 = vpop.f32.mrf.mxu0
      %2316 = vmatprep.mubr.bf16.mxu0 0
      %2317 = vmatmul.mubr.bf16.gmra.mxu0 %v1641
      %v2318 = vpop.f32.mrf.mxu0
      %v2319 = vadd.f32 0.0, %v2318
      %v2320 = vpop.f32.mrf.mxu0
      %v2321 = vpop.f32.mrf.mxu0
      %v2322 = vadd.f32 0.0, %v2321
      %v2323 = vpop.f32.mrf.mxu0
      %2324 = vmatprep.mubr.bf16.mxu0 0
      %2325 = vmatmul.mubr.bf16.gmra.mxu0 %v1644
      %v2326 = vpop.f32.mrf.mxu0
      %v2327 = vadd.f32 0.0, %v2326
      %v2328 = vpop.f32.mrf.mxu0
      %v2329 = vpop.f32.mrf.mxu0
      %v2330 = vadd.f32 0.0, %v2329
      %v2331 = vpop.f32.mrf.mxu0
      %2332 = vmatprep.mubr.bf16.mxu0 0
      %2333 = vmatmul.mubr.bf16.gmra.mxu0 %v1647
      %v2334 = vpop.f32.mrf.mxu0
      %v2335 = vadd.f32 0.0, %v2334
      %v2336 = vpop.f32.mrf.mxu0
      %v2337 = vpop.f32.mrf.mxu0
      %v2338 = vadd.f32 0.0, %v2337
      %v2339 = vpop.f32.mrf.mxu0
      %2340 = vmatprep.mubr.bf16.mxu0 0
      %2341 = vmatmul.mubr.bf16.gmra.mxu0 %v1650
      %v2342 = vpop.f32.mrf.mxu0
      %v2343 = vadd.f32 0.0, %v2342
      %v2344 = vpop.f32.mrf.mxu0
      %v2345 = vpop.f32.mrf.mxu0
      %v2346 = vadd.f32 0.0, %v2345
      %v2347 = vpop.f32.mrf.mxu0
      %2348 = vmatprep.mubr.bf16.mxu0 0
      %2349 = vmatmul.mubr.bf16.gmra.mxu0 %v1653
      %v2350 = vpop.f32.mrf.mxu0
      %v2351 = vadd.f32 0.0, %v2350
      %v2352 = vpop.f32.mrf.mxu0
      %v2353 = vpop.f32.mrf.mxu0
      %v2354 = vadd.f32 0.0, %v2353
      %v2355 = vpop.f32.mrf.mxu0
      %2356 = vmatprep.mubr.bf16.mxu0 0
      %2357 = vmatmul.mubr.bf16.gmra.mxu0 %v1656
      %v2358 = vpop.f32.mrf.mxu0
      %v2359 = vadd.f32 0.0, %v2358
      %v2360 = vpop.f32.mrf.mxu0
      %v2361 = vpop.f32.mrf.mxu0
      %v2362 = vadd.f32 0.0, %v2361
      %v2363 = vpop.f32.mrf.mxu0
      %2364 = vmatprep.mubr.bf16.mxu0 0
      %2365 = vmatmul.mubr.bf16.gmra.mxu0 %v1659
      %v2366 = vpop.f32.mrf.mxu0
      %v2367 = vadd.f32 0.0, %v2366
      %v2368 = vpop.f32.mrf.mxu0
      %v2369 = vpop.f32.mrf.mxu0
      %v2370 = vadd.f32 0.0, %v2369
      %v2371 = vpop.f32.mrf.mxu0
      %2372 = vmatprep.mubr.bf16.mxu0 0
      %2373 = vmatmul.mubr.bf16.gmra.mxu0 %v1662
      %v2374 = vpop.f32.mrf.mxu0
      %v2375 = vadd.f32 0.0, %v2374
      %v2376 = vpop.f32.mrf.mxu0
      %v2377 = vpop.f32.mrf.mxu0
      %v2378 = vadd.f32 0.0, %v2377
      %v2379 = vpop.f32.mrf.mxu0
      %2380 = vmatprep.mubr.bf16.mxu0 0
      %2381 = vmatmul.mubr.bf16.gmra.mxu0 %v1665
      %v2382 = vpop.f32.mrf.mxu0
      %v2383 = vadd.f32 0.0, %v2382
      %v2384 = vpop.f32.mrf.mxu0
      %v2385 = vpop.f32.mrf.mxu0
      %v2386 = vadd.f32 0.0, %v2385
      %v2387 = vpop.f32.mrf.mxu0
      %2388 = vmatprep.mubr.bf16.mxu0 0
      %2389 = vmatmul.mubr.bf16.gmra.mxu0 %v1668
      %v2390 = vpop.f32.mrf.mxu0
      %v2391 = vadd.f32 0.0, %v2390
      %v2392 = vpop.f32.mrf.mxu0
      %v2393 = vpop.f32.mrf.mxu0
      %v2394 = vadd.f32 0.0, %v2393
      %v2395 = vpop.f32.mrf.mxu0
      %2396 = vmatprep.mubr.bf16.mxu0 0
      %2397 = vmatmul.mubr.bf16.gmra.mxu0 %v1671
      %v2398 = vpop.f32.mrf.mxu0
      %v2399 = vadd.f32 0.0, %v2398
      %v2400 = vpop.f32.mrf.mxu0
      %v2401 = vpop.f32.mrf.mxu0
      %v2402 = vadd.f32 0.0, %v2401
      %v2403 = vpop.f32.mrf.mxu0
      %2404 = vmatprep.mubr.bf16.mxu0 0
      %2405 = vmatmul.mubr.bf16.gmra.mxu0 %v1674
      %v2406 = vpop.f32.mrf.mxu0
      %v2407 = vadd.f32 0.0, %v2406
      %v2408 = vpop.f32.mrf.mxu0
      %v2409 = vpop.f32.mrf.mxu0
      %v2410 = vadd.f32 0.0, %v2409
      %v2411 = vpop.f32.mrf.mxu0
      %2412 = vmatprep.mubr.bf16.mxu0 0
      %2413 = vmatmul.mubr.bf16.gmra.mxu0 %v1677
      %v2414 = vpop.f32.mrf.mxu0
      %v2415 = vadd.f32 0.0, %v2414
      %v2416 = vpop.f32.mrf.mxu0
      %v2417 = vpop.f32.mrf.mxu0
      %v2418 = vadd.f32 0.0, %v2417
      %v2419 = vpop.f32.mrf.mxu0
      %2420 = vmatprep.mubr.bf16.mxu0 0
      %2421 = vmatmul.mubr.bf16.gmra.mxu0 %v1680
      %v2422 = vpop.f32.mrf.mxu0
      %v2423 = vadd.f32 0.0, %v2422
      %v2424 = vpop.f32.mrf.mxu0
      %v2425 = vpop.f32.mrf.mxu0
      %v2426 = vadd.f32 0.0, %v2425
      %v2427 = vpop.f32.mrf.mxu0
      %2428 = vmatprep.mubr.bf16.mxu0 0
      %2429 = vmatmul.mubr.bf16.gmra.mxu0 %v1683
      %v2430 = vpop.f32.mrf.mxu0
      %v2431 = vadd.f32 0.0, %v2430
      %v2432 = vpop.f32.mrf.mxu0
      %v2433 = vpop.f32.mrf.mxu0
      %v2434 = vadd.f32 0.0, %v2433
      %v2435 = vpop.f32.mrf.mxu0
      %2436 = vmatprep.mubr.bf16.mxu0 0
      %2437 = vmatmul.mubr.bf16.gmra.mxu0 %v1974
      %v2438 = vpop.f32.mrf.mxu0
      %v2439 = vadd.f32 0.0, %v2438
      %v2440 = vpop.f32.mrf.mxu0
      %v2441 = vpop.f32.mrf.mxu0
      %v2442 = vadd.f32 0.0, %v2441
      %v2443 = vpop.f32.mrf.mxu0
      %2444 = vmatprep.mubr.bf16.mxu0 0
      %2445 = vmatmul.mubr.bf16.gmra.mxu0 %v1977
      %v2446 = vpop.f32.mrf.mxu0
      %v2447 = vadd.f32 0.0, %v2446
      %v2448 = vpop.f32.mrf.mxu0
      %v2449 = vpop.f32.mrf.mxu0
      %v2450 = vadd.f32 0.0, %v2449
      %v2451 = vpop.f32.mrf.mxu0
      %2452 = vmatprep.mubr.bf16.mxu0 0
      %2453 = vmatmul.mubr.bf16.gmra.mxu0 %v2268
      %v2454 = vpop.f32.mrf.mxu0
      %v2455 = vadd.f32 0.0, %v2454
      %v2456 = vpop.f32.mrf.mxu0
      %v2457 = vpop.f32.mrf.mxu0
      %v2458 = vadd.f32 0.0, %v2457
      %v2459 = vpop.f32.mrf.mxu0
      %2460 = vmatprep.mubr.bf16.mxu0 0
      %2461 = vmatmul.mubr.bf16.gmra.mxu0 %v2271
      %v2462 = vpop.f32.mrf.mxu0
      %v2463 = vadd.f32 0.0, %v2462
      %v2464 = vpop.f32.mrf.mxu0
      %v2465 = vpop.f32.mrf.mxu0
      %v2466 = vadd.f32 0.0, %v2465
      %v2467 = vpop.f32.mrf.mxu0
      %2468 = vdwg.mxu0
      %v2469 = vadd.f32 %v2175, %v2311
      %v2470 = vadd.f32 %v2176, %v2314
      %v2471 = vadd.f32 %v2177, %v2319
      %v2472 = vadd.f32 %v2178, %v2322
      %v2473 = vadd.f32 %v2179, %v2327
      %v2474 = vadd.f32 %v2180, %v2330
      %v2475 = vadd.f32 %v2181, %v2335
      %v2476 = vadd.f32 %v2182, %v2338
      %v2477 = vadd.f32 %v2183, %v2343
      %v2478 = vadd.f32 %v2184, %v2346
      %v2479 = vadd.f32 %v2185, %v2351
      %v2480 = vadd.f32 %v2186, %v2354
      %v2481 = vadd.f32 %v2187, %v2359
      %v2482 = vadd.f32 %v2188, %v2362
      %v2483 = vadd.f32 %v2189, %v2367
      %v2484 = vadd.f32 %v2190, %v2370
      %v2485 = vadd.f32 %v2191, %v2375
      %v2486 = vadd.f32 %v2192, %v2378
      %v2487 = vadd.f32 %v2193, %v2383
      %v2488 = vadd.f32 %v2194, %v2386
      %v2489 = vadd.f32 %v2195, %v2391
      %v2490 = vadd.f32 %v2196, %v2394
      %v2491 = vadd.f32 %v2197, %v2399
      %v2492 = vadd.f32 %v2198, %v2402
      %v2493 = vadd.f32 %v2199, %v2407
      %v2494 = vadd.f32 %v2200, %v2410
      %v2495 = vadd.f32 %v2201, %v2415
      %v2496 = vadd.f32 %v2202, %v2418
      %v2497 = vadd.f32 %v2203, %v2423
      %v2498 = vadd.f32 %v2204, %v2426
      %v2499 = vadd.f32 %v2205, %v2431
      %v2500 = vadd.f32 %v2206, %v2434
      %v2501 = vadd.f32 %v2207, %v2439
      %v2502 = vadd.f32 %v2208, %v2442
      %v2503 = vadd.f32 %v2209, %v2447
      %v2504 = vadd.f32 %v2210, %v2450
      %v2505 = vadd.f32 %v2211, %v2455
      %v2506 = vadd.f32 %v2212, %v2458
      %v2507 = vadd.f32 %v2213, %v2463
      %v2508 = vadd.f32 %v2214, %v2466
      %v2509 = vld [vmem:[%s165] sm:$0xe]
      %v2510 = vld [vmem:[%s165 + $0x14] sm:$0xe]
      %v2511 = vld [vmem:[%s165 + $0x28] sm:$0xe]
      %v2512 = vld [vmem:[%s165 + $0x3c] sm:$0xe]
      %v2513 = vld [vmem:[%s165 + $0x50] sm:$0xe]
      %v2514 = vld [vmem:[%s165 + $0x64] sm:$0xe]
      %v2515 = vld [vmem:[%s165 + $0x78] sm:$0xe]
      %v2516 = vld [vmem:[%s165 + $0x8c] sm:$0xe]
      %v2517 = vld [vmem:[%s165 + $0xa0] sm:$0xe]
      %v2518 = vld [vmem:[%s165 + $0xb4] sm:$0xe]
      %v2519 = vld [vmem:[%s165 + $0xc8] sm:$0xe]
      %v2520 = vld [vmem:[%s165 + $0xdc] sm:$0xe]
      %vm2571 = vcmask 1042432
      %vm2572 = vcmask 1046532
      %vm2573 = vmor %vm2571, %vm2572
      %v2574 = vrot.slane %v2509, 5
      %v2575 = vrot.slane %v2574, 4
      %v2576 = vrot.slane %v1061, 5
      %v2577 = vsel %vm2573, %v2575, %v2576
      %v2578 = vrot.slane %v2576, 4
      %v2579 = vrot.slane %v1062, 5
      %v2580 = vsel %vm2573, %v2578, %v2579
      %v2581 = vrot.slane %v2579, 4
      %v2582 = vrot.slane %v1063, 5
      %v2583 = vsel %vm2573, %v2581, %v2582
      %v2584 = vrot.slane %v2582, 4
      %v2585 = vrot.slane %v1064, 5
      %v2586 = vsel %vm2573, %v2584, %v2585
      %v2587 = vrot.slane %v2510, 5
      %v2588 = vrot.slane %v2587, 4
      %v2589 = vrot.slane %v1066, 5
      %v2590 = vsel %vm2573, %v2588, %v2589
      %v2591 = vrot.slane %v2589, 4
      %v2592 = vrot.slane %v1067, 5
      %v2593 = vsel %vm2573, %v2591, %v2592
      %v2594 = vrot.slane %v2592, 4
      %v2595 = vrot.slane %v1068, 5
      %v2596 = vsel %vm2573, %v2594, %v2595
      %v2597 = vrot.slane %v2595, 4
      %v2598 = vrot.slane %v1069, 5
      %v2599 = vsel %vm2573, %v2597, %v2598
      %v2600 = vrot.slane %v2511, 5
      %v2601 = vrot.slane %v2600, 4
      %v2602 = vrot.slane %v1071, 5
      %v2603 = vsel %vm2573, %v2601, %v2602
      %v2604 = vrot.slane %v2602, 4
      %v2605 = vrot.slane %v1072, 5
      %v2606 = vsel %vm2573, %v2604, %v2605
      %v2607 = vrot.slane %v2605, 4
      %v2608 = vrot.slane %v1073, 5
      %v2609 = vsel %vm2573, %v2607, %v2608
      %v2610 = vrot.slane %v2608, 4
      %v2611 = vrot.slane %v1074, 5
      %v2612 = vsel %vm2573, %v2610, %v2611
      %v2613 = vrot.slane %v2512, 5
      %v2614 = vrot.slane %v2613, 4
      %v2615 = vrot.slane %v1076, 5
      %v2616 = vsel %vm2573, %v2614, %v2615
      %v2617 = vrot.slane %v2615, 4
      %v2618 = vrot.slane %v1077, 5
      %v2619 = vsel %vm2573, %v2617, %v2618
      %v2620 = vrot.slane %v2618, 4
      %v2621 = vrot.slane %v1078, 5
      %v2622 = vsel %vm2573, %v2620, %v2621
      %v2623 = vrot.slane %v2621, 4
      %v2624 = vrot.slane %v1079, 5
      %v2625 = vsel %vm2573, %v2623, %v2624
      %v2626 = vrot.slane %v2513, 5
      %v2627 = vrot.slane %v2626, 4
      %v2628 = vrot.slane %v1081, 5
      %v2629 = vsel %vm2573, %v2627, %v2628
      %v2630 = vrot.slane %v2628, 4
      %v2631 = vrot.slane %v1082, 5
      %v2632 = vsel %vm2573, %v2630, %v2631
      %v2633 = vrot.slane %v2631, 4
      %v2634 = vrot.slane %v1083, 5
      %v2635 = vsel %vm2573, %v2633, %v2634
      %v2636 = vrot.slane %v2634, 4
      %v2637 = vrot.slane %v1084, 5
      %v2638 = vsel %vm2573, %v2636, %v2637
      %v2639 = vrot.slane %v2514, 5
      %v2640 = vrot.slane %v2639, 4
      %v2641 = vrot.slane %v1086, 5
      %v2642 = vsel %vm2573, %v2640, %v2641
      %v2643 = vrot.slane %v2641, 4
      %v2644 = vrot.slane %v1087, 5
      %v2645 = vsel %vm2573, %v2643, %v2644
      %v2646 = vrot.slane %v2644, 4
      %v2647 = vrot.slane %v1088, 5
      %v2648 = vsel %vm2573, %v2646, %v2647
      %v2649 = vrot.slane %v2647, 4
      %v2650 = vrot.slane %v1089, 5
      %v2651 = vsel %vm2573, %v2649, %v2650
      %v2652 = vrot.slane %v2515, 5
      %v2653 = vrot.slane %v2652, 4
      %v2654 = vrot.slane %v1091, 5
      %v2655 = vsel %vm2573, %v2653, %v2654
      %v2656 = vrot.slane %v2654, 4
      %v2657 = vrot.slane %v1092, 5
      %v2658 = vsel %vm2573, %v2656, %v2657
      %v2659 = vrot.slane %v2657, 4
      %v2660 = vrot.slane %v1093, 5
      %v2661 = vsel %vm2573, %v2659, %v2660
      %v2662 = vrot.slane %v2660, 4
      %v2663 = vrot.slane %v1094, 5
      %v2664 = vsel %vm2573, %v2662, %v2663
      %v2665 = vrot.slane %v2516, 5
      %v2666 = vrot.slane %v2665, 4
      %v2667 = vrot.slane %v1096, 5
      %v2668 = vsel %vm2573, %v2666, %v2667
      %v2669 = vrot.slane %v2667, 4
      %v2670 = vrot.slane %v1097, 5
      %v2671 = vsel %vm2573, %v2669, %v2670
      %v2672 = vrot.slane %v2670, 4
      %v2673 = vrot.slane %v1098, 5
      %v2674 = vsel %vm2573, %v2672, %v2673
      %v2675 = vrot.slane %v2673, 4
      %v2676 = vrot.slane %v1099, 5
      %v2677 = vsel %vm2573, %v2675, %v2676
      %v2678 = vrot.slane %v2517, 5
      %v2679 = vrot.slane %v2678, 4
      %v2680 = vrot.slane %v1101, 5
      %v2681 = vsel %vm2573, %v2679, %v2680
      %v2682 = vrot.slane %v2680, 4
      %v2683 = vrot.slane %v1102, 5
      %v2684 = vsel %vm2573, %v2682, %v2683
      %v2685 = vrot.slane %v2683, 4
      %v2686 = vrot.slane %v1103, 5
      %v2687 = vsel %vm2573, %v2685, %v2686
      %v2688 = vrot.slane %v2686, 4
      %v2689 = vrot.slane %v1104, 5
      %v2690 = vsel %vm2573, %v2688, %v2689
      %v2691 = vrot.slane %v2518, 5
      %v2692 = vrot.slane %v2691, 4
      %v2693 = vrot.slane %v1106, 5
      %v2694 = vsel %vm2573, %v2692, %v2693
      %v2695 = vrot.slane %v2693, 4
      %v2696 = vrot.slane %v1107, 5
      %v2697 = vsel %vm2573, %v2695, %v2696
      %v2698 = vrot.slane %v2696, 4
      %v2699 = vrot.slane %v1108, 5
      %v2700 = vsel %vm2573, %v2698, %v2699
      %v2701 = vrot.slane %v2699, 4
      %v2702 = vrot.slane %v1109, 5
      %v2703 = vsel %vm2573, %v2701, %v2702
      %s2704 = scalar_lea.vmem %s1, 4
      %v2705 = vld [vmem:[%s2704] sm:$0x3]
      %v2706 = vunpack.c.l.b16 %v2577
      %v2707 = vunpack.c.l.b16 %v2580
      %v2708 = vunpack.c.l.b16 %v2583
      %v2709 = vunpack.c.l.b16 %v2586
      %v2710 = vunpack.c.l.b16 %v2590
      %v2711 = vunpack.c.l.b16 %v2593
      %v2712 = vunpack.c.l.b16 %v2596
      %v2713 = vunpack.c.l.b16 %v2599
      %v2714 = vunpack.c.l.b16 %v2603
      %v2715 = vunpack.c.l.b16 %v2606
      %v2716 = vunpack.c.l.b16 %v2609
      %v2717 = vunpack.c.l.b16 %v2612
      %v2718 = vunpack.c.l.b16 %v2616
      %v2719 = vunpack.c.l.b16 %v2619
      %v2720 = vunpack.c.l.b16 %v2622
      %v2721 = vunpack.c.l.b16 %v2625
      %v2722 = vunpack.c.l.b16 %v2629
      %v2723 = vunpack.c.l.b16 %v2632
      %v2724 = vunpack.c.l.b16 %v2635
      %v2725 = vunpack.c.l.b16 %v2638
      %v2726 = vunpack.c.l.b16 %v2642
      %v2727 = vunpack.c.l.b16 %v2645
      %v2728 = vunpack.c.l.b16 %v2648
      %v2729 = vunpack.c.l.b16 %v2651
      %v2730 = vunpack.c.l.b16 %v2655
      %v2731 = vunpack.c.l.b16 %v2658
      %v2732 = vunpack.c.l.b16 %v2661
      %v2733 = vunpack.c.l.b16 %v2664
      %v2734 = vunpack.c.l.b16 %v2668
      %v2735 = vunpack.c.l.b16 %v2671
      %v2736 = vunpack.c.l.b16 %v2674
      %v2737 = vunpack.c.l.b16 %v2677
      %v2738 = vunpack.c.l.b16 %v2681
      %v2739 = vunpack.c.l.b16 %v2684
      %v2740 = vunpack.c.l.b16 %v2687
      %v2741 = vunpack.c.l.b16 %v2690
      %v2742 = vunpack.c.l.b16 %v2694
      %v2743 = vunpack.c.l.b16 %v2697
      %v2744 = vunpack.c.l.b16 %v2700
      %v2745 = vunpack.c.l.b16 %v2703
      %v2746 = vpack.c.b16 %v2707, %v2706
      %v2747 = vpack.c.b16 %v2709, %v2708
      %v2748 = vpack.c.b16 %v2711, %v2710
      %v2749 = vpack.c.b16 %v2713, %v2712
      %v2750 = vpack.c.b16 %v2715, %v2714
      %v2751 = vpack.c.b16 %v2717, %v2716
      %v2752 = vpack.c.b16 %v2719, %v2718
      %v2753 = vpack.c.b16 %v2721, %v2720
      %v2754 = vpack.c.b16 %v2723, %v2722
      %v2755 = vpack.c.b16 %v2725, %v2724
      %v2756 = vpack.c.b16 %v2727, %v2726
      %v2757 = vpack.c.b16 %v2729, %v2728
      %v2758 = vpack.c.b16 %v2731, %v2730
      %v2759 = vpack.c.b16 %v2733, %v2732
      %v2760 = vpack.c.b16 %v2735, %v2734
      %v2761 = vpack.c.b16 %v2737, %v2736
      %v2762 = vpack.c.b16 %v2739, %v2738
      %v2763 = vpack.c.b16 %v2741, %v2740
      %v2764 = vpack.c.b16 %v2743, %v2742
      %v2765 = vpack.c.b16 %v2745, %v2744
      %v2767 = vsel %vm336, %v2746, 0
      %v2770 = vsel %vm336, %v2747, 0
      %v2773 = vsel %vm336, %v2748, 0
      %v2776 = vsel %vm336, %v2749, 0
      %v2779 = vsel %vm336, %v2750, 0
      %v2782 = vsel %vm336, %v2751, 0
      %v2785 = vsel %vm336, %v2752, 0
      %v2788 = vsel %vm336, %v2753, 0
      %v2791 = vsel %vm336, %v2754, 0
      %v2794 = vsel %vm336, %v2755, 0
      %v2797 = vsel %vm336, %v2756, 0
      %v2800 = vsel %vm336, %v2757, 0
      %v2803 = vsel %vm336, %v2758, 0
      %v2806 = vsel %vm336, %v2759, 0
      %v2809 = vsel %vm336, %v2760, 0
      %v2812 = vsel %vm336, %v2761, 0
      %v2815 = vsel %vm336, %v2762, 0
      %v2818 = vsel %vm336, %v2763, 0
      %v2821 = vsel %vm336, %v2764, 0
      %v2824 = vsel %vm336, %v2765, 0
      %v2827 = vsel %vm397, %v2705, 0
      %2829 = vmatprep.subr.bf16.mxu0 0
      %2830 = vmatpush1.bf16.msra.mxu0 0
      %2831 = vmatprep.subr.bf16.mxu0 0
      %2832 = vmatpush1.bf16.msra.mxu0 0
      %2833 = vmatprep.subr.bf16.mxu0 0
      %2834 = vmatpush1.bf16.msra.mxu0 0
      %2835 = vmatprep.subr.bf16.mxu0 0
      %2836 = vmatpush1.bf16.msra.mxu0 0
      %2837 = vmatprep.subr.bf16.mxu0 0
      %2838 = vmatpush1.bf16.msra.mxu0 0
      %2839 = vmatprep.subr.bf16.mxu0 0
      %2840 = vmatpush1.bf16.msra.mxu0 0
      %2841 = vmatprep.subr.bf16.mxu0 0
      %2842 = vmatpush1.bf16.msra.mxu0 0
      %2843 = vmatprep.subr.bf16.mxu0 0
      %2844 = vmatpush1.bf16.msra.mxu0 %v2827
      %2845 = vmatprep.subr.bf16.mxu0 0
      %2846 = vmatpush2.bf16.msra.mxu0 0
      %2847 = vmatprep.subr.bf16.mxu0 0
      %2848 = vmatpush2.bf16.msra.mxu0 0
      %2849 = vmatprep.subr.bf16.mxu0 0
      %2850 = vmatpush2.bf16.msra.mxu0 0
      %2851 = vmatprep.subr.bf16.mxu0 0
      %2852 = vmatpush2.bf16.msra.mxu0 0
      %2853 = vmatprep.subr.bf16.mxu0 0
      %2854 = vmatpush2.bf16.msra.mxu0 0
      %2855 = vmatprep.subr.bf16.mxu0 0
      %2856 = vmatpush2.bf16.msra.mxu0 0
      %2857 = vmatprep.subr.bf16.mxu0 0
      %2858 = vmatpush2.bf16.msra.mxu0 0
      %2859 = vmatprep.subr.bf16.mxu0 0
      %2860 = vmatpush2.bf16.msra.mxu0 0
      %2861 = vmatprep.mubr.bf16.mxu0 0
      %2862 = vmatmul.mubr.bf16.gmra.mxu0 %v2767
      %v2863 = vpop.f32.mrf.mxu0
      %v2864 = vadd.f32 0.0, %v2863
      %v2865 = vpop.f32.mrf.mxu0
      %v2866 = vpop.f32.mrf.mxu0
      %v2867 = vadd.f32 0.0, %v2866
      %v2868 = vpop.f32.mrf.mxu0
      %2869 = vmatprep.mubr.bf16.mxu0 0
      %2870 = vmatmul.mubr.bf16.gmra.mxu0 %v2770
      %v2871 = vpop.f32.mrf.mxu0
      %v2872 = vadd.f32 0.0, %v2871
      %v2873 = vpop.f32.mrf.mxu0
      %v2874 = vpop.f32.mrf.mxu0
      %v2875 = vadd.f32 0.0, %v2874
      %v2876 = vpop.f32.mrf.mxu0
      %2877 = vmatprep.mubr.bf16.mxu0 0
      %2878 = vmatmul.mubr.bf16.gmra.mxu0 %v2773
      %v2879 = vpop.f32.mrf.mxu0
      %v2880 = vadd.f32 0.0, %v2879
      %v2881 = vpop.f32.mrf.mxu0
      %v2882 = vpop.f32.mrf.mxu0
      %v2883 = vadd.f32 0.0, %v2882
      %v2884 = vpop.f32.mrf.mxu0
      %2885 = vmatprep.mubr.bf16.mxu0 0
      %2886 = vmatmul.mubr.bf16.gmra.mxu0 %v2776
      %v2887 = vpop.f32.mrf.mxu0
      %v2888 = vadd.f32 0.0, %v2887
      %v2889 = vpop.f32.mrf.mxu0
      %v2890 = vpop.f32.mrf.mxu0
      %v2891 = vadd.f32 0.0, %v2890
      %v2892 = vpop.f32.mrf.mxu0
      %2893 = vmatprep.mubr.bf16.mxu0 0
      %2894 = vmatmul.mubr.bf16.gmra.mxu0 %v2779
      %v2895 = vpop.f32.mrf.mxu0
      %v2896 = vadd.f32 0.0, %v2895
      %v2897 = vpop.f32.mrf.mxu0
      %v2898 = vpop.f32.mrf.mxu0
      %v2899 = vadd.f32 0.0, %v2898
      %v2900 = vpop.f32.mrf.mxu0
      %2901 = vmatprep.mubr.bf16.mxu0 0
      %2902 = vmatmul.mubr.bf16.gmra.mxu0 %v2782
      %v2903 = vpop.f32.mrf.mxu0
      %v2904 = vadd.f32 0.0, %v2903
      %v2905 = vpop.f32.mrf.mxu0
      %v2906 = vpop.f32.mrf.mxu0
      %v2907 = vadd.f32 0.0, %v2906
      %v2908 = vpop.f32.mrf.mxu0
      %2909 = vmatprep.mubr.bf16.mxu0 0
      %2910 = vmatmul.mubr.bf16.gmra.mxu0 %v2785
      %v2911 = vpop.f32.mrf.mxu0
      %v2912 = vadd.f32 0.0, %v2911
      %v2913 = vpop.f32.mrf.mxu0
      %v2914 = vpop.f32.mrf.mxu0
      %v2915 = vadd.f32 0.0, %v2914
      %v2916 = vpop.f32.mrf.mxu0
      %2917 = vmatprep.mubr.bf16.mxu0 0
      %2918 = vmatmul.mubr.bf16.gmra.mxu0 %v2788
      %v2919 = vpop.f32.mrf.mxu0
      %v2920 = vadd.f32 0.0, %v2919
      %v2921 = vpop.f32.mrf.mxu0
      %v2922 = vpop.f32.mrf.mxu0
      %v2923 = vadd.f32 0.0, %v2922
      %v2924 = vpop.f32.mrf.mxu0
      %2925 = vmatprep.mubr.bf16.mxu0 0
      %2926 = vmatmul.mubr.bf16.gmra.mxu0 %v2791
      %v2927 = vpop.f32.mrf.mxu0
      %v2928 = vadd.f32 0.0, %v2927
      %v2929 = vpop.f32.mrf.mxu0
      %v2930 = vpop.f32.mrf.mxu0
      %v2931 = vadd.f32 0.0, %v2930
      %v2932 = vpop.f32.mrf.mxu0
      %2933 = vmatprep.mubr.bf16.mxu0 0
      %2934 = vmatmul.mubr.bf16.gmra.mxu0 %v2794
      %v2935 = vpop.f32.mrf.mxu0
      %v2936 = vadd.f32 0.0, %v2935
      %v2937 = vpop.f32.mrf.mxu0
      %v2938 = vpop.f32.mrf.mxu0
      %v2939 = vadd.f32 0.0, %v2938
      %v2940 = vpop.f32.mrf.mxu0
      %2941 = vmatprep.mubr.bf16.mxu0 0
      %2942 = vmatmul.mubr.bf16.gmra.mxu0 %v2797
      %v2943 = vpop.f32.mrf.mxu0
      %v2944 = vadd.f32 0.0, %v2943
      %v2945 = vpop.f32.mrf.mxu0
      %v2946 = vpop.f32.mrf.mxu0
      %v2947 = vadd.f32 0.0, %v2946
      %v2948 = vpop.f32.mrf.mxu0
      %2949 = vmatprep.mubr.bf16.mxu0 0
      %2950 = vmatmul.mubr.bf16.gmra.mxu0 %v2800
      %v2951 = vpop.f32.mrf.mxu0
      %v2952 = vadd.f32 0.0, %v2951
      %v2953 = vpop.f32.mrf.mxu0
      %v2954 = vpop.f32.mrf.mxu0
      %v2955 = vadd.f32 0.0, %v2954
      %v2956 = vpop.f32.mrf.mxu0
      %2957 = vmatprep.mubr.bf16.mxu0 0
      %2958 = vmatmul.mubr.bf16.gmra.mxu0 %v2803
      %v2959 = vpop.f32.mrf.mxu0
      %v2960 = vadd.f32 0.0, %v2959
      %v2961 = vpop.f32.mrf.mxu0
      %v2962 = vpop.f32.mrf.mxu0
      %v2963 = vadd.f32 0.0, %v2962
      %v2964 = vpop.f32.mrf.mxu0
      %2965 = vmatprep.mubr.bf16.mxu0 0
      %2966 = vmatmul.mubr.bf16.gmra.mxu0 %v2806
      %v2967 = vpop.f32.mrf.mxu0
      %v2968 = vadd.f32 0.0, %v2967
      %v2969 = vpop.f32.mrf.mxu0
      %v2970 = vpop.f32.mrf.mxu0
      %v2971 = vadd.f32 0.0, %v2970
      %v2972 = vpop.f32.mrf.mxu0
      %2973 = vmatprep.mubr.bf16.mxu0 0
      %2974 = vmatmul.mubr.bf16.gmra.mxu0 %v2809
      %v2975 = vpop.f32.mrf.mxu0
      %v2976 = vadd.f32 0.0, %v2975
      %v2977 = vpop.f32.mrf.mxu0
      %v2978 = vpop.f32.mrf.mxu0
      %v2979 = vadd.f32 0.0, %v2978
      %v2980 = vpop.f32.mrf.mxu0
      %2981 = vmatprep.mubr.bf16.mxu0 0
      %2982 = vmatmul.mubr.bf16.gmra.mxu0 %v2812
      %v2983 = vpop.f32.mrf.mxu0
      %v2984 = vadd.f32 0.0, %v2983
      %v2985 = vpop.f32.mrf.mxu0
      %v2986 = vpop.f32.mrf.mxu0
      %v2987 = vadd.f32 0.0, %v2986
      %v2988 = vpop.f32.mrf.mxu0
      %2989 = vmatprep.mubr.bf16.mxu0 0
      %2990 = vmatmul.mubr.bf16.gmra.mxu0 %v2815
      %v2991 = vpop.f32.mrf.mxu0
      %v2992 = vadd.f32 0.0, %v2991
      %v2993 = vpop.f32.mrf.mxu0
      %v2994 = vpop.f32.mrf.mxu0
      %v2995 = vadd.f32 0.0, %v2994
      %v2996 = vpop.f32.mrf.mxu0
      %2997 = vmatprep.mubr.bf16.mxu0 0
      %2998 = vmatmul.mubr.bf16.gmra.mxu0 %v2818
      %v2999 = vpop.f32.mrf.mxu0
      %v3000 = vadd.f32 0.0, %v2999
      %v3001 = vpop.f32.mrf.mxu0
      %v3002 = vpop.f32.mrf.mxu0
      %v3003 = vadd.f32 0.0, %v3002
      %v3004 = vpop.f32.mrf.mxu0
      %3005 = vmatprep.mubr.bf16.mxu0 0
      %3006 = vmatmul.mubr.bf16.gmra.mxu0 %v2821
      %v3007 = vpop.f32.mrf.mxu0
      %v3008 = vadd.f32 0.0, %v3007
      %v3009 = vpop.f32.mrf.mxu0
      %v3010 = vpop.f32.mrf.mxu0
      %v3011 = vadd.f32 0.0, %v3010
      %v3012 = vpop.f32.mrf.mxu0
      %3013 = vmatprep.mubr.bf16.mxu0 0
      %3014 = vmatmul.mubr.bf16.gmra.mxu0 %v2824
      %v3015 = vpop.f32.mrf.mxu0
      %v3016 = vadd.f32 0.0, %v3015
      %v3017 = vpop.f32.mrf.mxu0
      %v3018 = vpop.f32.mrf.mxu0
      %v3019 = vadd.f32 0.0, %v3018
      %v3020 = vpop.f32.mrf.mxu0
      %3021 = vdwg.mxu0
      %v3022 = vadd.f32 %v2469, %v2864
      %v3023 = vadd.f32 %v2470, %v2867
      %v3024 = vadd.f32 %v2471, %v2872
      %v3025 = vadd.f32 %v2472, %v2875
      %v3026 = vadd.f32 %v2473, %v2880
      %v3027 = vadd.f32 %v2474, %v2883
      %v3028 = vadd.f32 %v2475, %v2888
      %v3029 = vadd.f32 %v2476, %v2891
      %v3030 = vadd.f32 %v2477, %v2896
      %v3031 = vadd.f32 %v2478, %v2899
      %v3032 = vadd.f32 %v2479, %v2904
      %v3033 = vadd.f32 %v2480, %v2907
      %v3034 = vadd.f32 %v2481, %v2912
      %v3035 = vadd.f32 %v2482, %v2915
      %v3036 = vadd.f32 %v2483, %v2920
      %v3037 = vadd.f32 %v2484, %v2923
      %v3038 = vadd.f32 %v2485, %v2928
      %v3039 = vadd.f32 %v2486, %v2931
      %v3040 = vadd.f32 %v2487, %v2936
      %v3041 = vadd.f32 %v2488, %v2939
      %v3042 = vadd.f32 %v2489, %v2944
      %v3043 = vadd.f32 %v2490, %v2947
      %v3044 = vadd.f32 %v2491, %v2952
      %v3045 = vadd.f32 %v2492, %v2955
      %v3046 = vadd.f32 %v2493, %v2960
      %v3047 = vadd.f32 %v2494, %v2963
      %v3048 = vadd.f32 %v2495, %v2968
      %v3049 = vadd.f32 %v2496, %v2971
      %v3050 = vadd.f32 %v2497, %v2976
      %v3051 = vadd.f32 %v2498, %v2979
      %v3052 = vadd.f32 %v2499, %v2984
      %v3053 = vadd.f32 %v2500, %v2987
      %v3054 = vadd.f32 %v2501, %v2992
      %v3055 = vadd.f32 %v2502, %v2995
      %v3056 = vadd.f32 %v2503, %v3000
      %v3057 = vadd.f32 %v2504, %v3003
      %v3058 = vadd.f32 %v2505, %v3008
      %v3059 = vadd.f32 %v2506, %v3011
      %v3060 = vadd.f32 %v2507, %v3016
      %v3061 = vadd.f32 %v2508, %v3019
      %v3067 = vrot.slane %v2519, 5
      %v3068 = vrot.slane %v3067, 4
      %v3069 = vrot.slane %v1111, 5
      %v3070 = vsel %vm2573, %v3068, %v3069
      %v3071 = vrot.slane %v3069, 4
      %v3072 = vrot.slane %v1112, 5
      %v3073 = vsel %vm2573, %v3071, %v3072
      %v3074 = vrot.slane %v3072, 4
      %v3075 = vrot.slane %v1113, 5
      %v3076 = vsel %vm2573, %v3074, %v3075
      %v3077 = vrot.slane %v3075, 4
      %v3078 = vrot.slane %v1114, 5
      %v3079 = vsel %vm2573, %v3077, %v3078
      %s3080 = scalar_lea.vmem %s1, 10
      %v3081 = vld [vmem:[%s3080] sm:$0x3]
      %v3082 = vunpack.c.l.b16 %v3070
      %v3083 = vunpack.c.l.b16 %v3073
      %v3084 = vunpack.c.l.b16 %v3076
      %v3085 = vunpack.c.l.b16 %v3079
      %v3086 = vpack.c.b16 %v3083, %v3082
      %v3087 = vpack.c.b16 %v3085, %v3084
      %v3089 = vsel %vm336, %v3086, 0
      %v3092 = vsel %vm336, %v3087, 0
      %v3095 = vsel %vm397, %v3081, 0
      %3097 = vmatprep.subr.bf16.mxu0 0
      %3098 = vmatpush1.bf16.msra.mxu0 0
      %3099 = vmatprep.subr.bf16.mxu0 0
      %3100 = vmatpush1.bf16.msra.mxu0 0
      %3101 = vmatprep.subr.bf16.mxu0 0
      %3102 = vmatpush1.bf16.msra.mxu0 0
      %3103 = vmatprep.subr.bf16.mxu0 0
      %3104 = vmatpush1.bf16.msra.mxu0 0
      %3105 = vmatprep.subr.bf16.mxu0 0
      %3106 = vmatpush1.bf16.msra.mxu0 0
      %3107 = vmatprep.subr.bf16.mxu0 0
      %3108 = vmatpush1.bf16.msra.mxu0 0
      %3109 = vmatprep.subr.bf16.mxu0 0
      %3110 = vmatpush1.bf16.msra.mxu0 0
      %3111 = vmatprep.subr.bf16.mxu0 0
      %3112 = vmatpush1.bf16.msra.mxu0 %v3095
      %3113 = vmatprep.subr.bf16.mxu0 0
      %3114 = vmatpush2.bf16.msra.mxu0 0
      %3115 = vmatprep.subr.bf16.mxu0 0
      %3116 = vmatpush2.bf16.msra.mxu0 0
      %3117 = vmatprep.subr.bf16.mxu0 0
      %3118 = vmatpush2.bf16.msra.mxu0 0
      %3119 = vmatprep.subr.bf16.mxu0 0
      %3120 = vmatpush2.bf16.msra.mxu0 0
      %3121 = vmatprep.subr.bf16.mxu0 0
      %3122 = vmatpush2.bf16.msra.mxu0 0
      %3123 = vmatprep.subr.bf16.mxu0 0
      %3124 = vmatpush2.bf16.msra.mxu0 0
      %3125 = vmatprep.subr.bf16.mxu0 0
      %3126 = vmatpush2.bf16.msra.mxu0 0
      %3127 = vmatprep.subr.bf16.mxu0 0
      %3128 = vmatpush2.bf16.msra.mxu0 0
      %3129 = vmatprep.mubr.bf16.mxu0 0
      %3130 = vmatmul.mubr.bf16.gmra.mxu0 %v2773
      %v3131 = vpop.f32.mrf.mxu0
      %v3132 = vadd.f32 0.0, %v3131
      %v3133 = vpop.f32.mrf.mxu0
      %v3134 = vpop.f32.mrf.mxu0
      %v3135 = vadd.f32 0.0, %v3134
      %v3136 = vpop.f32.mrf.mxu0
      %3137 = vmatprep.mubr.bf16.mxu0 0
      %3138 = vmatmul.mubr.bf16.gmra.mxu0 %v2776
      %v3139 = vpop.f32.mrf.mxu0
      %v3140 = vadd.f32 0.0, %v3139
      %v3141 = vpop.f32.mrf.mxu0
      %v3142 = vpop.f32.mrf.mxu0
      %v3143 = vadd.f32 0.0, %v3142
      %v3144 = vpop.f32.mrf.mxu0
      %3145 = vmatprep.mubr.bf16.mxu0 0
      %3146 = vmatmul.mubr.bf16.gmra.mxu0 %v2779
      %v3147 = vpop.f32.mrf.mxu0
      %v3148 = vadd.f32 0.0, %v3147
      %v3149 = vpop.f32.mrf.mxu0
      %v3150 = vpop.f32.mrf.mxu0
      %v3151 = vadd.f32 0.0, %v3150
      %v3152 = vpop.f32.mrf.mxu0
      %3153 = vmatprep.mubr.bf16.mxu0 0
      %3154 = vmatmul.mubr.bf16.gmra.mxu0 %v2782
      %v3155 = vpop.f32.mrf.mxu0
      %v3156 = vadd.f32 0.0, %v3155
      %v3157 = vpop.f32.mrf.mxu0
      %v3158 = vpop.f32.mrf.mxu0
      %v3159 = vadd.f32 0.0, %v3158
      %v3160 = vpop.f32.mrf.mxu0
      %3161 = vmatprep.mubr.bf16.mxu0 0
      %3162 = vmatmul.mubr.bf16.gmra.mxu0 %v2785
      %v3163 = vpop.f32.mrf.mxu0
      %v3164 = vadd.f32 0.0, %v3163
      %v3165 = vpop.f32.mrf.mxu0
      %v3166 = vpop.f32.mrf.mxu0
      %v3167 = vadd.f32 0.0, %v3166
      %v3168 = vpop.f32.mrf.mxu0
      %3169 = vmatprep.mubr.bf16.mxu0 0
      %3170 = vmatmul.mubr.bf16.gmra.mxu0 %v2788
      %v3171 = vpop.f32.mrf.mxu0
      %v3172 = vadd.f32 0.0, %v3171
      %v3173 = vpop.f32.mrf.mxu0
      %v3174 = vpop.f32.mrf.mxu0
      %v3175 = vadd.f32 0.0, %v3174
      %v3176 = vpop.f32.mrf.mxu0
      %3177 = vmatprep.mubr.bf16.mxu0 0
      %3178 = vmatmul.mubr.bf16.gmra.mxu0 %v2791
      %v3179 = vpop.f32.mrf.mxu0
      %v3180 = vadd.f32 0.0, %v3179
      %v3181 = vpop.f32.mrf.mxu0
      %v3182 = vpop.f32.mrf.mxu0
      %v3183 = vadd.f32 0.0, %v3182
      %v3184 = vpop.f32.mrf.mxu0
      %3185 = vmatprep.mubr.bf16.mxu0 0
      %3186 = vmatmul.mubr.bf16.gmra.mxu0 %v2794
      %v3187 = vpop.f32.mrf.mxu0
      %v3188 = vadd.f32 0.0, %v3187
      %v3189 = vpop.f32.mrf.mxu0
      %v3190 = vpop.f32.mrf.mxu0
      %v3191 = vadd.f32 0.0, %v3190
      %v3192 = vpop.f32.mrf.mxu0
      %3193 = vmatprep.mubr.bf16.mxu0 0
      %3194 = vmatmul.mubr.bf16.gmra.mxu0 %v2797
      %v3195 = vpop.f32.mrf.mxu0
      %v3196 = vadd.f32 0.0, %v3195
      %v3197 = vpop.f32.mrf.mxu0
      %v3198 = vpop.f32.mrf.mxu0
      %v3199 = vadd.f32 0.0, %v3198
      %v3200 = vpop.f32.mrf.mxu0
      %3201 = vmatprep.mubr.bf16.mxu0 0
      %3202 = vmatmul.mubr.bf16.gmra.mxu0 %v2800
      %v3203 = vpop.f32.mrf.mxu0
      %v3204 = vadd.f32 0.0, %v3203
      %v3205 = vpop.f32.mrf.mxu0
      %v3206 = vpop.f32.mrf.mxu0
      %v3207 = vadd.f32 0.0, %v3206
      %v3208 = vpop.f32.mrf.mxu0
      %3209 = vmatprep.mubr.bf16.mxu0 0
      %3210 = vmatmul.mubr.bf16.gmra.mxu0 %v2803
      %v3211 = vpop.f32.mrf.mxu0
      %v3212 = vadd.f32 0.0, %v3211
      %v3213 = vpop.f32.mrf.mxu0
      %v3214 = vpop.f32.mrf.mxu0
      %v3215 = vadd.f32 0.0, %v3214
      %v3216 = vpop.f32.mrf.mxu0
      %3217 = vmatprep.mubr.bf16.mxu0 0
      %3218 = vmatmul.mubr.bf16.gmra.mxu0 %v2806
      %v3219 = vpop.f32.mrf.mxu0
      %v3220 = vadd.f32 0.0, %v3219
      %v3221 = vpop.f32.mrf.mxu0
      %v3222 = vpop.f32.mrf.mxu0
      %v3223 = vadd.f32 0.0, %v3222
      %v3224 = vpop.f32.mrf.mxu0
      %3225 = vmatprep.mubr.bf16.mxu0 0
      %3226 = vmatmul.mubr.bf16.gmra.mxu0 %v2809
      %v3227 = vpop.f32.mrf.mxu0
      %v3228 = vadd.f32 0.0, %v3227
      %v3229 = vpop.f32.mrf.mxu0
      %v3230 = vpop.f32.mrf.mxu0
      %v3231 = vadd.f32 0.0, %v3230
      %v3232 = vpop.f32.mrf.mxu0
      %3233 = vmatprep.mubr.bf16.mxu0 0
      %3234 = vmatmul.mubr.bf16.gmra.mxu0 %v2812
      %v3235 = vpop.f32.mrf.mxu0
      %v3236 = vadd.f32 0.0, %v3235
      %v3237 = vpop.f32.mrf.mxu0
      %v3238 = vpop.f32.mrf.mxu0
      %v3239 = vadd.f32 0.0, %v3238
      %v3240 = vpop.f32.mrf.mxu0
      %3241 = vmatprep.mubr.bf16.mxu0 0
      %3242 = vmatmul.mubr.bf16.gmra.mxu0 %v2815
      %v3243 = vpop.f32.mrf.mxu0
      %v3244 = vadd.f32 0.0, %v3243
      %v3245 = vpop.f32.mrf.mxu0
      %v3246 = vpop.f32.mrf.mxu0
      %v3247 = vadd.f32 0.0, %v3246
      %v3248 = vpop.f32.mrf.mxu0
      %3249 = vmatprep.mubr.bf16.mxu0 0
      %3250 = vmatmul.mubr.bf16.gmra.mxu0 %v2818
      %v3251 = vpop.f32.mrf.mxu0
      %v3252 = vadd.f32 0.0, %v3251
      %v3253 = vpop.f32.mrf.mxu0
      %v3254 = vpop.f32.mrf.mxu0
      %v3255 = vadd.f32 0.0, %v3254
      %v3256 = vpop.f32.mrf.mxu0
      %3257 = vmatprep.mubr.bf16.mxu0 0
      %3258 = vmatmul.mubr.bf16.gmra.mxu0 %v2821
      %v3259 = vpop.f32.mrf.mxu0
      %v3260 = vadd.f32 0.0, %v3259
      %v3261 = vpop.f32.mrf.mxu0
      %v3262 = vpop.f32.mrf.mxu0
      %v3263 = vadd.f32 0.0, %v3262
      %v3264 = vpop.f32.mrf.mxu0
      %3265 = vmatprep.mubr.bf16.mxu0 0
      %3266 = vmatmul.mubr.bf16.gmra.mxu0 %v2824
      %v3267 = vpop.f32.mrf.mxu0
      %v3268 = vadd.f32 0.0, %v3267
      %v3269 = vpop.f32.mrf.mxu0
      %v3270 = vpop.f32.mrf.mxu0
      %v3271 = vadd.f32 0.0, %v3270
      %v3272 = vpop.f32.mrf.mxu0
      %3273 = vmatprep.mubr.bf16.mxu0 0
      %3274 = vmatmul.mubr.bf16.gmra.mxu0 %v3089
      %v3275 = vpop.f32.mrf.mxu0
      %v3276 = vadd.f32 0.0, %v3275
      %v3277 = vpop.f32.mrf.mxu0
      %v3278 = vpop.f32.mrf.mxu0
      %v3279 = vadd.f32 0.0, %v3278
      %v3280 = vpop.f32.mrf.mxu0
      %3281 = vmatprep.mubr.bf16.mxu0 0
      %3282 = vmatmul.mubr.bf16.gmra.mxu0 %v3092
      %v3283 = vpop.f32.mrf.mxu0
      %v3284 = vadd.f32 0.0, %v3283
      %v3285 = vpop.f32.mrf.mxu0
      %v3286 = vpop.f32.mrf.mxu0
      %v3287 = vadd.f32 0.0, %v3286
      %v3288 = vpop.f32.mrf.mxu0
      %3289 = vdwg.mxu0
      %v3290 = vadd.f32 %v3022, %v3132
      %v3291 = vadd.f32 %v3023, %v3135
      %v3292 = vadd.f32 %v3024, %v3140
      %v3293 = vadd.f32 %v3025, %v3143
      %v3294 = vadd.f32 %v3026, %v3148
      %v3295 = vadd.f32 %v3027, %v3151
      %v3296 = vadd.f32 %v3028, %v3156
      %v3297 = vadd.f32 %v3029, %v3159
      %v3298 = vadd.f32 %v3030, %v3164
      %v3299 = vadd.f32 %v3031, %v3167
      %v3300 = vadd.f32 %v3032, %v3172
      %v3301 = vadd.f32 %v3033, %v3175
      %v3302 = vadd.f32 %v3034, %v3180
      %v3303 = vadd.f32 %v3035, %v3183
      %v3304 = vadd.f32 %v3036, %v3188
      %v3305 = vadd.f32 %v3037, %v3191
      %v3306 = vadd.f32 %v3038, %v3196
      %v3307 = vadd.f32 %v3039, %v3199
      %v3308 = vadd.f32 %v3040, %v3204
      %v3309 = vadd.f32 %v3041, %v3207
      %v3310 = vadd.f32 %v3042, %v3212
      %v3311 = vadd.f32 %v3043, %v3215
      %v3312 = vadd.f32 %v3044, %v3220
      %v3313 = vadd.f32 %v3045, %v3223
      %v3314 = vadd.f32 %v3046, %v3228
      %v3315 = vadd.f32 %v3047, %v3231
      %v3316 = vadd.f32 %v3048, %v3236
      %v3317 = vadd.f32 %v3049, %v3239
      %v3318 = vadd.f32 %v3050, %v3244
      %v3319 = vadd.f32 %v3051, %v3247
      %v3320 = vadd.f32 %v3052, %v3252
      %v3321 = vadd.f32 %v3053, %v3255
      %v3322 = vadd.f32 %v3054, %v3260
      %v3323 = vadd.f32 %v3055, %v3263
      %v3324 = vadd.f32 %v3056, %v3268
      %v3325 = vadd.f32 %v3057, %v3271
      %v3326 = vadd.f32 %v3058, %v3276
      %v3327 = vadd.f32 %v3059, %v3279
      %v3328 = vadd.f32 %v3060, %v3284
      %v3329 = vadd.f32 %v3061, %v3287
      %v3335 = vrot.slane %v2520, 5
      %v3336 = vrot.slane %v3335, 4
      %v3337 = vrot.slane %v1116, 5
      %v3338 = vsel %vm2573, %v3336, %v3337
      %v3339 = vrot.slane %v3337, 4
      %v3340 = vrot.slane %v1117, 5
      %v3341 = vsel %vm2573, %v3339, %v3340
      %v3342 = vrot.slane %v3340, 4
      %v3343 = vrot.slane %v1118, 5
      %v3344 = vsel %vm2573, %v3342, %v3343
      %v3345 = vrot.slane %v3343, 4
      %v3346 = vrot.slane %v1119, 5
      %v3347 = vsel %vm2573, %v3345, %v3346
      %s3348 = scalar_lea.vmem %s1, 16
      %v3349 = vld [vmem:[%s3348] sm:$0x3]
      %v3350 = vunpack.c.l.b16 %v3338
      %v3351 = vunpack.c.l.b16 %v3341
      %v3352 = vunpack.c.l.b16 %v3344
      %v3353 = vunpack.c.l.b16 %v3347
      %v3354 = vpack.c.b16 %v3351, %v3350
      %v3355 = vpack.c.b16 %v3353, %v3352
      %v3357 = vsel %vm336, %v3354, 0
      %v3360 = vsel %vm336, %v3355, 0
      %v3363 = vsel %vm397, %v3349, 0
      %3365 = vmatprep.subr.bf16.mxu0 0
      %3366 = vmatpush1.bf16.msra.mxu0 0
      %3367 = vmatprep.subr.bf16.mxu0 0
      %3368 = vmatpush1.bf16.msra.mxu0 0
      %3369 = vmatprep.subr.bf16.mxu0 0
      %3370 = vmatpush1.bf16.msra.mxu0 0
      %3371 = vmatprep.subr.bf16.mxu0 0
      %3372 = vmatpush1.bf16.msra.mxu0 0
      %3373 = vmatprep.subr.bf16.mxu0 0
      %3374 = vmatpush1.bf16.msra.mxu0 0
      %3375 = vmatprep.subr.bf16.mxu0 0
      %3376 = vmatpush1.bf16.msra.mxu0 0
      %3377 = vmatprep.subr.bf16.mxu0 0
      %3378 = vmatpush1.bf16.msra.mxu0 0
      %3379 = vmatprep.subr.bf16.mxu0 0
      %3380 = vmatpush1.bf16.msra.mxu0 %v3363
      %3381 = vmatprep.subr.bf16.mxu0 0
      %3382 = vmatpush2.bf16.msra.mxu0 0
      %3383 = vmatprep.subr.bf16.mxu0 0
      %3384 = vmatpush2.bf16.msra.mxu0 0
      %3385 = vmatprep.subr.bf16.mxu0 0
      %3386 = vmatpush2.bf16.msra.mxu0 0
      %3387 = vmatprep.subr.bf16.mxu0 0
      %3388 = vmatpush2.bf16.msra.mxu0 0
      %3389 = vmatprep.subr.bf16.mxu0 0
      %3390 = vmatpush2.bf16.msra.mxu0 0
      %3391 = vmatprep.subr.bf16.mxu0 0
      %3392 = vmatpush2.bf16.msra.mxu0 0
      %3393 = vmatprep.subr.bf16.mxu0 0
      %3394 = vmatpush2.bf16.msra.mxu0 0
      %3395 = vmatprep.subr.bf16.mxu0 0
      %3396 = vmatpush2.bf16.msra.mxu0 0
      %3397 = vmatprep.mubr.bf16.mxu0 0
      %3398 = vmatmul.mubr.bf16.gmra.mxu0 %v2779
      %v3399 = vpop.f32.mrf.mxu0
      %v3400 = vadd.f32 0.0, %v3399
      %v3401 = vpop.f32.mrf.mxu0
      %v3402 = vpop.f32.mrf.mxu0
      %v3403 = vadd.f32 0.0, %v3402
      %v3404 = vpop.f32.mrf.mxu0
      %3405 = vmatprep.mubr.bf16.mxu0 0
      %3406 = vmatmul.mubr.bf16.gmra.mxu0 %v2782
      %v3407 = vpop.f32.mrf.mxu0
      %v3408 = vadd.f32 0.0, %v3407
      %v3409 = vpop.f32.mrf.mxu0
      %v3410 = vpop.f32.mrf.mxu0
      %v3411 = vadd.f32 0.0, %v3410
      %v3412 = vpop.f32.mrf.mxu0
      %3413 = vmatprep.mubr.bf16.mxu0 0
      %3414 = vmatmul.mubr.bf16.gmra.mxu0 %v2785
      %v3415 = vpop.f32.mrf.mxu0
      %v3416 = vadd.f32 0.0, %v3415
      %v3417 = vpop.f32.mrf.mxu0
      %v3418 = vpop.f32.mrf.mxu0
      %v3419 = vadd.f32 0.0, %v3418
      %v3420 = vpop.f32.mrf.mxu0
      %3421 = vmatprep.mubr.bf16.mxu0 0
      %3422 = vmatmul.mubr.bf16.gmra.mxu0 %v2788
      %v3423 = vpop.f32.mrf.mxu0
      %v3424 = vadd.f32 0.0, %v3423
      %v3425 = vpop.f32.mrf.mxu0
      %v3426 = vpop.f32.mrf.mxu0
      %v3427 = vadd.f32 0.0, %v3426
      %v3428 = vpop.f32.mrf.mxu0
      %3429 = vmatprep.mubr.bf16.mxu0 0
      %3430 = vmatmul.mubr.bf16.gmra.mxu0 %v2791
      %v3431 = vpop.f32.mrf.mxu0
      %v3432 = vadd.f32 0.0, %v3431
      %v3433 = vpop.f32.mrf.mxu0
      %v3434 = vpop.f32.mrf.mxu0
      %v3435 = vadd.f32 0.0, %v3434
      %v3436 = vpop.f32.mrf.mxu0
      %3437 = vmatprep.mubr.bf16.mxu0 0
      %3438 = vmatmul.mubr.bf16.gmra.mxu0 %v2794
      %v3439 = vpop.f32.mrf.mxu0
      %v3440 = vadd.f32 0.0, %v3439
      %v3441 = vpop.f32.mrf.mxu0
      %v3442 = vpop.f32.mrf.mxu0
      %v3443 = vadd.f32 0.0, %v3442
      %v3444 = vpop.f32.mrf.mxu0
      %3445 = vmatprep.mubr.bf16.mxu0 0
      %3446 = vmatmul.mubr.bf16.gmra.mxu0 %v2797
      %v3447 = vpop.f32.mrf.mxu0
      %v3448 = vadd.f32 0.0, %v3447
      %v3449 = vpop.f32.mrf.mxu0
      %v3450 = vpop.f32.mrf.mxu0
      %v3451 = vadd.f32 0.0, %v3450
      %v3452 = vpop.f32.mrf.mxu0
      %3453 = vmatprep.mubr.bf16.mxu0 0
      %3454 = vmatmul.mubr.bf16.gmra.mxu0 %v2800
      %v3455 = vpop.f32.mrf.mxu0
      %v3456 = vadd.f32 0.0, %v3455
      %v3457 = vpop.f32.mrf.mxu0
      %v3458 = vpop.f32.mrf.mxu0
      %v3459 = vadd.f32 0.0, %v3458
      %v3460 = vpop.f32.mrf.mxu0
      %3461 = vmatprep.mubr.bf16.mxu0 0
      %3462 = vmatmul.mubr.bf16.gmra.mxu0 %v2803
      %v3463 = vpop.f32.mrf.mxu0
      %v3464 = vadd.f32 0.0, %v3463
      %v3465 = vpop.f32.mrf.mxu0
      %v3466 = vpop.f32.mrf.mxu0
      %v3467 = vadd.f32 0.0, %v3466
      %v3468 = vpop.f32.mrf.mxu0
      %3469 = vmatprep.mubr.bf16.mxu0 0
      %3470 = vmatmul.mubr.bf16.gmra.mxu0 %v2806
      %v3471 = vpop.f32.mrf.mxu0
      %v3472 = vadd.f32 0.0, %v3471
      %v3473 = vpop.f32.mrf.mxu0
      %v3474 = vpop.f32.mrf.mxu0
      %v3475 = vadd.f32 0.0, %v3474
      %v3476 = vpop.f32.mrf.mxu0
      %3477 = vmatprep.mubr.bf16.mxu0 0
      %3478 = vmatmul.mubr.bf16.gmra.mxu0 %v2809
      %v3479 = vpop.f32.mrf.mxu0
      %v3480 = vadd.f32 0.0, %v3479
      %v3481 = vpop.f32.mrf.mxu0
      %v3482 = vpop.f32.mrf.mxu0
      %v3483 = vadd.f32 0.0, %v3482
      %v3484 = vpop.f32.mrf.mxu0
      %3485 = vmatprep.mubr.bf16.mxu0 0
      %3486 = vmatmul.mubr.bf16.gmra.mxu0 %v2812
      %v3487 = vpop.f32.mrf.mxu0
      %v3488 = vadd.f32 0.0, %v3487
      %v3489 = vpop.f32.mrf.mxu0
      %v3490 = vpop.f32.mrf.mxu0
      %v3491 = vadd.f32 0.0, %v3490
      %v3492 = vpop.f32.mrf.mxu0
      %3493 = vmatprep.mubr.bf16.mxu0 0
      %3494 = vmatmul.mubr.bf16.gmra.mxu0 %v2815
      %v3495 = vpop.f32.mrf.mxu0
      %v3496 = vadd.f32 0.0, %v3495
      %v3497 = vpop.f32.mrf.mxu0
      %v3498 = vpop.f32.mrf.mxu0
      %v3499 = vadd.f32 0.0, %v3498
      %v3500 = vpop.f32.mrf.mxu0
      %3501 = vmatprep.mubr.bf16.mxu0 0
      %3502 = vmatmul.mubr.bf16.gmra.mxu0 %v2818
      %v3503 = vpop.f32.mrf.mxu0
      %v3504 = vadd.f32 0.0, %v3503
      %v3505 = vpop.f32.mrf.mxu0
      %v3506 = vpop.f32.mrf.mxu0
      %v3507 = vadd.f32 0.0, %v3506
      %v3508 = vpop.f32.mrf.mxu0
      %3509 = vmatprep.mubr.bf16.mxu0 0
      %3510 = vmatmul.mubr.bf16.gmra.mxu0 %v2821
      %v3511 = vpop.f32.mrf.mxu0
      %v3512 = vadd.f32 0.0, %v3511
      %v3513 = vpop.f32.mrf.mxu0
      %v3514 = vpop.f32.mrf.mxu0
      %v3515 = vadd.f32 0.0, %v3514
      %v3516 = vpop.f32.mrf.mxu0
      %3517 = vmatprep.mubr.bf16.mxu0 0
      %3518 = vmatmul.mubr.bf16.gmra.mxu0 %v2824
      %v3519 = vpop.f32.mrf.mxu0
      %v3520 = vadd.f32 0.0, %v3519
      %v3521 = vpop.f32.mrf.mxu0
      %v3522 = vpop.f32.mrf.mxu0
      %v3523 = vadd.f32 0.0, %v3522
      %v3524 = vpop.f32.mrf.mxu0
      %3525 = vmatprep.mubr.bf16.mxu0 0
      %3526 = vmatmul.mubr.bf16.gmra.mxu0 %v3089
      %v3527 = vpop.f32.mrf.mxu0
      %v3528 = vadd.f32 0.0, %v3527
      %v3529 = vpop.f32.mrf.mxu0
      %v3530 = vpop.f32.mrf.mxu0
      %v3531 = vadd.f32 0.0, %v3530
      %v3532 = vpop.f32.mrf.mxu0
      %3533 = vmatprep.mubr.bf16.mxu0 0
      %3534 = vmatmul.mubr.bf16.gmra.mxu0 %v3092
      %v3535 = vpop.f32.mrf.mxu0
      %v3536 = vadd.f32 0.0, %v3535
      %v3537 = vpop.f32.mrf.mxu0
      %v3538 = vpop.f32.mrf.mxu0
      %v3539 = vadd.f32 0.0, %v3538
      %v3540 = vpop.f32.mrf.mxu0
      %3541 = vmatprep.mubr.bf16.mxu0 0
      %3542 = vmatmul.mubr.bf16.gmra.mxu0 %v3357
      %v3543 = vpop.f32.mrf.mxu0
      %v3544 = vadd.f32 0.0, %v3543
      %v3545 = vpop.f32.mrf.mxu0
      %v3546 = vpop.f32.mrf.mxu0
      %v3547 = vadd.f32 0.0, %v3546
      %v3548 = vpop.f32.mrf.mxu0
      %3549 = vmatprep.mubr.bf16.mxu0 0
      %3550 = vmatmul.mubr.bf16.gmra.mxu0 %v3360
      %v3551 = vpop.f32.mrf.mxu0
      %v3552 = vadd.f32 0.0, %v3551
      %v3553 = vpop.f32.mrf.mxu0
      %v3554 = vpop.f32.mrf.mxu0
      %v3555 = vadd.f32 0.0, %v3554
      %v3556 = vpop.f32.mrf.mxu0
      %3557 = vdwg.mxu0
      %v3558 = vadd.f32 %v3290, %v3400
      %v3559 = vadd.f32 %v3291, %v3403
      %v3560 = vadd.f32 %v3292, %v3408
      %v3561 = vadd.f32 %v3293, %v3411
      %v3562 = vadd.f32 %v3294, %v3416
      %v3563 = vadd.f32 %v3295, %v3419
      %v3564 = vadd.f32 %v3296, %v3424
      %v3565 = vadd.f32 %v3297, %v3427
      %v3566 = vadd.f32 %v3298, %v3432
      %v3567 = vadd.f32 %v3299, %v3435
      %v3568 = vadd.f32 %v3300, %v3440
      %v3569 = vadd.f32 %v3301, %v3443
      %v3570 = vadd.f32 %v3302, %v3448
      %v3571 = vadd.f32 %v3303, %v3451
      %v3572 = vadd.f32 %v3304, %v3456
      %v3573 = vadd.f32 %v3305, %v3459
      %v3574 = vadd.f32 %v3306, %v3464
      %v3575 = vadd.f32 %v3307, %v3467
      %v3576 = vadd.f32 %v3308, %v3472
      %v3577 = vadd.f32 %v3309, %v3475
      %v3578 = vadd.f32 %v3310, %v3480
      %v3579 = vadd.f32 %v3311, %v3483
      %v3580 = vadd.f32 %v3312, %v3488
      %v3581 = vadd.f32 %v3313, %v3491
      %v3582 = vadd.f32 %v3314, %v3496
      %v3583 = vadd.f32 %v3315, %v3499
      %v3584 = vadd.f32 %v3316, %v3504
      %v3585 = vadd.f32 %v3317, %v3507
      %v3586 = vadd.f32 %v3318, %v3512
      %v3587 = vadd.f32 %v3319, %v3515
      %v3588 = vadd.f32 %v3320, %v3520
      %v3589 = vadd.f32 %v3321, %v3523
      %v3590 = vadd.f32 %v3322, %v3528
      %v3591 = vadd.f32 %v3323, %v3531
      %v3592 = vadd.f32 %v3324, %v3536
      %v3593 = vadd.f32 %v3325, %v3539
      %v3594 = vadd.f32 %v3326, %v3544
      %v3595 = vadd.f32 %v3327, %v3547
      %v3596 = vadd.f32 %v3328, %v3552
      %v3597 = vadd.f32 %v3329, %v3555
      %v3598 = vmax.f32 %v3558, 0.0
      %v3599 = vmax.f32 %v3559, 0.0
      %v3600 = vmax.f32 %v3560, 0.0
      %v3601 = vmax.f32 %v3561, 0.0
      %v3602 = vmax.f32 %v3562, 0.0
      %v3603 = vmax.f32 %v3563, 0.0
      %v3604 = vmax.f32 %v3564, 0.0
      %v3605 = vmax.f32 %v3565, 0.0
      %v3606 = vmax.f32 %v3566, 0.0
      %v3607 = vmax.f32 %v3567, 0.0
      %v3608 = vmax.f32 %v3568, 0.0
      %v3609 = vmax.f32 %v3569, 0.0
      %v3610 = vmax.f32 %v3570, 0.0
      %v3611 = vmax.f32 %v3571, 0.0
      %v3612 = vmax.f32 %v3572, 0.0
      %v3613 = vmax.f32 %v3573, 0.0
      %v3614 = vmax.f32 %v3574, 0.0
      %v3615 = vmax.f32 %v3575, 0.0
      %v3616 = vmax.f32 %v3576, 0.0
      %v3617 = vmax.f32 %v3577, 0.0
      %v3618 = vmax.f32 %v3578, 0.0
      %v3619 = vmax.f32 %v3579, 0.0
      %v3620 = vmax.f32 %v3580, 0.0
      %v3621 = vmax.f32 %v3581, 0.0
      %v3622 = vmax.f32 %v3582, 0.0
      %v3623 = vmax.f32 %v3583, 0.0
      %v3624 = vmax.f32 %v3584, 0.0
      %v3625 = vmax.f32 %v3585, 0.0
      %v3626 = vmax.f32 %v3586, 0.0
      %v3627 = vmax.f32 %v3587, 0.0
      %v3628 = vmax.f32 %v3588, 0.0
      %v3629 = vmax.f32 %v3589, 0.0
      %v3630 = vmax.f32 %v3590, 0.0
      %v3631 = vmax.f32 %v3591, 0.0
      %v3632 = vmax.f32 %v3592, 0.0
      %v3633 = vmax.f32 %v3593, 0.0
      %v3634 = vmax.f32 %v3594, 0.0
      %v3635 = vmax.f32 %v3595, 0.0
      %v3636 = vmax.f32 %v3596, 0.0
      %v3637 = vmax.f32 %v3597, 0.0
      %v3638 = vlaneseq
      %v3639 = vshrl.u32 %v3638, 7
      %v3640 = vadd.s32 %v3639, 8
      %v3641 = vadd.s32 %v3639, 16
      %v3642 = vadd.s32 %v3639, 24
      %s3643 = ssub.s32 %s184, 1
      %v3644 = vstv %s3643
      %v3645 = vadd.s32 %v3644, 1
      %v3646 = vadd.s32 %v3644, 2
      %v3647 = vadd.s32 %v3644, 3
      %v3648 = vadd.s32 %v3644, 4
      %v3649 = vadd.s32 %v3644, 5
      %v3650 = vadd.s32 %v3644, 6
      %v3651 = vadd.s32 %v3644, 7
      %v3652 = vadd.s32 %v3644, 8
      %v3653 = vadd.s32 %v3644, 9
      %v3654 = vsub.s32 %v3639, 1
      %v3655 = vsub.s32 %v3640, 1
      %v3656 = vsub.s32 %v3641, 1
      %v3657 = vsub.s32 %v3642, 1
      %vm3658 = vcmp.ge.s32.totalorder %v3644, 0
      %vm3659 = vcmp.ge.s32.totalorder %v3645, 0
      %vm3660 = vcmp.ge.s32.totalorder %v3646, 0
      %vm3661 = vcmp.ge.s32.totalorder %v3647, 0
      %vm3662 = vcmp.ge.s32.totalorder %v3648, 0
      %vm3663 = vcmp.ge.s32.totalorder %v3649, 0
      %vm3664 = vcmp.ge.s32.totalorder %v3650, 0
      %vm3665 = vcmp.ge.s32.totalorder %v3651, 0
      %vm3666 = vcmp.ge.s32.totalorder %v3652, 0
      %vm3667 = vcmp.ge.s32.totalorder %v3653, 0
      %vm3668 = vcmp.lt.s32.totalorder %v3644, 16
      %vm3669 = vcmp.lt.s32.totalorder %v3645, 16
      %vm3670 = vcmp.lt.s32.totalorder %v3646, 16
      %vm3671 = vcmp.lt.s32.totalorder %v3647, 16
      %vm3672 = vcmp.lt.s32.totalorder %v3648, 16
      %vm3673 = vcmp.lt.s32.totalorder %v3649, 16
      %vm3674 = vcmp.lt.s32.totalorder %v3650, 16
      %vm3675 = vcmp.lt.s32.totalorder %v3651, 16
      %vm3676 = vcmp.lt.s32.totalorder %v3652, 16
      %vm3677 = vcmp.lt.s32.totalorder %v3653, 16
      %vm3678 = vmand %vm3658, %vm3668
      %vm3679 = vmand %vm3659, %vm3669
      %vm3680 = vmand %vm3660, %vm3670
      %vm3681 = vmand %vm3661, %vm3671
      %vm3682 = vmand %vm3662, %vm3672
      %vm3683 = vmand %vm3663, %vm3673
      %vm3684 = vmand %vm3664, %vm3674
      %vm3685 = vmand %vm3665, %vm3675
      %vm3686 = vmand %vm3666, %vm3676
      %vm3687 = vmand %vm3667, %vm3677
      %vm3688 = vcmp.ge.s32.totalorder %v3654, 0
      %vm3689 = vcmp.ge.s32.totalorder %v3655, 0
      %vm3690 = vcmp.ge.s32.totalorder %v3656, 0
      %vm3691 = vcmp.ge.s32.totalorder %v3657, 0
      %vm3692 = vmand %vm3678, %vm3688
      %vm3693 = vmand %vm3678, %vm3689
      %vm3694 = vmand %vm3678, %vm3690
      %vm3695 = vmand %vm3678, %vm3691
      %vm3696 = vmand %vm3679, %vm3688
      %vm3697 = vmand %vm3679, %vm3689
      %vm3698 = vmand %vm3679, %vm3690
      %vm3699 = vmand %vm3679, %vm3691
      %vm3700 = vmand %vm3680, %vm3688
      %vm3701 = vmand %vm3680, %vm3689
      %vm3702 = vmand %vm3680, %vm3690
      %vm3703 = vmand %vm3680, %vm3691
      %vm3704 = vmand %vm3681, %vm3688
      %vm3705 = vmand %vm3681, %vm3689
      %vm3706 = vmand %vm3681, %vm3690
      %vm3707 = vmand %vm3681, %vm3691
      %vm3708 = vmand %vm3682, %vm3688
      %vm3709 = vmand %vm3682, %vm3689
      %vm3710 = vmand %vm3682, %vm3690
      %vm3711 = vmand %vm3682, %vm3691
      %vm3712 = vmand %vm3683, %vm3688
      %vm3713 = vmand %vm3683, %vm3689
      %vm3714 = vmand %vm3683, %vm3690
      %vm3715 = vmand %vm3683, %vm3691
      %vm3716 = vmand %vm3684, %vm3688
      %vm3717 = vmand %vm3684, %vm3689
      %vm3718 = vmand %vm3684, %vm3690
      %vm3719 = vmand %vm3684, %vm3691
      %vm3720 = vmand %vm3685, %vm3688
      %vm3721 = vmand %vm3685, %vm3689
      %vm3722 = vmand %vm3685, %vm3690
      %vm3723 = vmand %vm3685, %vm3691
      %vm3724 = vmand %vm3686, %vm3688
      %vm3725 = vmand %vm3686, %vm3689
      %vm3726 = vmand %vm3686, %vm3690
      %vm3727 = vmand %vm3686, %vm3691
      %vm3728 = vmand %vm3687, %vm3688
      %vm3729 = vmand %vm3687, %vm3689
      %vm3730 = vmand %vm3687, %vm3690
      %vm3731 = vmand %vm3687, %vm3691
      %vm3732 = vcmp.lt.s32.totalorder %v3654, 16
      %vm3733 = vcmp.lt.s32.totalorder %v3655, 16
      %vm3734 = vcmp.lt.s32.totalorder %v3656, 16
      %vm3735 = vcmp.lt.s32.totalorder %v3657, 16
      %vm3736 = vmand %vm3692, %vm3732
      %vm3737 = vmand %vm3693, %vm3733
      %vm3738 = vmand %vm3694, %vm3734
      %vm3739 = vmand %vm3695, %vm3735
      %vm3740 = vmand %vm3696, %vm3732
      %vm3741 = vmand %vm3697, %vm3733
      %vm3742 = vmand %vm3698, %vm3734
      %vm3743 = vmand %vm3699, %vm3735
      %vm3744 = vmand %vm3700, %vm3732
      %vm3745 = vmand %vm3701, %vm3733
      %vm3746 = vmand %vm3702, %vm3734
      %vm3747 = vmand %vm3703, %vm3735
      %vm3748 = vmand %vm3704, %vm3732
      %vm3749 = vmand %vm3705, %vm3733
      %vm3750 = vmand %vm3706, %vm3734
      %vm3751 = vmand %vm3707, %vm3735
      %vm3752 = vmand %vm3708, %vm3732
      %vm3753 = vmand %vm3709, %vm3733
      %vm3754 = vmand %vm3710, %vm3734
      %vm3755 = vmand %vm3711, %vm3735
      %vm3756 = vmand %vm3712, %vm3732
      %vm3757 = vmand %vm3713, %vm3733
      %vm3758 = vmand %vm3714, %vm3734
      %vm3759 = vmand %vm3715, %vm3735
      %vm3760 = vmand %vm3716, %vm3732
      %vm3761 = vmand %vm3717, %vm3733
      %vm3762 = vmand %vm3718, %vm3734
      %vm3763 = vmand %vm3719, %vm3735
      %vm3764 = vmand %vm3720, %vm3732
      %vm3765 = vmand %vm3721, %vm3733
      %vm3766 = vmand %vm3722, %vm3734
      %vm3767 = vmand %vm3723, %vm3735
      %vm3768 = vmand %vm3724, %vm3732
      %vm3769 = vmand %vm3725, %vm3733
      %vm3770 = vmand %vm3726, %vm3734
      %vm3771 = vmand %vm3727, %vm3735
      %vm3772 = vmand %vm3728, %vm3732
      %vm3773 = vmand %vm3729, %vm3733
      %vm3774 = vmand %vm3730, %vm3734
      %vm3775 = vmand %vm3731, %vm3735
      %v3776 = vsel %vm3736, %v3598, 0.0
      %v3777 = vsel %vm3737, %v3599, 0.0
      %v3778 = vsel %vm3738, %v3600, 0.0
      %v3779 = vsel %vm3739, %v3601, 0.0
      %v3780 = vsel %vm3740, %v3602, 0.0
      %v3781 = vsel %vm3741, %v3603, 0.0
      %v3782 = vsel %vm3742, %v3604, 0.0
      %v3783 = vsel %vm3743, %v3605, 0.0
      %v3784 = vsel %vm3744, %v3606, 0.0
      %v3785 = vsel %vm3745, %v3607, 0.0
      %v3786 = vsel %vm3746, %v3608, 0.0
      %v3787 = vsel %vm3747, %v3609, 0.0
      %v3788 = vsel %vm3748, %v3610, 0.0
      %v3789 = vsel %vm3749, %v3611, 0.0
      %v3790 = vsel %vm3750, %v3612, 0.0
      %v3791 = vsel %vm3751, %v3613, 0.0
      %v3792 = vsel %vm3752, %v3614, 0.0
      %v3793 = vsel %vm3753, %v3615, 0.0
      %v3794 = vsel %vm3754, %v3616, 0.0
      %v3795 = vsel %vm3755, %v3617, 0.0
      %v3796 = vsel %vm3756, %v3618, 0.0
      %v3797 = vsel %vm3757, %v3619, 0.0
      %v3798 = vsel %vm3758, %v3620, 0.0
      %v3799 = vsel %vm3759, %v3621, 0.0
      %v3800 = vsel %vm3760, %v3622, 0.0
      %v3801 = vsel %vm3761, %v3623, 0.0
      %v3802 = vsel %vm3762, %v3624, 0.0
      %v3803 = vsel %vm3763, %v3625, 0.0
      %v3804 = vsel %vm3764, %v3626, 0.0
      %v3805 = vsel %vm3765, %v3627, 0.0
      %v3806 = vsel %vm3766, %v3628, 0.0
      %v3807 = vsel %vm3767, %v3629, 0.0
      %v3808 = vsel %vm3768, %v3630, 0.0
      %v3809 = vsel %vm3769, %v3631, 0.0
      %v3810 = vsel %vm3770, %v3632, 0.0
      %v3811 = vsel %vm3771, %v3633, 0.0
      %v3812 = vsel %vm3772, %v3634, 0.0
      %v3813 = vsel %vm3773, %v3635, 0.0
      %v3814 = vsel %vm3774, %v3636, 0.0
      %v3815 = vsel %vm3775, %v3637, 0.0
      %v3816 = vpack.c.bf16 %v3777, %v3776
      %v3817 = vpack.c.bf16 %v3779, %v3778
      %v3818 = vpack.c.bf16 %v3781, %v3780
      %v3819 = vpack.c.bf16 %v3783, %v3782
      %v3820 = vpack.c.bf16 %v3785, %v3784
      %v3821 = vpack.c.bf16 %v3787, %v3786
      %v3822 = vpack.c.bf16 %v3789, %v3788
      %v3823 = vpack.c.bf16 %v3791, %v3790
      %v3824 = vpack.c.bf16 %v3793, %v3792
      %v3825 = vpack.c.bf16 %v3795, %v3794
      %v3826 = vpack.c.bf16 %v3797, %v3796
      %v3827 = vpack.c.bf16 %v3799, %v3798
      %v3828 = vpack.c.bf16 %v3801, %v3800
      %v3829 = vpack.c.bf16 %v3803, %v3802
      %v3830 = vpack.c.bf16 %v3805, %v3804
      %v3831 = vpack.c.bf16 %v3807, %v3806
      %v3832 = vpack.c.bf16 %v3809, %v3808
      %v3833 = vpack.c.bf16 %v3811, %v3810
      %v3834 = vpack.c.bf16 %v3813, %v3812
      %v3835 = vpack.c.bf16 %v3815, %v3814
      %v3856 = vunpack.c.l.b16 %v3816
      %v3857 = vunpack.c.h.b16 %v3816
      %v3858 = vunpack.c.l.b16 %v3817
      %v3859 = vunpack.c.h.b16 %v3817
      %v3860 = vunpack.c.l.b16 %v3818
      %v3861 = vunpack.c.h.b16 %v3818
      %v3862 = vunpack.c.l.b16 %v3819
      %v3863 = vunpack.c.h.b16 %v3819
      %v3864 = vunpack.c.l.b16 %v3820
      %v3865 = vunpack.c.h.b16 %v3820
      %v3866 = vunpack.c.l.b16 %v3821
      %v3867 = vunpack.c.h.b16 %v3821
      %v3868 = vunpack.c.l.b16 %v3822
      %v3869 = vunpack.c.h.b16 %v3822
      %v3870 = vunpack.c.l.b16 %v3823
      %v3871 = vunpack.c.h.b16 %v3823
      %v3872 = vunpack.c.l.b16 %v3824
      %v3873 = vunpack.c.h.b16 %v3824
      %v3874 = vunpack.c.l.b16 %v3825
      %v3875 = vunpack.c.h.b16 %v3825
      %v3876 = vunpack.c.l.b16 %v3826
      %v3877 = vunpack.c.h.b16 %v3826
      %v3878 = vunpack.c.l.b16 %v3827
      %v3879 = vunpack.c.h.b16 %v3827
      %v3880 = vunpack.c.l.b16 %v3828
      %v3881 = vunpack.c.h.b16 %v3828
      %v3882 = vunpack.c.l.b16 %v3829
      %v3883 = vunpack.c.h.b16 %v3829
      %v3884 = vunpack.c.l.b16 %v3830
      %v3885 = vunpack.c.h.b16 %v3830
      %v3886 = vunpack.c.l.b16 %v3831
      %v3887 = vunpack.c.h.b16 %v3831
      %v3888 = vunpack.c.l.b16 %v3832
      %v3889 = vunpack.c.h.b16 %v3832
      %v3890 = vunpack.c.l.b16 %v3833
      %v3891 = vunpack.c.h.b16 %v3833
      %v3892 = vunpack.c.l.b16 %v3834
      %v3893 = vunpack.c.h.b16 %v3834
      %v3894 = vunpack.c.l.b16 %v3835
      %v3895 = vunpack.c.h.b16 %v3835
      %v3896 = vpack.c.b16 %v3856, %v3856
      %v3897 = vpack.c.b16 %v3857, %v3857
      %v3898 = vpack.c.b16 %v3858, %v3858
      %v3899 = vpack.c.b16 %v3859, %v3859
      %v3900 = vpack.c.b16 %v3860, %v3860
      %v3901 = vpack.c.b16 %v3861, %v3861
      %v3902 = vpack.c.b16 %v3862, %v3862
      %v3903 = vpack.c.b16 %v3863, %v3863
      %v3904 = vpack.c.b16 %v3864, %v3864
      %v3905 = vpack.c.b16 %v3865, %v3865
      %v3906 = vpack.c.b16 %v3866, %v3866
      %v3907 = vpack.c.b16 %v3867, %v3867
      %v3908 = vpack.c.b16 %v3868, %v3868
      %v3909 = vpack.c.b16 %v3869, %v3869
      %v3910 = vpack.c.b16 %v3870, %v3870
      %v3911 = vpack.c.b16 %v3871, %v3871
      %v3912 = vpack.c.b16 %v3872, %v3872
      %v3913 = vpack.c.b16 %v3873, %v3873
      %v3914 = vpack.c.b16 %v3874, %v3874
      %v3915 = vpack.c.b16 %v3875, %v3875
      %v3916 = vpack.c.b16 %v3876, %v3876
      %v3917 = vpack.c.b16 %v3877, %v3877
      %v3918 = vpack.c.b16 %v3878, %v3878
      %v3919 = vpack.c.b16 %v3879, %v3879
      %v3920 = vpack.c.b16 %v3880, %v3880
      %v3921 = vpack.c.b16 %v3881, %v3881
      %v3922 = vpack.c.b16 %v3882, %v3882
      %v3923 = vpack.c.b16 %v3883, %v3883
      %v3924 = vpack.c.b16 %v3884, %v3884
      %v3925 = vpack.c.b16 %v3885, %v3885
      %v3926 = vpack.c.b16 %v3886, %v3886
      %v3927 = vpack.c.b16 %v3887, %v3887
      %v3928 = vpack.c.b16 %v3888, %v3888
      %v3929 = vpack.c.b16 %v3889, %v3889
      %v3930 = vpack.c.b16 %v3890, %v3890
      %v3931 = vpack.c.b16 %v3891, %v3891
      %v3932 = vpack.c.b16 %v3892, %v3892
      %v3933 = vpack.c.b16 %v3893, %v3893
      %v3934 = vpack.c.b16 %v3894, %v3894
      %v3935 = vpack.c.b16 %v3895, %v3895
      %vm3976 = vcmask 60416
      %3977 = vst.msk [vmem:[#allocation2] sm:$0xf] %vm3976, %v3896
      %3978 = vst.msk [vmem:[#allocation2 + $0x4] sm:$0xf] %vm3976, %v3897
      %3979 = vst.msk [vmem:[#allocation2 + $0x8] sm:$0xf] %vm3976, %v3898
      %3980 = vst.msk [vmem:[#allocation2 + $0xc] sm:$0xf] %vm3976, %v3899
      %3981 = vst.msk [vmem:[#allocation2 + $0x10] sm:$0xf] %vm3976, %v3900
      %3982 = vst.msk [vmem:[#allocation2 + $0x14] sm:$0xf] %vm3976, %v3901
      %3983 = vst.msk [vmem:[#allocation2 + $0x18] sm:$0xf] %vm3976, %v3902
      %3984 = vst.msk [vmem:[#allocation2 + $0x1c] sm:$0xf] %vm3976, %v3903
      %3985 = vst.msk [vmem:[#allocation2 + $0x20] sm:$0xf] %vm3976, %v3904
      %3986 = vst.msk [vmem:[#allocation2 + $0x24] sm:$0xf] %vm3976, %v3905
      %3987 = vst.msk [vmem:[#allocation2 + $0x28] sm:$0xf] %vm3976, %v3906
      %3988 = vst.msk [vmem:[#allocation2 + $0x2c] sm:$0xf] %vm3976, %v3907
      %3989 = vst.msk [vmem:[#allocation2 + $0x30] sm:$0xf] %vm3976, %v3908
      %3990 = vst.msk [vmem:[#allocation2 + $0x34] sm:$0xf] %vm3976, %v3909
      %3991 = vst.msk [vmem:[#allocation2 + $0x38] sm:$0xf] %vm3976, %v3910
      %3992 = vst.msk [vmem:[#allocation2 + $0x3c] sm:$0xf] %vm3976, %v3911
      %3993 = vst.msk [vmem:[#allocation2 + $0x40] sm:$0xf] %vm3976, %v3912
      %3994 = vst.msk [vmem:[#allocation2 + $0x44] sm:$0xf] %vm3976, %v3913
      %3995 = vst.msk [vmem:[#allocation2 + $0x48] sm:$0xf] %vm3976, %v3914
      %3996 = vst.msk [vmem:[#allocation2 + $0x4c] sm:$0xf] %vm3976, %v3915
      %3997 = vst.msk [vmem:[#allocation2 + $0x50] sm:$0xf] %vm3976, %v3916
      %3998 = vst.msk [vmem:[#allocation2 + $0x54] sm:$0xf] %vm3976, %v3917
      %3999 = vst.msk [vmem:[#allocation2 + $0x58] sm:$0xf] %vm3976, %v3918
      %4000 = vst.msk [vmem:[#allocation2 + $0x5c] sm:$0xf] %vm3976, %v3919
      %4001 = vst.msk [vmem:[#allocation2 + $0x60] sm:$0xf] %vm3976, %v3920
      %4002 = vst.msk [vmem:[#allocation2 + $0x64] sm:$0xf] %vm3976, %v3921
      %4003 = vst.msk [vmem:[#allocation2 + $0x68] sm:$0xf] %vm3976, %v3922
      %4004 = vst.msk [vmem:[#allocation2 + $0x6c] sm:$0xf] %vm3976, %v3923
      %4005 = vst.msk [vmem:[#allocation2 + $0x70] sm:$0xf] %vm3976, %v3924
      %4006 = vst.msk [vmem:[#allocation2 + $0x74] sm:$0xf] %vm3976, %v3925
      %4007 = vst.msk [vmem:[#allocation2 + $0x78] sm:$0xf] %vm3976, %v3926
      %4008 = vst.msk [vmem:[#allocation2 + $0x7c] sm:$0xf] %vm3976, %v3927
      %4009 = vst.msk [vmem:[#allocation2 + $0x80] sm:$0xf] %vm3976, %v3928
      %4010 = vst.msk [vmem:[#allocation2 + $0x84] sm:$0xf] %vm3976, %v3929
      %4011 = vst.msk [vmem:[#allocation2 + $0x88] sm:$0xf] %vm3976, %v3930
      %4012 = vst.msk [vmem:[#allocation2 + $0x8c] sm:$0xf] %vm3976, %v3931
      %4013 = vst.msk [vmem:[#allocation2 + $0x90] sm:$0xf] %vm3976, %v3932
      %4014 = vst.msk [vmem:[#allocation2 + $0x94] sm:$0xf] %vm3976, %v3933
      %4015 = vst.msk [vmem:[#allocation2 + $0x98] sm:$0xf] %vm3976, %v3934
      %4016 = vst.msk [vmem:[#allocation2 + $0x9c] sm:$0xf] %vm3976, %v3935
      %v4017 = vld [vmem:[#allocation2] sm:$0xf]
      %v4018 = vld [vmem:[#allocation2 + $0x4] sm:$0xf]
      %v4019 = vld [vmem:[#allocation2 + $0x10] sm:$0xf]
      %v4020 = vld [vmem:[#allocation2 + $0x14] sm:$0xf]
      %v4021 = vld [vmem:[#allocation2 + $0x20] sm:$0xf]
      %v4022 = vld [vmem:[#allocation2 + $0x24] sm:$0xf]
      %v4023 = vld [vmem:[#allocation2 + $0x30] sm:$0xf]
      %v4024 = vld [vmem:[#allocation2 + $0x34] sm:$0xf]
      %v4025 = vld [vmem:[#allocation2 + $0x40] sm:$0xf]
      %v4026 = vld [vmem:[#allocation2 + $0x44] sm:$0xf]
      %v4027 = vld [vmem:[#allocation2 + $0x50] sm:$0xf]
      %v4028 = vld [vmem:[#allocation2 + $0x54] sm:$0xf]
      %v4029 = vld [vmem:[#allocation2 + $0x60] sm:$0xf]
      %v4030 = vld [vmem:[#allocation2 + $0x64] sm:$0xf]
      %v4031 = vld [vmem:[#allocation2 + $0x70] sm:$0xf]
      %v4032 = vld [vmem:[#allocation2 + $0x74] sm:$0xf]
      %v4033 = vld [vmem:[#allocation2 + $0x80] sm:$0xf]
      %v4034 = vld [vmem:[#allocation2 + $0x84] sm:$0xf]
      %v4035 = vld [vmem:[#allocation2 + $0x90] sm:$0xf]
      %v4036 = vld [vmem:[#allocation2 + $0x94] sm:$0xf]
      %v4037 = vld [vmem:[%s2] sm:$0xf]
      %s4038 = scalar_lea.vmem %s2, 12
      %v4039 = vld [vmem:[%s4038] sm:$0xf]
      %v4056 = vunpack.c.l.b16 %v4019
      %v4057 = vunpack.c.l.b16 %v4020
      %v4058 = vunpack.c.l.b16 %v4021
      %v4059 = vunpack.c.l.b16 %v4022
      %v4060 = vunpack.c.l.b16 %v4023
      %v4061 = vunpack.c.l.b16 %v4024
      %v4062 = vunpack.c.l.b16 %v4025
      %v4063 = vunpack.c.l.b16 %v4026
      %v4064 = vunpack.c.l.b16 %v4027
      %v4065 = vunpack.c.l.b16 %v4028
      %v4066 = vunpack.c.l.b16 %v4029
      %v4067 = vunpack.c.l.b16 %v4030
      %v4068 = vunpack.c.l.b16 %v4031
      %v4069 = vunpack.c.l.b16 %v4032
      %v4070 = vunpack.c.l.b16 %v4033
      %v4071 = vunpack.c.l.b16 %v4034
      %v4072 = vpack.c.b16 %v4057, %v4056
      %v4073 = vpack.c.b16 %v4059, %v4058
      %v4074 = vpack.c.b16 %v4061, %v4060
      %v4075 = vpack.c.b16 %v4063, %v4062
      %v4076 = vpack.c.b16 %v4065, %v4064
      %v4077 = vpack.c.b16 %v4067, %v4066
      %v4078 = vpack.c.b16 %v4069, %v4068
      %v4079 = vpack.c.b16 %v4071, %v4070
      %vm4080 = vcmask 64512
      %v4082 = vsel %vm4080, %v4072, 0
      %v4085 = vsel %vm4080, %v4073, 0
      %v4088 = vsel %vm4080, %v4074, 0
      %v4091 = vsel %vm4080, %v4075, 0
      %v4094 = vsel %vm4080, %v4076, 0
      %v4097 = vsel %vm4080, %v4077, 0
      %v4100 = vsel %vm4080, %v4078, 0
      %v4103 = vsel %vm4080, %v4079, 0
      %vm4105 = vcmask 1043456
      %v4107 = vsel %vm4105, %v4039, 0
      %4109 = vmatprep.subr.bf16.mxu0 0
      %4110 = vmatpush1.bf16.msra.mxu0 0
      %4111 = vmatprep.subr.bf16.mxu0 0
      %4112 = vmatpush1.bf16.msra.mxu0 0
      %4113 = vmatprep.subr.bf16.mxu0 0
      %4114 = vmatpush1.bf16.msra.mxu0 0
      %4115 = vmatprep.subr.bf16.mxu0 0
      %4116 = vmatpush1.bf16.msra.mxu0 0
      %4117 = vmatprep.subr.bf16.mxu0 0
      %4118 = vmatpush1.bf16.msra.mxu0 0
      %4119 = vmatprep.subr.bf16.mxu0 0
      %4120 = vmatpush1.bf16.msra.mxu0 0
      %4121 = vmatprep.subr.bf16.mxu0 0
      %4122 = vmatpush1.bf16.msra.mxu0 0
      %4123 = vmatprep.subr.bf16.mxu0 0
      %4124 = vmatpush1.bf16.msra.mxu0 %v4107
      %4125 = vmatprep.subr.bf16.mxu0 0
      %4126 = vmatpush2.bf16.msra.mxu0 0
      %4127 = vmatprep.subr.bf16.mxu0 0
      %4128 = vmatpush2.bf16.msra.mxu0 0
      %4129 = vmatprep.subr.bf16.mxu0 0
      %4130 = vmatpush2.bf16.msra.mxu0 0
      %4131 = vmatprep.subr.bf16.mxu0 0
      %4132 = vmatpush2.bf16.msra.mxu0 0
      %4133 = vmatprep.subr.bf16.mxu0 0
      %4134 = vmatpush2.bf16.msra.mxu0 0
      %4135 = vmatprep.subr.bf16.mxu0 0
      %4136 = vmatpush2.bf16.msra.mxu0 0
      %4137 = vmatprep.subr.bf16.mxu0 0
      %4138 = vmatpush2.bf16.msra.mxu0 0
      %4139 = vmatprep.subr.bf16.mxu0 0
      %4140 = vmatpush2.bf16.msra.mxu0 0
      %4141 = vmatprep.mubr.bf16.mxu0 0
      %4142 = vmatmul.mubr.bf16.gmra.mxu0 %v4082
      %v4143 = vpop.f32.mrf.mxu0
      %v4144 = vadd.f32 0.0, %v4143
      %v4145 = vpop.f32.mrf.mxu0
      %v4146 = vpop.f32.mrf.mxu0
      %v4147 = vadd.f32 0.0, %v4146
      %v4148 = vpop.f32.mrf.mxu0
      %4149 = vmatprep.mubr.bf16.mxu0 0
      %4150 = vmatmul.mubr.bf16.gmra.mxu0 %v4085
      %v4151 = vpop.f32.mrf.mxu0
      %v4152 = vadd.f32 0.0, %v4151
      %v4153 = vpop.f32.mrf.mxu0
      %v4154 = vpop.f32.mrf.mxu0
      %v4155 = vadd.f32 0.0, %v4154
      %v4156 = vpop.f32.mrf.mxu0
      %4157 = vmatprep.mubr.bf16.mxu0 0
      %4158 = vmatmul.mubr.bf16.gmra.mxu0 %v4088
      %v4159 = vpop.f32.mrf.mxu0
      %v4160 = vadd.f32 0.0, %v4159
      %v4161 = vpop.f32.mrf.mxu0
      %v4162 = vpop.f32.mrf.mxu0
      %v4163 = vadd.f32 0.0, %v4162
      %v4164 = vpop.f32.mrf.mxu0
      %4165 = vmatprep.mubr.bf16.mxu0 0
      %4166 = vmatmul.mubr.bf16.gmra.mxu0 %v4091
      %v4167 = vpop.f32.mrf.mxu0
      %v4168 = vadd.f32 0.0, %v4167
      %v4169 = vpop.f32.mrf.mxu0
      %v4170 = vpop.f32.mrf.mxu0
      %v4171 = vadd.f32 0.0, %v4170
      %v4172 = vpop.f32.mrf.mxu0
      %4173 = vmatprep.mubr.bf16.mxu0 0
      %4174 = vmatmul.mubr.bf16.gmra.mxu0 %v4094
      %v4175 = vpop.f32.mrf.mxu0
      %v4176 = vadd.f32 0.0, %v4175
      %v4177 = vpop.f32.mrf.mxu0
      %v4178 = vpop.f32.mrf.mxu0
      %v4179 = vadd.f32 0.0, %v4178
      %v4180 = vpop.f32.mrf.mxu0
      %4181 = vmatprep.mubr.bf16.mxu0 0
      %4182 = vmatmul.mubr.bf16.gmra.mxu0 %v4097
      %v4183 = vpop.f32.mrf.mxu0
      %v4184 = vadd.f32 0.0, %v4183
      %v4185 = vpop.f32.mrf.mxu0
      %v4186 = vpop.f32.mrf.mxu0
      %v4187 = vadd.f32 0.0, %v4186
      %v4188 = vpop.f32.mrf.mxu0
      %4189 = vmatprep.mubr.bf16.mxu0 0
      %4190 = vmatmul.mubr.bf16.gmra.mxu0 %v4100
      %v4191 = vpop.f32.mrf.mxu0
      %v4192 = vadd.f32 0.0, %v4191
      %v4193 = vpop.f32.mrf.mxu0
      %v4194 = vpop.f32.mrf.mxu0
      %v4195 = vadd.f32 0.0, %v4194
      %v4196 = vpop.f32.mrf.mxu0
      %4197 = vmatprep.mubr.bf16.mxu0 0
      %4198 = vmatmul.mubr.bf16.gmra.mxu0 %v4103
      %v4199 = vpop.f32.mrf.mxu0
      %v4200 = vadd.f32 0.0, %v4199
      %v4201 = vpop.f32.mrf.mxu0
      %v4202 = vpop.f32.mrf.mxu0
      %v4203 = vadd.f32 0.0, %v4202
      %v4204 = vpop.f32.mrf.mxu0
      %4205 = vdwg.mxu0
      %v4208 = vunpack.c.l.b16 %v4017
      %v4209 = vunpack.c.l.b16 %v4018
      %v4210 = vpack.c.b16 %v4209, %v4208
      %v4212 = vsel %vm4080, %v4210, 0
      %v4215 = vsel %vm4105, %v4037, 0
      %4217 = vmatprep.subr.bf16.mxu0 0
      %4218 = vmatpush1.bf16.msra.mxu0 0
      %4219 = vmatprep.subr.bf16.mxu0 0
      %4220 = vmatpush1.bf16.msra.mxu0 0
      %4221 = vmatprep.subr.bf16.mxu0 0
      %4222 = vmatpush1.bf16.msra.mxu0 0
      %4223 = vmatprep.subr.bf16.mxu0 0
      %4224 = vmatpush1.bf16.msra.mxu0 0
      %4225 = vmatprep.subr.bf16.mxu0 0
      %4226 = vmatpush1.bf16.msra.mxu0 0
      %4227 = vmatprep.subr.bf16.mxu0 0
      %4228 = vmatpush1.bf16.msra.mxu0 0
      %4229 = vmatprep.subr.bf16.mxu0 0
      %4230 = vmatpush1.bf16.msra.mxu0 0
      %4231 = vmatprep.subr.bf16.mxu0 0
      %4232 = vmatpush1.bf16.msra.mxu0 %v4215
      %4233 = vmatprep.subr.bf16.mxu0 0
      %4234 = vmatpush2.bf16.msra.mxu0 0
      %4235 = vmatprep.subr.bf16.mxu0 0
      %4236 = vmatpush2.bf16.msra.mxu0 0
      %4237 = vmatprep.subr.bf16.mxu0 0
      %4238 = vmatpush2.bf16.msra.mxu0 0
      %4239 = vmatprep.subr.bf16.mxu0 0
      %4240 = vmatpush2.bf16.msra.mxu0 0
      %4241 = vmatprep.subr.bf16.mxu0 0
      %4242 = vmatpush2.bf16.msra.mxu0 0
      %4243 = vmatprep.subr.bf16.mxu0 0
      %4244 = vmatpush2.bf16.msra.mxu0 0
      %4245 = vmatprep.subr.bf16.mxu0 0
      %4246 = vmatpush2.bf16.msra.mxu0 0
      %4247 = vmatprep.subr.bf16.mxu0 0
      %4248 = vmatpush2.bf16.msra.mxu0 0
      %4249 = vmatprep.mubr.bf16.mxu0 0
      %4250 = vmatmul.mubr.bf16.gmra.mxu0 %v4212
      %v4251 = vpop.f32.mrf.mxu0
      %v4252 = vadd.f32 %v4144, %v4251
      %v4253 = vpop.f32.mrf.mxu0
      %v4254 = vpop.f32.mrf.mxu0
      %v4255 = vadd.f32 %v4147, %v4254
      %v4256 = vpop.f32.mrf.mxu0
      %4257 = vmatprep.mubr.bf16.mxu0 0
      %4258 = vmatmul.mubr.bf16.gmra.mxu0 %v4082
      %v4259 = vpop.f32.mrf.mxu0
      %v4260 = vadd.f32 %v4152, %v4259
      %v4261 = vpop.f32.mrf.mxu0
      %v4262 = vpop.f32.mrf.mxu0
      %v4263 = vadd.f32 %v4155, %v4262
      %v4264 = vpop.f32.mrf.mxu0
      %4265 = vmatprep.mubr.bf16.mxu0 0
      %4266 = vmatmul.mubr.bf16.gmra.mxu0 %v4085
      %v4267 = vpop.f32.mrf.mxu0
      %v4268 = vadd.f32 %v4160, %v4267
      %v4269 = vpop.f32.mrf.mxu0
      %v4270 = vpop.f32.mrf.mxu0
      %v4271 = vadd.f32 %v4163, %v4270
      %v4272 = vpop.f32.mrf.mxu0
      %4273 = vmatprep.mubr.bf16.mxu0 0
      %4274 = vmatmul.mubr.bf16.gmra.mxu0 %v4088
      %v4275 = vpop.f32.mrf.mxu0
      %v4276 = vadd.f32 %v4168, %v4275
      %v4277 = vpop.f32.mrf.mxu0
      %v4278 = vpop.f32.mrf.mxu0
      %v4279 = vadd.f32 %v4171, %v4278
      %v4280 = vpop.f32.mrf.mxu0
      %4281 = vmatprep.mubr.bf16.mxu0 0
      %4282 = vmatmul.mubr.bf16.gmra.mxu0 %v4091
      %v4283 = vpop.f32.mrf.mxu0
      %v4284 = vadd.f32 %v4176, %v4283
      %v4285 = vpop.f32.mrf.mxu0
      %v4286 = vpop.f32.mrf.mxu0
      %v4287 = vadd.f32 %v4179, %v4286
      %v4288 = vpop.f32.mrf.mxu0
      %4289 = vmatprep.mubr.bf16.mxu0 0
      %4290 = vmatmul.mubr.bf16.gmra.mxu0 %v4094
      %v4291 = vpop.f32.mrf.mxu0
      %v4292 = vadd.f32 %v4184, %v4291
      %v4293 = vpop.f32.mrf.mxu0
      %v4294 = vpop.f32.mrf.mxu0
      %v4295 = vadd.f32 %v4187, %v4294
      %v4296 = vpop.f32.mrf.mxu0
      %4297 = vmatprep.mubr.bf16.mxu0 0
      %4298 = vmatmul.mubr.bf16.gmra.mxu0 %v4097
      %v4299 = vpop.f32.mrf.mxu0
      %v4300 = vadd.f32 %v4192, %v4299
      %v4301 = vpop.f32.mrf.mxu0
      %v4302 = vpop.f32.mrf.mxu0
      %v4303 = vadd.f32 %v4195, %v4302
      %v4304 = vpop.f32.mrf.mxu0
      %4305 = vmatprep.mubr.bf16.mxu0 0
      %4306 = vmatmul.mubr.bf16.gmra.mxu0 %v4100
      %v4307 = vpop.f32.mrf.mxu0
      %v4308 = vadd.f32 %v4200, %v4307
      %v4309 = vpop.f32.mrf.mxu0
      %v4310 = vpop.f32.mrf.mxu0
      %v4311 = vadd.f32 %v4203, %v4310
      %v4312 = vpop.f32.mrf.mxu0
      %4313 = vdwg.mxu0
      %s4314 = scalar_lea.vmem %s2, 24
      %v4315 = vld [vmem:[%s4314] sm:$0xf]
      %v4318 = vunpack.c.l.b16 %v4035
      %v4319 = vunpack.c.l.b16 %v4036
      %v4320 = vpack.c.b16 %v4319, %v4318
      %v4322 = vsel %vm4080, %v4320, 0
      %v4325 = vsel %vm4105, %v4315, 0
      %4327 = vmatprep.subr.bf16.mxu0 0
      %4328 = vmatpush1.bf16.msra.mxu0 0
      %4329 = vmatprep.subr.bf16.mxu0 0
      %4330 = vmatpush1.bf16.msra.mxu0 0
      %4331 = vmatprep.subr.bf16.mxu0 0
      %4332 = vmatpush1.bf16.msra.mxu0 0
      %4333 = vmatprep.subr.bf16.mxu0 0
      %4334 = vmatpush1.bf16.msra.mxu0 0
      %4335 = vmatprep.subr.bf16.mxu0 0
      %4336 = vmatpush1.bf16.msra.mxu0 0
      %4337 = vmatprep.subr.bf16.mxu0 0
      %4338 = vmatpush1.bf16.msra.mxu0 0
      %4339 = vmatprep.subr.bf16.mxu0 0
      %4340 = vmatpush1.bf16.msra.mxu0 0
      %4341 = vmatprep.subr.bf16.mxu0 0
      %4342 = vmatpush1.bf16.msra.mxu0 %v4325
      %4343 = vmatprep.subr.bf16.mxu0 0
      %4344 = vmatpush2.bf16.msra.mxu0 0
      %4345 = vmatprep.subr.bf16.mxu0 0
      %4346 = vmatpush2.bf16.msra.mxu0 0
      %4347 = vmatprep.subr.bf16.mxu0 0
      %4348 = vmatpush2.bf16.msra.mxu0 0
      %4349 = vmatprep.subr.bf16.mxu0 0
      %4350 = vmatpush2.bf16.msra.mxu0 0
      %4351 = vmatprep.subr.bf16.mxu0 0
      %4352 = vmatpush2.bf16.msra.mxu0 0
      %4353 = vmatprep.subr.bf16.mxu0 0
      %4354 = vmatpush2.bf16.msra.mxu0 0
      %4355 = vmatprep.subr.bf16.mxu0 0
      %4356 = vmatpush2.bf16.msra.mxu0 0
      %4357 = vmatprep.subr.bf16.mxu0 0
      %4358 = vmatpush2.bf16.msra.mxu0 0
      %4359 = vmatprep.mubr.bf16.mxu0 0
      %4360 = vmatmul.mubr.bf16.gmra.mxu0 %v4085
      %v4361 = vpop.f32.mrf.mxu0
      %v4362 = vadd.f32 0.0, %v4361
      %v4363 = vpop.f32.mrf.mxu0
      %v4364 = vpop.f32.mrf.mxu0
      %v4365 = vadd.f32 0.0, %v4364
      %v4366 = vpop.f32.mrf.mxu0
      %4367 = vmatprep.mubr.bf16.mxu0 0
      %4368 = vmatmul.mubr.bf16.gmra.mxu0 %v4088
      %v4369 = vpop.f32.mrf.mxu0
      %v4370 = vadd.f32 0.0, %v4369
      %v4371 = vpop.f32.mrf.mxu0
      %v4372 = vpop.f32.mrf.mxu0
      %v4373 = vadd.f32 0.0, %v4372
      %v4374 = vpop.f32.mrf.mxu0
      %4375 = vmatprep.mubr.bf16.mxu0 0
      %4376 = vmatmul.mubr.bf16.gmra.mxu0 %v4091
      %v4377 = vpop.f32.mrf.mxu0
      %v4378 = vadd.f32 0.0, %v4377
      %v4379 = vpop.f32.mrf.mxu0
      %v4380 = vpop.f32.mrf.mxu0
      %v4381 = vadd.f32 0.0, %v4380
      %v4382 = vpop.f32.mrf.mxu0
      %4383 = vmatprep.mubr.bf16.mxu0 0
      %4384 = vmatmul.mubr.bf16.gmra.mxu0 %v4094
      %v4385 = vpop.f32.mrf.mxu0
      %v4386 = vadd.f32 0.0, %v4385
      %v4387 = vpop.f32.mrf.mxu0
      %v4388 = vpop.f32.mrf.mxu0
      %v4389 = vadd.f32 0.0, %v4388
      %v4390 = vpop.f32.mrf.mxu0
      %4391 = vmatprep.mubr.bf16.mxu0 0
      %4392 = vmatmul.mubr.bf16.gmra.mxu0 %v4097
      %v4393 = vpop.f32.mrf.mxu0
      %v4394 = vadd.f32 0.0, %v4393
      %v4395 = vpop.f32.mrf.mxu0
      %v4396 = vpop.f32.mrf.mxu0
      %v4397 = vadd.f32 0.0, %v4396
      %v4398 = vpop.f32.mrf.mxu0
      %4399 = vmatprep.mubr.bf16.mxu0 0
      %4400 = vmatmul.mubr.bf16.gmra.mxu0 %v4100
      %v4401 = vpop.f32.mrf.mxu0
      %v4402 = vadd.f32 0.0, %v4401
      %v4403 = vpop.f32.mrf.mxu0
      %v4404 = vpop.f32.mrf.mxu0
      %v4405 = vadd.f32 0.0, %v4404
      %v4406 = vpop.f32.mrf.mxu0
      %4407 = vmatprep.mubr.bf16.mxu0 0
      %4408 = vmatmul.mubr.bf16.gmra.mxu0 %v4103
      %v4409 = vpop.f32.mrf.mxu0
      %v4410 = vadd.f32 0.0, %v4409
      %v4411 = vpop.f32.mrf.mxu0
      %v4412 = vpop.f32.mrf.mxu0
      %v4413 = vadd.f32 0.0, %v4412
      %v4414 = vpop.f32.mrf.mxu0
      %4415 = vmatprep.mubr.bf16.mxu0 0
      %4416 = vmatmul.mubr.bf16.gmra.mxu0 %v4322
      %v4417 = vpop.f32.mrf.mxu0
      %v4418 = vadd.f32 0.0, %v4417
      %v4419 = vpop.f32.mrf.mxu0
      %v4420 = vpop.f32.mrf.mxu0
      %v4421 = vadd.f32 0.0, %v4420
      %v4422 = vpop.f32.mrf.mxu0
      %4423 = vdwg.mxu0
      %v4424 = vadd.f32 %v4252, %v4362
      %v4425 = vadd.f32 %v4255, %v4365
      %v4426 = vadd.f32 %v4260, %v4370
      %v4427 = vadd.f32 %v4263, %v4373
      %v4428 = vadd.f32 %v4268, %v4378
      %v4429 = vadd.f32 %v4271, %v4381
      %v4430 = vadd.f32 %v4276, %v4386
      %v4431 = vadd.f32 %v4279, %v4389
      %v4432 = vadd.f32 %v4284, %v4394
      %v4433 = vadd.f32 %v4287, %v4397
      %v4434 = vadd.f32 %v4292, %v4402
      %v4435 = vadd.f32 %v4295, %v4405
      %v4436 = vadd.f32 %v4300, %v4410
      %v4437 = vadd.f32 %v4303, %v4413
      %v4438 = vadd.f32 %v4308, %v4418
      %v4439 = vadd.f32 %v4311, %v4421
      %v4440 = vld [vmem:[#allocation2] sm:$0xf]
      %v4441 = vld [vmem:[#allocation2 + $0x4] sm:$0xf]
      %v4442 = vld [vmem:[#allocation2 + $0x8] sm:$0x1]
      %v4443 = vld [vmem:[#allocation2 + $0x10] sm:$0xf]
      %v4444 = vld [vmem:[#allocation2 + $0x14] sm:$0xf]
      %v4445 = vld [vmem:[#allocation2 + $0x18] sm:$0x1]
      %v4446 = vld [vmem:[#allocation2 + $0x20] sm:$0xf]
      %v4447 = vld [vmem:[#allocation2 + $0x24] sm:$0xf]
      %v4448 = vld [vmem:[#allocation2 + $0x28] sm:$0x1]
      %v4449 = vld [vmem:[#allocation2 + $0x30] sm:$0xf]
      %v4450 = vld [vmem:[#allocation2 + $0x34] sm:$0xf]
      %v4451 = vld [vmem:[#allocation2 + $0x38] sm:$0x1]
      %v4452 = vld [vmem:[#allocation2 + $0x40] sm:$0xf]
      %v4453 = vld [vmem:[#allocation2 + $0x44] sm:$0xf]
      %v4454 = vld [vmem:[#allocation2 + $0x48] sm:$0x1]
      %v4455 = vld [vmem:[#allocation2 + $0x50] sm:$0xf]
      %v4456 = vld [vmem:[#allocation2 + $0x54] sm:$0xf]
      %v4457 = vld [vmem:[#allocation2 + $0x58] sm:$0x1]
      %v4458 = vld [vmem:[#allocation2 + $0x60] sm:$0xf]
      %v4459 = vld [vmem:[#allocation2 + $0x64] sm:$0xf]
      %v4460 = vld [vmem:[#allocation2 + $0x68] sm:$0x1]
      %v4461 = vld [vmem:[#allocation2 + $0x70] sm:$0xf]
      %v4462 = vld [vmem:[#allocation2 + $0x74] sm:$0xf]
      %v4463 = vld [vmem:[#allocation2 + $0x78] sm:$0x1]
      %v4464 = vld [vmem:[#allocation2 + $0x80] sm:$0xf]
      %v4465 = vld [vmem:[#allocation2 + $0x84] sm:$0xf]
      %v4466 = vld [vmem:[#allocation2 + $0x88] sm:$0x1]
      %v4467 = vld [vmem:[#allocation2 + $0x90] sm:$0xf]
      %v4468 = vld [vmem:[#allocation2 + $0x94] sm:$0xf]
      %v4469 = vld [vmem:[#allocation2 + $0x98] sm:$0x1]
      %v4471 = vshrl.u32 %v4440, 16
      %v4473 = vrot.slane %v4471, 4
      %v4474 = vshll.u32 %v4440, 16
      %v4476 = vrot.slane %v4474, 5
      %v4477 = vor.u32 %v4473, %v4476
      %v4478 = vrot.slane %v4477, 4
      %v4480 = vshll.u32 %v4441, 16
      %v4482 = vrot.slane %v4480, 5
      %v4483 = vsel %vm1122, %v4478, %v4482
      %v4484 = vshrl.u32 %v4441, 16
      %v4486 = vrot.slane %v4484, 4
      %v4487 = vor.u32 %v4486, %v4482
      %v4488 = vrot.slane %v4487, 4
      %v4490 = vshll.u32 %v4442, 16
      %v4492 = vrot.slane %v4490, 5
      %v4493 = vsel %vm1122, %v4488, %v4492
      %v4495 = vshrl.u32 %v4443, 16
      %v4497 = vrot.slane %v4495, 4
      %v4498 = vshll.u32 %v4443, 16
      %v4500 = vrot.slane %v4498, 5
      %v4501 = vor.u32 %v4497, %v4500
      %v4502 = vrot.slane %v4501, 4
      %v4504 = vshll.u32 %v4444, 16
      %v4506 = vrot.slane %v4504, 5
      %v4507 = vsel %vm1122, %v4502, %v4506
      %v4508 = vshrl.u32 %v4444, 16
      %v4510 = vrot.slane %v4508, 4
      %v4511 = vor.u32 %v4510, %v4506
      %v4512 = vrot.slane %v4511, 4
      %v4514 = vshll.u32 %v4445, 16
      %v4516 = vrot.slane %v4514, 5
      %v4517 = vsel %vm1122, %v4512, %v4516
      %v4519 = vshrl.u32 %v4446, 16
      %v4521 = vrot.slane %v4519, 4
      %v4522 = vshll.u32 %v4446, 16
      %v4524 = vrot.slane %v4522, 5
      %v4525 = vor.u32 %v4521, %v4524
      %v4526 = vrot.slane %v4525, 4
      %v4528 = vshll.u32 %v4447, 16
      %v4530 = vrot.slane %v4528, 5
      %v4531 = vsel %vm1122, %v4526, %v4530
      %v4532 = vshrl.u32 %v4447, 16
      %v4534 = vrot.slane %v4532, 4
      %v4535 = vor.u32 %v4534, %v4530
      %v4536 = vrot.slane %v4535, 4
      %v4538 = vshll.u32 %v4448, 16
      %v4540 = vrot.slane %v4538, 5
      %v4541 = vsel %vm1122, %v4536, %v4540
      %v4543 = vshrl.u32 %v4449, 16
      %v4545 = vrot.slane %v4543, 4
      %v4546 = vshll.u32 %v4449, 16
      %v4548 = vrot.slane %v4546, 5
      %v4549 = vor.u32 %v4545, %v4548
      %v4550 = vrot.slane %v4549, 4
      %v4552 = vshll.u32 %v4450, 16
      %v4554 = vrot.slane %v4552, 5
      %v4555 = vsel %vm1122, %v4550, %v4554
      %v4556 = vshrl.u32 %v4450, 16
      %v4558 = vrot.slane %v4556, 4
      %v4559 = vor.u32 %v4558, %v4554
      %v4560 = vrot.slane %v4559, 4
      %v4562 = vshll.u32 %v4451, 16
      %v4564 = vrot.slane %v4562, 5
      %v4565 = vsel %vm1122, %v4560, %v4564
      %v4567 = vshrl.u32 %v4452, 16
      %v4569 = vrot.slane %v4567, 4
      %v4570 = vshll.u32 %v4452, 16
      %v4572 = vrot.slane %v4570, 5
      %v4573 = vor.u32 %v4569, %v4572
      %v4574 = vrot.slane %v4573, 4
      %v4576 = vshll.u32 %v4453, 16
      %v4578 = vrot.slane %v4576, 5
      %v4579 = vsel %vm1122, %v4574, %v4578
      %v4580 = vshrl.u32 %v4453, 16
      %v4582 = vrot.slane %v4580, 4
      %v4583 = vor.u32 %v4582, %v4578
      %v4584 = vrot.slane %v4583, 4
      %v4586 = vshll.u32 %v4454, 16
      %v4588 = vrot.slane %v4586, 5
      %v4589 = vsel %vm1122, %v4584, %v4588
      %v4591 = vshrl.u32 %v4455, 16
      %v4593 = vrot.slane %v4591, 4
      %v4594 = vshll.u32 %v4455, 16
      %v4596 = vrot.slane %v4594, 5
      %v4597 = vor.u32 %v4593, %v4596
      %v4598 = vrot.slane %v4597, 4
      %v4600 = vshll.u32 %v4456, 16
      %v4602 = vrot.slane %v4600, 5
      %v4603 = vsel %vm1122, %v4598, %v4602
      %v4604 = vshrl.u32 %v4456, 16
      %v4606 = vrot.slane %v4604, 4
      %v4607 = vor.u32 %v4606, %v4602
      %v4608 = vrot.slane %v4607, 4
      %v4610 = vshll.u32 %v4457, 16
      %v4612 = vrot.slane %v4610, 5
      %v4613 = vsel %vm1122, %v4608, %v4612
      %v4615 = vshrl.u32 %v4458, 16
      %v4617 = vrot.slane %v4615, 4
      %v4618 = vshll.u32 %v4458, 16
      %v4620 = vrot.slane %v4618, 5
      %v4621 = vor.u32 %v4617, %v4620
      %v4622 = vrot.slane %v4621, 4
      %v4624 = vshll.u32 %v4459, 16
      %v4626 = vrot.slane %v4624, 5
      %v4627 = vsel %vm1122, %v4622, %v4626
      %v4628 = vshrl.u32 %v4459, 16
      %v4630 = vrot.slane %v4628, 4
      %v4631 = vor.u32 %v4630, %v4626
      %v4632 = vrot.slane %v4631, 4
      %v4634 = vshll.u32 %v4460, 16
      %v4636 = vrot.slane %v4634, 5
      %v4637 = vsel %vm1122, %v4632, %v4636
      %v4639 = vshrl.u32 %v4461, 16
      %v4641 = vrot.slane %v4639, 4
      %v4642 = vshll.u32 %v4461, 16
      %v4644 = vrot.slane %v4642, 5
      %v4645 = vor.u32 %v4641, %v4644
      %v4646 = vrot.slane %v4645, 4
      %v4648 = vshll.u32 %v4462, 16
      %v4650 = vrot.slane %v4648, 5
      %v4651 = vsel %vm1122, %v4646, %v4650
      %v4652 = vshrl.u32 %v4462, 16
      %v4654 = vrot.slane %v4652, 4
      %v4655 = vor.u32 %v4654, %v4650
      %v4656 = vrot.slane %v4655, 4
      %v4658 = vshll.u32 %v4463, 16
      %v4660 = vrot.slane %v4658, 5
      %v4661 = vsel %vm1122, %v4656, %v4660
      %s4662 = scalar_lea.vmem %s2, 4
      %v4663 = vld [vmem:[%s4662] sm:$0xf]
      %v4664 = vunpack.c.l.b16 %v4483
      %v4665 = vunpack.c.l.b16 %v4493
      %v4666 = vunpack.c.l.b16 %v4507
      %v4667 = vunpack.c.l.b16 %v4517
      %v4668 = vunpack.c.l.b16 %v4531
      %v4669 = vunpack.c.l.b16 %v4541
      %v4670 = vunpack.c.l.b16 %v4555
      %v4671 = vunpack.c.l.b16 %v4565
      %v4672 = vunpack.c.l.b16 %v4579
      %v4673 = vunpack.c.l.b16 %v4589
      %v4674 = vunpack.c.l.b16 %v4603
      %v4675 = vunpack.c.l.b16 %v4613
      %v4676 = vunpack.c.l.b16 %v4627
      %v4677 = vunpack.c.l.b16 %v4637
      %v4678 = vunpack.c.l.b16 %v4651
      %v4679 = vunpack.c.l.b16 %v4661
      %v4680 = vpack.c.b16 %v4665, %v4664
      %v4681 = vpack.c.b16 %v4667, %v4666
      %v4682 = vpack.c.b16 %v4669, %v4668
      %v4683 = vpack.c.b16 %v4671, %v4670
      %v4684 = vpack.c.b16 %v4673, %v4672
      %v4685 = vpack.c.b16 %v4675, %v4674
      %v4686 = vpack.c.b16 %v4677, %v4676
      %v4687 = vpack.c.b16 %v4679, %v4678
      %v4689 = vsel %vm4080, %v4680, 0
      %v4692 = vsel %vm4080, %v4681, 0
      %v4695 = vsel %vm4080, %v4682, 0
      %v4698 = vsel %vm4080, %v4683, 0
      %v4701 = vsel %vm4080, %v4684, 0
      %v4704 = vsel %vm4080, %v4685, 0
      %v4707 = vsel %vm4080, %v4686, 0
      %v4710 = vsel %vm4080, %v4687, 0
      %v4713 = vsel %vm4105, %v4663, 0
      %4715 = vmatprep.subr.bf16.mxu0 0
      %4716 = vmatpush1.bf16.msra.mxu0 0
      %4717 = vmatprep.subr.bf16.mxu0 0
      %4718 = vmatpush1.bf16.msra.mxu0 0
      %4719 = vmatprep.subr.bf16.mxu0 0
      %4720 = vmatpush1.bf16.msra.mxu0 0
      %4721 = vmatprep.subr.bf16.mxu0 0
      %4722 = vmatpush1.bf16.msra.mxu0 0
      %4723 = vmatprep.subr.bf16.mxu0 0
      %4724 = vmatpush1.bf16.msra.mxu0 0
      %4725 = vmatprep.subr.bf16.mxu0 0
      %4726 = vmatpush1.bf16.msra.mxu0 0
      %4727 = vmatprep.subr.bf16.mxu0 0
      %4728 = vmatpush1.bf16.msra.mxu0 0
      %4729 = vmatprep.subr.bf16.mxu0 0
      %4730 = vmatpush1.bf16.msra.mxu0 %v4713
      %4731 = vmatprep.subr.bf16.mxu0 0
      %4732 = vmatpush2.bf16.msra.mxu0 0
      %4733 = vmatprep.subr.bf16.mxu0 0
      %4734 = vmatpush2.bf16.msra.mxu0 0
      %4735 = vmatprep.subr.bf16.mxu0 0
      %4736 = vmatpush2.bf16.msra.mxu0 0
      %4737 = vmatprep.subr.bf16.mxu0 0
      %4738 = vmatpush2.bf16.msra.mxu0 0
      %4739 = vmatprep.subr.bf16.mxu0 0
      %4740 = vmatpush2.bf16.msra.mxu0 0
      %4741 = vmatprep.subr.bf16.mxu0 0
      %4742 = vmatpush2.bf16.msra.mxu0 0
      %4743 = vmatprep.subr.bf16.mxu0 0
      %4744 = vmatpush2.bf16.msra.mxu0 0
      %4745 = vmatprep.subr.bf16.mxu0 0
      %4746 = vmatpush2.bf16.msra.mxu0 0
      %4747 = vmatprep.mubr.bf16.mxu0 0
      %4748 = vmatmul.mubr.bf16.gmra.mxu0 %v4689
      %v4749 = vpop.f32.mrf.mxu0
      %v4750 = vadd.f32 0.0, %v4749
      %v4751 = vpop.f32.mrf.mxu0
      %v4752 = vpop.f32.mrf.mxu0
      %v4753 = vadd.f32 0.0, %v4752
      %v4754 = vpop.f32.mrf.mxu0
      %4755 = vmatprep.mubr.bf16.mxu0 0
      %4756 = vmatmul.mubr.bf16.gmra.mxu0 %v4692
      %v4757 = vpop.f32.mrf.mxu0
      %v4758 = vadd.f32 0.0, %v4757
      %v4759 = vpop.f32.mrf.mxu0
      %v4760 = vpop.f32.mrf.mxu0
      %v4761 = vadd.f32 0.0, %v4760
      %v4762 = vpop.f32.mrf.mxu0
      %4763 = vmatprep.mubr.bf16.mxu0 0
      %4764 = vmatmul.mubr.bf16.gmra.mxu0 %v4695
      %v4765 = vpop.f32.mrf.mxu0
      %v4766 = vadd.f32 0.0, %v4765
      %v4767 = vpop.f32.mrf.mxu0
      %v4768 = vpop.f32.mrf.mxu0
      %v4769 = vadd.f32 0.0, %v4768
      %v4770 = vpop.f32.mrf.mxu0
      %4771 = vmatprep.mubr.bf16.mxu0 0
      %4772 = vmatmul.mubr.bf16.gmra.mxu0 %v4698
      %v4773 = vpop.f32.mrf.mxu0
      %v4774 = vadd.f32 0.0, %v4773
      %v4775 = vpop.f32.mrf.mxu0
      %v4776 = vpop.f32.mrf.mxu0
      %v4777 = vadd.f32 0.0, %v4776
      %v4778 = vpop.f32.mrf.mxu0
      %4779 = vmatprep.mubr.bf16.mxu0 0
      %4780 = vmatmul.mubr.bf16.gmra.mxu0 %v4701
      %v4781 = vpop.f32.mrf.mxu0
      %v4782 = vadd.f32 0.0, %v4781
      %v4783 = vpop.f32.mrf.mxu0
      %v4784 = vpop.f32.mrf.mxu0
      %v4785 = vadd.f32 0.0, %v4784
      %v4786 = vpop.f32.mrf.mxu0
      %4787 = vmatprep.mubr.bf16.mxu0 0
      %4788 = vmatmul.mubr.bf16.gmra.mxu0 %v4704
      %v4789 = vpop.f32.mrf.mxu0
      %v4790 = vadd.f32 0.0, %v4789
      %v4791 = vpop.f32.mrf.mxu0
      %v4792 = vpop.f32.mrf.mxu0
      %v4793 = vadd.f32 0.0, %v4792
      %v4794 = vpop.f32.mrf.mxu0
      %4795 = vmatprep.mubr.bf16.mxu0 0
      %4796 = vmatmul.mubr.bf16.gmra.mxu0 %v4707
      %v4797 = vpop.f32.mrf.mxu0
      %v4798 = vadd.f32 0.0, %v4797
      %v4799 = vpop.f32.mrf.mxu0
      %v4800 = vpop.f32.mrf.mxu0
      %v4801 = vadd.f32 0.0, %v4800
      %v4802 = vpop.f32.mrf.mxu0
      %4803 = vmatprep.mubr.bf16.mxu0 0
      %4804 = vmatmul.mubr.bf16.gmra.mxu0 %v4710
      %v4805 = vpop.f32.mrf.mxu0
      %v4806 = vadd.f32 0.0, %v4805
      %v4807 = vpop.f32.mrf.mxu0
      %v4808 = vpop.f32.mrf.mxu0
      %v4809 = vadd.f32 0.0, %v4808
      %v4810 = vpop.f32.mrf.mxu0
      %4811 = vdwg.mxu0
      %v4812 = vadd.f32 %v4424, %v4750
      %v4813 = vadd.f32 %v4425, %v4753
      %v4814 = vadd.f32 %v4426, %v4758
      %v4815 = vadd.f32 %v4427, %v4761
      %v4816 = vadd.f32 %v4428, %v4766
      %v4817 = vadd.f32 %v4429, %v4769
      %v4818 = vadd.f32 %v4430, %v4774
      %v4819 = vadd.f32 %v4431, %v4777
      %v4820 = vadd.f32 %v4432, %v4782
      %v4821 = vadd.f32 %v4433, %v4785
      %v4822 = vadd.f32 %v4434, %v4790
      %v4823 = vadd.f32 %v4435, %v4793
      %v4824 = vadd.f32 %v4436, %v4798
      %v4825 = vadd.f32 %v4437, %v4801
      %v4826 = vadd.f32 %v4438, %v4806
      %v4827 = vadd.f32 %v4439, %v4809
      %v4829 = vshrl.u32 %v4464, 16
      %v4831 = vrot.slane %v4829, 4
      %v4832 = vshll.u32 %v4464, 16
      %v4834 = vrot.slane %v4832, 5
      %v4835 = vor.u32 %v4831, %v4834
      %v4836 = vrot.slane %v4835, 4
      %v4838 = vshll.u32 %v4465, 16
      %v4840 = vrot.slane %v4838, 5
      %v4841 = vsel %vm1122, %v4836, %v4840
      %v4842 = vshrl.u32 %v4465, 16
      %v4844 = vrot.slane %v4842, 4
      %v4845 = vor.u32 %v4844, %v4840
      %v4846 = vrot.slane %v4845, 4
      %v4848 = vshll.u32 %v4466, 16
      %v4850 = vrot.slane %v4848, 5
      %v4851 = vsel %vm1122, %v4846, %v4850
      %s4852 = scalar_lea.vmem %s2, 16
      %v4853 = vld [vmem:[%s4852] sm:$0xf]
      %v4854 = vunpack.c.l.b16 %v4841
      %v4855 = vunpack.c.l.b16 %v4851
      %v4856 = vpack.c.b16 %v4855, %v4854
      %v4858 = vsel %vm4080, %v4856, 0
      %v4861 = vsel %vm4105, %v4853, 0
      %4863 = vmatprep.subr.bf16.mxu0 0
      %4864 = vmatpush1.bf16.msra.mxu0 0
      %4865 = vmatprep.subr.bf16.mxu0 0
      %4866 = vmatpush1.bf16.msra.mxu0 0
      %4867 = vmatprep.subr.bf16.mxu0 0
      %4868 = vmatpush1.bf16.msra.mxu0 0
      %4869 = vmatprep.subr.bf16.mxu0 0
      %4870 = vmatpush1.bf16.msra.mxu0 0
      %4871 = vmatprep.subr.bf16.mxu0 0
      %4872 = vmatpush1.bf16.msra.mxu0 0
      %4873 = vmatprep.subr.bf16.mxu0 0
      %4874 = vmatpush1.bf16.msra.mxu0 0
      %4875 = vmatprep.subr.bf16.mxu0 0
      %4876 = vmatpush1.bf16.msra.mxu0 0
      %4877 = vmatprep.subr.bf16.mxu0 0
      %4878 = vmatpush1.bf16.msra.mxu0 %v4861
      %4879 = vmatprep.subr.bf16.mxu0 0
      %4880 = vmatpush2.bf16.msra.mxu0 0
      %4881 = vmatprep.subr.bf16.mxu0 0
      %4882 = vmatpush2.bf16.msra.mxu0 0
      %4883 = vmatprep.subr.bf16.mxu0 0
      %4884 = vmatpush2.bf16.msra.mxu0 0
      %4885 = vmatprep.subr.bf16.mxu0 0
      %4886 = vmatpush2.bf16.msra.mxu0 0
      %4887 = vmatprep.subr.bf16.mxu0 0
      %4888 = vmatpush2.bf16.msra.mxu0 0
      %4889 = vmatprep.subr.bf16.mxu0 0
      %4890 = vmatpush2.bf16.msra.mxu0 0
      %4891 = vmatprep.subr.bf16.mxu0 0
      %4892 = vmatpush2.bf16.msra.mxu0 0
      %4893 = vmatprep.subr.bf16.mxu0 0
      %4894 = vmatpush2.bf16.msra.mxu0 0
      %4895 = vmatprep.mubr.bf16.mxu0 0
      %4896 = vmatmul.mubr.bf16.gmra.mxu0 %v4692
      %v4897 = vpop.f32.mrf.mxu0
      %v4898 = vadd.f32 0.0, %v4897
      %v4899 = vpop.f32.mrf.mxu0
      %v4900 = vpop.f32.mrf.mxu0
      %v4901 = vadd.f32 0.0, %v4900
      %v4902 = vpop.f32.mrf.mxu0
      %4903 = vmatprep.mubr.bf16.mxu0 0
      %4904 = vmatmul.mubr.bf16.gmra.mxu0 %v4695
      %v4905 = vpop.f32.mrf.mxu0
      %v4906 = vadd.f32 0.0, %v4905
      %v4907 = vpop.f32.mrf.mxu0
      %v4908 = vpop.f32.mrf.mxu0
      %v4909 = vadd.f32 0.0, %v4908
      %v4910 = vpop.f32.mrf.mxu0
      %4911 = vmatprep.mubr.bf16.mxu0 0
      %4912 = vmatmul.mubr.bf16.gmra.mxu0 %v4698
      %v4913 = vpop.f32.mrf.mxu0
      %v4914 = vadd.f32 0.0, %v4913
      %v4915 = vpop.f32.mrf.mxu0
      %v4916 = vpop.f32.mrf.mxu0
      %v4917 = vadd.f32 0.0, %v4916
      %v4918 = vpop.f32.mrf.mxu0
      %4919 = vmatprep.mubr.bf16.mxu0 0
      %4920 = vmatmul.mubr.bf16.gmra.mxu0 %v4701
      %v4921 = vpop.f32.mrf.mxu0
      %v4922 = vadd.f32 0.0, %v4921
      %v4923 = vpop.f32.mrf.mxu0
      %v4924 = vpop.f32.mrf.mxu0
      %v4925 = vadd.f32 0.0, %v4924
      %v4926 = vpop.f32.mrf.mxu0
      %4927 = vmatprep.mubr.bf16.mxu0 0
      %4928 = vmatmul.mubr.bf16.gmra.mxu0 %v4704
      %v4929 = vpop.f32.mrf.mxu0
      %v4930 = vadd.f32 0.0, %v4929
      %v4931 = vpop.f32.mrf.mxu0
      %v4932 = vpop.f32.mrf.mxu0
      %v4933 = vadd.f32 0.0, %v4932
      %v4934 = vpop.f32.mrf.mxu0
      %4935 = vmatprep.mubr.bf16.mxu0 0
      %4936 = vmatmul.mubr.bf16.gmra.mxu0 %v4707
      %v4937 = vpop.f32.mrf.mxu0
      %v4938 = vadd.f32 0.0, %v4937
      %v4939 = vpop.f32.mrf.mxu0
      %v4940 = vpop.f32.mrf.mxu0
      %v4941 = vadd.f32 0.0, %v4940
      %v4942 = vpop.f32.mrf.mxu0
      %4943 = vmatprep.mubr.bf16.mxu0 0
      %4944 = vmatmul.mubr.bf16.gmra.mxu0 %v4710
      %v4945 = vpop.f32.mrf.mxu0
      %v4946 = vadd.f32 0.0, %v4945
      %v4947 = vpop.f32.mrf.mxu0
      %v4948 = vpop.f32.mrf.mxu0
      %v4949 = vadd.f32 0.0, %v4948
      %v4950 = vpop.f32.mrf.mxu0
      %4951 = vmatprep.mubr.bf16.mxu0 0
      %4952 = vmatmul.mubr.bf16.gmra.mxu0 %v4858
      %v4953 = vpop.f32.mrf.mxu0
      %v4954 = vadd.f32 0.0, %v4953
      %v4955 = vpop.f32.mrf.mxu0
      %v4956 = vpop.f32.mrf.mxu0
      %v4957 = vadd.f32 0.0, %v4956
      %v4958 = vpop.f32.mrf.mxu0
      %4959 = vdwg.mxu0
      %v4960 = vadd.f32 %v4812, %v4898
      %v4961 = vadd.f32 %v4813, %v4901
      %v4962 = vadd.f32 %v4814, %v4906
      %v4963 = vadd.f32 %v4815, %v4909
      %v4964 = vadd.f32 %v4816, %v4914
      %v4965 = vadd.f32 %v4817, %v4917
      %v4966 = vadd.f32 %v4818, %v4922
      %v4967 = vadd.f32 %v4819, %v4925
      %v4968 = vadd.f32 %v4820, %v4930
      %v4969 = vadd.f32 %v4821, %v4933
      %v4970 = vadd.f32 %v4822, %v4938
      %v4971 = vadd.f32 %v4823, %v4941
      %v4972 = vadd.f32 %v4824, %v4946
      %v4973 = vadd.f32 %v4825, %v4949
      %v4974 = vadd.f32 %v4826, %v4954
      %v4975 = vadd.f32 %v4827, %v4957
      %v4977 = vshrl.u32 %v4467, 16
      %v4979 = vrot.slane %v4977, 4
      %v4980 = vshll.u32 %v4467, 16
      %v4982 = vrot.slane %v4980, 5
      %v4983 = vor.u32 %v4979, %v4982
      %v4984 = vrot.slane %v4983, 4
      %v4986 = vshll.u32 %v4468, 16
      %v4988 = vrot.slane %v4986, 5
      %v4989 = vsel %vm1122, %v4984, %v4988
      %v4990 = vshrl.u32 %v4468, 16
      %v4992 = vrot.slane %v4990, 4
      %v4993 = vor.u32 %v4992, %v4988
      %v4994 = vrot.slane %v4993, 4
      %v4996 = vshll.u32 %v4469, 16
      %v4998 = vrot.slane %v4996, 5
      %v4999 = vsel %vm1122, %v4994, %v4998
      %s5000 = scalar_lea.vmem %s2, 28
      %v5001 = vld [vmem:[%s5000] sm:$0xf]
      %v5002 = vunpack.c.l.b16 %v4989
      %v5003 = vunpack.c.l.b16 %v4999
      %v5004 = vpack.c.b16 %v5003, %v5002
      %v5006 = vsel %vm4080, %v5004, 0
      %v5009 = vsel %vm4105, %v5001, 0
      %5011 = vmatprep.subr.bf16.mxu0 0
      %5012 = vmatpush1.bf16.msra.mxu0 0
      %5013 = vmatprep.subr.bf16.mxu0 0
      %5014 = vmatpush1.bf16.msra.mxu0 0
      %5015 = vmatprep.subr.bf16.mxu0 0
      %5016 = vmatpush1.bf16.msra.mxu0 0
      %5017 = vmatprep.subr.bf16.mxu0 0
      %5018 = vmatpush1.bf16.msra.mxu0 0
      %5019 = vmatprep.subr.bf16.mxu0 0
      %5020 = vmatpush1.bf16.msra.mxu0 0
      %5021 = vmatprep.subr.bf16.mxu0 0
      %5022 = vmatpush1.bf16.msra.mxu0 0
      %5023 = vmatprep.subr.bf16.mxu0 0
      %5024 = vmatpush1.bf16.msra.mxu0 0
      %5025 = vmatprep.subr.bf16.mxu0 0
      %5026 = vmatpush1.bf16.msra.mxu0 %v5009
      %5027 = vmatprep.subr.bf16.mxu0 0
      %5028 = vmatpush2.bf16.msra.mxu0 0
      %5029 = vmatprep.subr.bf16.mxu0 0
      %5030 = vmatpush2.bf16.msra.mxu0 0
      %5031 = vmatprep.subr.bf16.mxu0 0
      %5032 = vmatpush2.bf16.msra.mxu0 0
      %5033 = vmatprep.subr.bf16.mxu0 0
      %5034 = vmatpush2.bf16.msra.mxu0 0
      %5035 = vmatprep.subr.bf16.mxu0 0
      %5036 = vmatpush2.bf16.msra.mxu0 0
      %5037 = vmatprep.subr.bf16.mxu0 0
      %5038 = vmatpush2.bf16.msra.mxu0 0
      %5039 = vmatprep.subr.bf16.mxu0 0
      %5040 = vmatpush2.bf16.msra.mxu0 0
      %5041 = vmatprep.subr.bf16.mxu0 0
      %5042 = vmatpush2.bf16.msra.mxu0 0
      %5043 = vmatprep.mubr.bf16.mxu0 0
      %5044 = vmatmul.mubr.bf16.gmra.mxu0 %v4695
      %v5045 = vpop.f32.mrf.mxu0
      %v5046 = vadd.f32 0.0, %v5045
      %v5047 = vpop.f32.mrf.mxu0
      %v5048 = vpop.f32.mrf.mxu0
      %v5049 = vadd.f32 0.0, %v5048
      %v5050 = vpop.f32.mrf.mxu0
      %5051 = vmatprep.mubr.bf16.mxu0 0
      %5052 = vmatmul.mubr.bf16.gmra.mxu0 %v4698
      %v5053 = vpop.f32.mrf.mxu0
      %v5054 = vadd.f32 0.0, %v5053
      %v5055 = vpop.f32.mrf.mxu0
      %v5056 = vpop.f32.mrf.mxu0
      %v5057 = vadd.f32 0.0, %v5056
      %v5058 = vpop.f32.mrf.mxu0
      %5059 = vmatprep.mubr.bf16.mxu0 0
      %5060 = vmatmul.mubr.bf16.gmra.mxu0 %v4701
      %v5061 = vpop.f32.mrf.mxu0
      %v5062 = vadd.f32 0.0, %v5061
      %v5063 = vpop.f32.mrf.mxu0
      %v5064 = vpop.f32.mrf.mxu0
      %v5065 = vadd.f32 0.0, %v5064
      %v5066 = vpop.f32.mrf.mxu0
      %5067 = vmatprep.mubr.bf16.mxu0 0
      %5068 = vmatmul.mubr.bf16.gmra.mxu0 %v4704
      %v5069 = vpop.f32.mrf.mxu0
      %v5070 = vadd.f32 0.0, %v5069
      %v5071 = vpop.f32.mrf.mxu0
      %v5072 = vpop.f32.mrf.mxu0
      %v5073 = vadd.f32 0.0, %v5072
      %v5074 = vpop.f32.mrf.mxu0
      %5075 = vmatprep.mubr.bf16.mxu0 0
      %5076 = vmatmul.mubr.bf16.gmra.mxu0 %v4707
      %v5077 = vpop.f32.mrf.mxu0
      %v5078 = vadd.f32 0.0, %v5077
      %v5079 = vpop.f32.mrf.mxu0
      %v5080 = vpop.f32.mrf.mxu0
      %v5081 = vadd.f32 0.0, %v5080
      %v5082 = vpop.f32.mrf.mxu0
      %5083 = vmatprep.mubr.bf16.mxu0 0
      %5084 = vmatmul.mubr.bf16.gmra.mxu0 %v4710
      %v5085 = vpop.f32.mrf.mxu0
      %v5086 = vadd.f32 0.0, %v5085
      %v5087 = vpop.f32.mrf.mxu0
      %v5088 = vpop.f32.mrf.mxu0
      %v5089 = vadd.f32 0.0, %v5088
      %v5090 = vpop.f32.mrf.mxu0
      %5091 = vmatprep.mubr.bf16.mxu0 0
      %5092 = vmatmul.mubr.bf16.gmra.mxu0 %v4858
      %v5093 = vpop.f32.mrf.mxu0
      %v5094 = vadd.f32 0.0, %v5093
      %v5095 = vpop.f32.mrf.mxu0
      %v5096 = vpop.f32.mrf.mxu0
      %v5097 = vadd.f32 0.0, %v5096
      %v5098 = vpop.f32.mrf.mxu0
      %5099 = vmatprep.mubr.bf16.mxu0 0
      %5100 = vmatmul.mubr.bf16.gmra.mxu0 %v5006
      %v5101 = vpop.f32.mrf.mxu0
      %v5102 = vadd.f32 0.0, %v5101
      %v5103 = vpop.f32.mrf.mxu0
      %v5104 = vpop.f32.mrf.mxu0
      %v5105 = vadd.f32 0.0, %v5104
      %v5106 = vpop.f32.mrf.mxu0
      %5107 = vdwg.mxu0
      %v5108 = vadd.f32 %v4960, %v5046
      %v5109 = vadd.f32 %v4961, %v5049
      %v5110 = vadd.f32 %v4962, %v5054
      %v5111 = vadd.f32 %v4963, %v5057
      %v5112 = vadd.f32 %v4964, %v5062
      %v5113 = vadd.f32 %v4965, %v5065
      %v5114 = vadd.f32 %v4966, %v5070
      %v5115 = vadd.f32 %v4967, %v5073
      %v5116 = vadd.f32 %v4968, %v5078
      %v5117 = vadd.f32 %v4969, %v5081
      %v5118 = vadd.f32 %v4970, %v5086
      %v5119 = vadd.f32 %v4971, %v5089
      %v5120 = vadd.f32 %v4972, %v5094
      %v5121 = vadd.f32 %v4973, %v5097
      %v5122 = vadd.f32 %v4974, %v5102
      %v5123 = vadd.f32 %v4975, %v5105
      %v5124 = vld [vmem:[#allocation2] sm:$0xe]
      %v5125 = vld [vmem:[#allocation2 + $0x10] sm:$0xe]
      %v5126 = vld [vmem:[#allocation2 + $0x20] sm:$0xe]
      %v5127 = vld [vmem:[#allocation2 + $0x30] sm:$0xe]
      %v5128 = vld [vmem:[#allocation2 + $0x40] sm:$0xe]
      %v5129 = vld [vmem:[#allocation2 + $0x50] sm:$0xe]
      %v5130 = vld [vmem:[#allocation2 + $0x60] sm:$0xe]
      %v5131 = vld [vmem:[#allocation2 + $0x70] sm:$0xe]
      %v5132 = vld [vmem:[#allocation2 + $0x80] sm:$0xe]
      %v5133 = vld [vmem:[#allocation2 + $0x90] sm:$0xe]
      %v5158 = vrot.slane %v5124, 5
      %v5159 = vrot.slane %v5158, 4
      %v5160 = vrot.slane %v4441, 5
      %v5161 = vsel %vm2573, %v5159, %v5160
      %v5162 = vrot.slane %v5160, 4
      %v5163 = vrot.slane %v4442, 5
      %v5164 = vsel %vm2573, %v5162, %v5163
      %v5165 = vrot.slane %v5125, 5
      %v5166 = vrot.slane %v5165, 4
      %v5167 = vrot.slane %v4444, 5
      %v5168 = vsel %vm2573, %v5166, %v5167
      %v5169 = vrot.slane %v5167, 4
      %v5170 = vrot.slane %v4445, 5
      %v5171 = vsel %vm2573, %v5169, %v5170
      %v5172 = vrot.slane %v5126, 5
      %v5173 = vrot.slane %v5172, 4
      %v5174 = vrot.slane %v4447, 5
      %v5175 = vsel %vm2573, %v5173, %v5174
      %v5176 = vrot.slane %v5174, 4
      %v5177 = vrot.slane %v4448, 5
      %v5178 = vsel %vm2573, %v5176, %v5177
      %v5179 = vrot.slane %v5127, 5
      %v5180 = vrot.slane %v5179, 4
      %v5181 = vrot.slane %v4450, 5
      %v5182 = vsel %vm2573, %v5180, %v5181
      %v5183 = vrot.slane %v5181, 4
      %v5184 = vrot.slane %v4451, 5
      %v5185 = vsel %vm2573, %v5183, %v5184
      %v5186 = vrot.slane %v5128, 5
      %v5187 = vrot.slane %v5186, 4
      %v5188 = vrot.slane %v4453, 5
      %v5189 = vsel %vm2573, %v5187, %v5188
      %v5190 = vrot.slane %v5188, 4
      %v5191 = vrot.slane %v4454, 5
      %v5192 = vsel %vm2573, %v5190, %v5191
      %v5193 = vrot.slane %v5129, 5
      %v5194 = vrot.slane %v5193, 4
      %v5195 = vrot.slane %v4456, 5
      %v5196 = vsel %vm2573, %v5194, %v5195
      %v5197 = vrot.slane %v5195, 4
      %v5198 = vrot.slane %v4457, 5
      %v5199 = vsel %vm2573, %v5197, %v5198
      %v5200 = vrot.slane %v5130, 5
      %v5201 = vrot.slane %v5200, 4
      %v5202 = vrot.slane %v4459, 5
      %v5203 = vsel %vm2573, %v5201, %v5202
      %v5204 = vrot.slane %v5202, 4
      %v5205 = vrot.slane %v4460, 5
      %v5206 = vsel %vm2573, %v5204, %v5205
      %v5207 = vrot.slane %v5131, 5
      %v5208 = vrot.slane %v5207, 4
      %v5209 = vrot.slane %v4462, 5
      %v5210 = vsel %vm2573, %v5208, %v5209
      %v5211 = vrot.slane %v5209, 4
      %v5212 = vrot.slane %v4463, 5
      %v5213 = vsel %vm2573, %v5211, %v5212
      %s5214 = scalar_lea.vmem %s2, 8
      %v5215 = vld [vmem:[%s5214] sm:$0xf]
      %v5216 = vunpack.c.l.b16 %v5161
      %v5217 = vunpack.c.l.b16 %v5164
      %v5218 = vunpack.c.l.b16 %v5168
      %v5219 = vunpack.c.l.b16 %v5171
      %v5220 = vunpack.c.l.b16 %v5175
      %v5221 = vunpack.c.l.b16 %v5178
      %v5222 = vunpack.c.l.b16 %v5182
      %v5223 = vunpack.c.l.b16 %v5185
      %v5224 = vunpack.c.l.b16 %v5189
      %v5225 = vunpack.c.l.b16 %v5192
      %v5226 = vunpack.c.l.b16 %v5196
      %v5227 = vunpack.c.l.b16 %v5199
      %v5228 = vunpack.c.l.b16 %v5203
      %v5229 = vunpack.c.l.b16 %v5206
      %v5230 = vunpack.c.l.b16 %v5210
      %v5231 = vunpack.c.l.b16 %v5213
      %v5232 = vpack.c.b16 %v5217, %v5216
      %v5233 = vpack.c.b16 %v5219, %v5218
      %v5234 = vpack.c.b16 %v5221, %v5220
      %v5235 = vpack.c.b16 %v5223, %v5222
      %v5236 = vpack.c.b16 %v5225, %v5224
      %v5237 = vpack.c.b16 %v5227, %v5226
      %v5238 = vpack.c.b16 %v5229, %v5228
      %v5239 = vpack.c.b16 %v5231, %v5230
      %v5241 = vsel %vm4080, %v5232, 0
      %v5244 = vsel %vm4080, %v5233, 0
      %v5247 = vsel %vm4080, %v5234, 0
      %v5250 = vsel %vm4080, %v5235, 0
      %v5253 = vsel %vm4080, %v5236, 0
      %v5256 = vsel %vm4080, %v5237, 0
      %v5259 = vsel %vm4080, %v5238, 0
      %v5262 = vsel %vm4080, %v5239, 0
      %v5265 = vsel %vm4105, %v5215, 0
      %5267 = vmatprep.subr.bf16.mxu0 0
      %5268 = vmatpush1.bf16.msra.mxu0 0
      %5269 = vmatprep.subr.bf16.mxu0 0
      %5270 = vmatpush1.bf16.msra.mxu0 0
      %5271 = vmatprep.subr.bf16.mxu0 0
      %5272 = vmatpush1.bf16.msra.mxu0 0
      %5273 = vmatprep.subr.bf16.mxu0 0
      %5274 = vmatpush1.bf16.msra.mxu0 0
      %5275 = vmatprep.subr.bf16.mxu0 0
      %5276 = vmatpush1.bf16.msra.mxu0 0
      %5277 = vmatprep.subr.bf16.mxu0 0
      %5278 = vmatpush1.bf16.msra.mxu0 0
      %5279 = vmatprep.subr.bf16.mxu0 0
      %5280 = vmatpush1.bf16.msra.mxu0 0
      %5281 = vmatprep.subr.bf16.mxu0 0
      %5282 = vmatpush1.bf16.msra.mxu0 %v5265
      %5283 = vmatprep.subr.bf16.mxu0 0
      %5284 = vmatpush2.bf16.msra.mxu0 0
      %5285 = vmatprep.subr.bf16.mxu0 0
      %5286 = vmatpush2.bf16.msra.mxu0 0
      %5287 = vmatprep.subr.bf16.mxu0 0
      %5288 = vmatpush2.bf16.msra.mxu0 0
      %5289 = vmatprep.subr.bf16.mxu0 0
      %5290 = vmatpush2.bf16.msra.mxu0 0
      %5291 = vmatprep.subr.bf16.mxu0 0
      %5292 = vmatpush2.bf16.msra.mxu0 0
      %5293 = vmatprep.subr.bf16.mxu0 0
      %5294 = vmatpush2.bf16.msra.mxu0 0
      %5295 = vmatprep.subr.bf16.mxu0 0
      %5296 = vmatpush2.bf16.msra.mxu0 0
      %5297 = vmatprep.subr.bf16.mxu0 0
      %5298 = vmatpush2.bf16.msra.mxu0 0
      %5299 = vmatprep.mubr.bf16.mxu0 0
      %5300 = vmatmul.mubr.bf16.gmra.mxu0 %v5241
      %v5301 = vpop.f32.mrf.mxu0
      %v5302 = vadd.f32 0.0, %v5301
      %v5303 = vpop.f32.mrf.mxu0
      %v5304 = vpop.f32.mrf.mxu0
      %v5305 = vadd.f32 0.0, %v5304
      %v5306 = vpop.f32.mrf.mxu0
      %5307 = vmatprep.mubr.bf16.mxu0 0
      %5308 = vmatmul.mubr.bf16.gmra.mxu0 %v5244
      %v5309 = vpop.f32.mrf.mxu0
      %v5310 = vadd.f32 0.0, %v5309
      %v5311 = vpop.f32.mrf.mxu0
      %v5312 = vpop.f32.mrf.mxu0
      %v5313 = vadd.f32 0.0, %v5312
      %v5314 = vpop.f32.mrf.mxu0
      %5315 = vmatprep.mubr.bf16.mxu0 0
      %5316 = vmatmul.mubr.bf16.gmra.mxu0 %v5247
      %v5317 = vpop.f32.mrf.mxu0
      %v5318 = vadd.f32 0.0, %v5317
      %v5319 = vpop.f32.mrf.mxu0
      %v5320 = vpop.f32.mrf.mxu0
      %v5321 = vadd.f32 0.0, %v5320
      %v5322 = vpop.f32.mrf.mxu0
      %5323 = vmatprep.mubr.bf16.mxu0 0
      %5324 = vmatmul.mubr.bf16.gmra.mxu0 %v5250
      %v5325 = vpop.f32.mrf.mxu0
      %v5326 = vadd.f32 0.0, %v5325
      %v5327 = vpop.f32.mrf.mxu0
      %v5328 = vpop.f32.mrf.mxu0
      %v5329 = vadd.f32 0.0, %v5328
      %v5330 = vpop.f32.mrf.mxu0
      %5331 = vmatprep.mubr.bf16.mxu0 0
      %5332 = vmatmul.mubr.bf16.gmra.mxu0 %v5253
      %v5333 = vpop.f32.mrf.mxu0
      %v5334 = vadd.f32 0.0, %v5333
      %v5335 = vpop.f32.mrf.mxu0
      %v5336 = vpop.f32.mrf.mxu0
      %v5337 = vadd.f32 0.0, %v5336
      %v5338 = vpop.f32.mrf.mxu0
      %5339 = vmatprep.mubr.bf16.mxu0 0
      %5340 = vmatmul.mubr.bf16.gmra.mxu0 %v5256
      %v5341 = vpop.f32.mrf.mxu0
      %v5342 = vadd.f32 0.0, %v5341
      %v5343 = vpop.f32.mrf.mxu0
      %v5344 = vpop.f32.mrf.mxu0
      %v5345 = vadd.f32 0.0, %v5344
      %v5346 = vpop.f32.mrf.mxu0
      %5347 = vmatprep.mubr.bf16.mxu0 0
      %5348 = vmatmul.mubr.bf16.gmra.mxu0 %v5259
      %v5349 = vpop.f32.mrf.mxu0
      %v5350 = vadd.f32 0.0, %v5349
      %v5351 = vpop.f32.mrf.mxu0
      %v5352 = vpop.f32.mrf.mxu0
      %v5353 = vadd.f32 0.0, %v5352
      %v5354 = vpop.f32.mrf.mxu0
      %5355 = vmatprep.mubr.bf16.mxu0 0
      %5356 = vmatmul.mubr.bf16.gmra.mxu0 %v5262
      %v5357 = vpop.f32.mrf.mxu0
      %v5358 = vadd.f32 0.0, %v5357
      %v5359 = vpop.f32.mrf.mxu0
      %v5360 = vpop.f32.mrf.mxu0
      %v5361 = vadd.f32 0.0, %v5360
      %v5362 = vpop.f32.mrf.mxu0
      %5363 = vdwg.mxu0
      %v5364 = vadd.f32 %v5108, %v5302
      %v5365 = vadd.f32 %v5109, %v5305
      %v5366 = vadd.f32 %v5110, %v5310
      %v5367 = vadd.f32 %v5111, %v5313
      %v5368 = vadd.f32 %v5112, %v5318
      %v5369 = vadd.f32 %v5113, %v5321
      %v5370 = vadd.f32 %v5114, %v5326
      %v5371 = vadd.f32 %v5115, %v5329
      %v5372 = vadd.f32 %v5116, %v5334
      %v5373 = vadd.f32 %v5117, %v5337
      %v5374 = vadd.f32 %v5118, %v5342
      %v5375 = vadd.f32 %v5119, %v5345
      %v5376 = vadd.f32 %v5120, %v5350
      %v5377 = vadd.f32 %v5121, %v5353
      %v5378 = vadd.f32 %v5122, %v5358
      %v5379 = vadd.f32 %v5123, %v5361
      %v5383 = vrot.slane %v5132, 5
      %v5384 = vrot.slane %v5383, 4
      %v5385 = vrot.slane %v4465, 5
      %v5386 = vsel %vm2573, %v5384, %v5385
      %v5387 = vrot.slane %v5385, 4
      %v5388 = vrot.slane %v4466, 5
      %v5389 = vsel %vm2573, %v5387, %v5388
      %s5390 = scalar_lea.vmem %s2, 20
      %v5391 = vld [vmem:[%s5390] sm:$0xf]
      %v5392 = vunpack.c.l.b16 %v5386
      %v5393 = vunpack.c.l.b16 %v5389
      %v5394 = vpack.c.b16 %v5393, %v5392
      %v5396 = vsel %vm4080, %v5394, 0
      %v5399 = vsel %vm4105, %v5391, 0
      %5401 = vmatprep.subr.bf16.mxu0 0
      %5402 = vmatpush1.bf16.msra.mxu0 0
      %5403 = vmatprep.subr.bf16.mxu0 0
      %5404 = vmatpush1.bf16.msra.mxu0 0
      %5405 = vmatprep.subr.bf16.mxu0 0
      %5406 = vmatpush1.bf16.msra.mxu0 0
      %5407 = vmatprep.subr.bf16.mxu0 0
      %5408 = vmatpush1.bf16.msra.mxu0 0
      %5409 = vmatprep.subr.bf16.mxu0 0
      %5410 = vmatpush1.bf16.msra.mxu0 0
      %5411 = vmatprep.subr.bf16.mxu0 0
      %5412 = vmatpush1.bf16.msra.mxu0 0
      %5413 = vmatprep.subr.bf16.mxu0 0
      %5414 = vmatpush1.bf16.msra.mxu0 0
      %5415 = vmatprep.subr.bf16.mxu0 0
      %5416 = vmatpush1.bf16.msra.mxu0 %v5399
      %5417 = vmatprep.subr.bf16.mxu0 0
      %5418 = vmatpush2.bf16.msra.mxu0 0
      %5419 = vmatprep.subr.bf16.mxu0 0
      %5420 = vmatpush2.bf16.msra.mxu0 0
      %5421 = vmatprep.subr.bf16.mxu0 0
      %5422 = vmatpush2.bf16.msra.mxu0 0
      %5423 = vmatprep.subr.bf16.mxu0 0
      %5424 = vmatpush2.bf16.msra.mxu0 0
      %5425 = vmatprep.subr.bf16.mxu0 0
      %5426 = vmatpush2.bf16.msra.mxu0 0
      %5427 = vmatprep.subr.bf16.mxu0 0
      %5428 = vmatpush2.bf16.msra.mxu0 0
      %5429 = vmatprep.subr.bf16.mxu0 0
      %5430 = vmatpush2.bf16.msra.mxu0 0
      %5431 = vmatprep.subr.bf16.mxu0 0
      %5432 = vmatpush2.bf16.msra.mxu0 0
      %5433 = vmatprep.mubr.bf16.mxu0 0
      %5434 = vmatmul.mubr.bf16.gmra.mxu0 %v5244
      %v5435 = vpop.f32.mrf.mxu0
      %v5436 = vadd.f32 0.0, %v5435
      %v5437 = vpop.f32.mrf.mxu0
      %v5438 = vpop.f32.mrf.mxu0
      %v5439 = vadd.f32 0.0, %v5438
      %v5440 = vpop.f32.mrf.mxu0
      %5441 = vmatprep.mubr.bf16.mxu0 0
      %5442 = vmatmul.mubr.bf16.gmra.mxu0 %v5247
      %v5443 = vpop.f32.mrf.mxu0
      %v5444 = vadd.f32 0.0, %v5443
      %v5445 = vpop.f32.mrf.mxu0
      %v5446 = vpop.f32.mrf.mxu0
      %v5447 = vadd.f32 0.0, %v5446
      %v5448 = vpop.f32.mrf.mxu0
      %5449 = vmatprep.mubr.bf16.mxu0 0
      %5450 = vmatmul.mubr.bf16.gmra.mxu0 %v5250
      %v5451 = vpop.f32.mrf.mxu0
      %v5452 = vadd.f32 0.0, %v5451
      %v5453 = vpop.f32.mrf.mxu0
      %v5454 = vpop.f32.mrf.mxu0
      %v5455 = vadd.f32 0.0, %v5454
      %v5456 = vpop.f32.mrf.mxu0
      %5457 = vmatprep.mubr.bf16.mxu0 0
      %5458 = vmatmul.mubr.bf16.gmra.mxu0 %v5253
      %v5459 = vpop.f32.mrf.mxu0
      %v5460 = vadd.f32 0.0, %v5459
      %v5461 = vpop.f32.mrf.mxu0
      %v5462 = vpop.f32.mrf.mxu0
      %v5463 = vadd.f32 0.0, %v5462
      %v5464 = vpop.f32.mrf.mxu0
      %5465 = vmatprep.mubr.bf16.mxu0 0
      %5466 = vmatmul.mubr.bf16.gmra.mxu0 %v5256
      %v5467 = vpop.f32.mrf.mxu0
      %v5468 = vadd.f32 0.0, %v5467
      %v5469 = vpop.f32.mrf.mxu0
      %v5470 = vpop.f32.mrf.mxu0
      %v5471 = vadd.f32 0.0, %v5470
      %v5472 = vpop.f32.mrf.mxu0
      %5473 = vmatprep.mubr.bf16.mxu0 0
      %5474 = vmatmul.mubr.bf16.gmra.mxu0 %v5259
      %v5475 = vpop.f32.mrf.mxu0
      %v5476 = vadd.f32 0.0, %v5475
      %v5477 = vpop.f32.mrf.mxu0
      %v5478 = vpop.f32.mrf.mxu0
      %v5479 = vadd.f32 0.0, %v5478
      %v5480 = vpop.f32.mrf.mxu0
      %5481 = vmatprep.mubr.bf16.mxu0 0
      %5482 = vmatmul.mubr.bf16.gmra.mxu0 %v5262
      %v5483 = vpop.f32.mrf.mxu0
      %v5484 = vadd.f32 0.0, %v5483
      %v5485 = vpop.f32.mrf.mxu0
      %v5486 = vpop.f32.mrf.mxu0
      %v5487 = vadd.f32 0.0, %v5486
      %v5488 = vpop.f32.mrf.mxu0
      %5489 = vmatprep.mubr.bf16.mxu0 0
      %5490 = vmatmul.mubr.bf16.gmra.mxu0 %v5396
      %v5491 = vpop.f32.mrf.mxu0
      %v5492 = vadd.f32 0.0, %v5491
      %v5493 = vpop.f32.mrf.mxu0
      %v5494 = vpop.f32.mrf.mxu0
      %v5495 = vadd.f32 0.0, %v5494
      %v5496 = vpop.f32.mrf.mxu0
      %5497 = vdwg.mxu0
      %v5498 = vadd.f32 %v5364, %v5436
      %v5499 = vadd.f32 %v5365, %v5439
      %v5500 = vadd.f32 %v5366, %v5444
      %v5501 = vadd.f32 %v5367, %v5447
      %v5502 = vadd.f32 %v5368, %v5452
      %v5503 = vadd.f32 %v5369, %v5455
      %v5504 = vadd.f32 %v5370, %v5460
      %v5505 = vadd.f32 %v5371, %v5463
      %v5506 = vadd.f32 %v5372, %v5468
      %v5507 = vadd.f32 %v5373, %v5471
      %v5508 = vadd.f32 %v5374, %v5476
      %v5509 = vadd.f32 %v5375, %v5479
      %v5510 = vadd.f32 %v5376, %v5484
      %v5511 = vadd.f32 %v5377, %v5487
      %v5512 = vadd.f32 %v5378, %v5492
      %v5513 = vadd.f32 %v5379, %v5495
      %v5517 = vrot.slane %v5133, 5
      %v5518 = vrot.slane %v5517, 4
      %v5519 = vrot.slane %v4468, 5
      %v5520 = vsel %vm2573, %v5518, %v5519
      %v5521 = vrot.slane %v5519, 4
      %v5522 = vrot.slane %v4469, 5
      %v5523 = vsel %vm2573, %v5521, %v5522
      %s5524 = scalar_lea.vmem %s2, 32
      %v5525 = vld [vmem:[%s5524] sm:$0xf]
      %v5526 = vunpack.c.l.b16 %v5520
      %v5527 = vunpack.c.l.b16 %v5523
      %v5528 = vpack.c.b16 %v5527, %v5526
      %v5530 = vsel %vm4080, %v5528, 0
      %v5533 = vsel %vm4105, %v5525, 0
      %5535 = vmatprep.subr.bf16.mxu0 0
      %5536 = vmatpush1.bf16.msra.mxu0 0
      %5537 = vmatprep.subr.bf16.mxu0 0
      %5538 = vmatpush1.bf16.msra.mxu0 0
      %5539 = vmatprep.subr.bf16.mxu0 0
      %5540 = vmatpush1.bf16.msra.mxu0 0
      %5541 = vmatprep.subr.bf16.mxu0 0
      %5542 = vmatpush1.bf16.msra.mxu0 0
      %5543 = vmatprep.subr.bf16.mxu0 0
      %5544 = vmatpush1.bf16.msra.mxu0 0
      %5545 = vmatprep.subr.bf16.mxu0 0
      %5546 = vmatpush1.bf16.msra.mxu0 0
      %5547 = vmatprep.subr.bf16.mxu0 0
      %5548 = vmatpush1.bf16.msra.mxu0 0
      %5549 = vmatprep.subr.bf16.mxu0 0
      %5550 = vmatpush1.bf16.msra.mxu0 %v5533
      %5551 = vmatprep.subr.bf16.mxu0 0
      %5552 = vmatpush2.bf16.msra.mxu0 0
      %5553 = vmatprep.subr.bf16.mxu0 0
      %5554 = vmatpush2.bf16.msra.mxu0 0
      %5555 = vmatprep.subr.bf16.mxu0 0
      %5556 = vmatpush2.bf16.msra.mxu0 0
      %5557 = vmatprep.subr.bf16.mxu0 0
      %5558 = vmatpush2.bf16.msra.mxu0 0
      %5559 = vmatprep.subr.bf16.mxu0 0
      %5560 = vmatpush2.bf16.msra.mxu0 0
      %5561 = vmatprep.subr.bf16.mxu0 0
      %5562 = vmatpush2.bf16.msra.mxu0 0
      %5563 = vmatprep.subr.bf16.mxu0 0
      %5564 = vmatpush2.bf16.msra.mxu0 0
      %5565 = vmatprep.subr.bf16.mxu0 0
      %5566 = vmatpush2.bf16.msra.mxu0 0
      %5567 = vmatprep.mubr.bf16.mxu0 0
      %5568 = vmatmul.mubr.bf16.gmra.mxu0 %v5247
      %v5569 = vpop.f32.mrf.mxu0
      %v5570 = vadd.f32 0.0, %v5569
      %v5571 = vpop.f32.mrf.mxu0
      %v5572 = vpop.f32.mrf.mxu0
      %v5573 = vadd.f32 0.0, %v5572
      %v5574 = vpop.f32.mrf.mxu0
      %5575 = vmatprep.mubr.bf16.mxu0 0
      %5576 = vmatmul.mubr.bf16.gmra.mxu0 %v5250
      %v5577 = vpop.f32.mrf.mxu0
      %v5578 = vadd.f32 0.0, %v5577
      %v5579 = vpop.f32.mrf.mxu0
      %v5580 = vpop.f32.mrf.mxu0
      %v5581 = vadd.f32 0.0, %v5580
      %v5582 = vpop.f32.mrf.mxu0
      %5583 = vmatprep.mubr.bf16.mxu0 0
      %5584 = vmatmul.mubr.bf16.gmra.mxu0 %v5253
      %v5585 = vpop.f32.mrf.mxu0
      %v5586 = vadd.f32 0.0, %v5585
      %v5587 = vpop.f32.mrf.mxu0
      %v5588 = vpop.f32.mrf.mxu0
      %v5589 = vadd.f32 0.0, %v5588
      %v5590 = vpop.f32.mrf.mxu0
      %5591 = vmatprep.mubr.bf16.mxu0 0
      %5592 = vmatmul.mubr.bf16.gmra.mxu0 %v5256
      %v5593 = vpop.f32.mrf.mxu0
      %v5594 = vadd.f32 0.0, %v5593
      %v5595 = vpop.f32.mrf.mxu0
      %v5596 = vpop.f32.mrf.mxu0
      %v5597 = vadd.f32 0.0, %v5596
      %v5598 = vpop.f32.mrf.mxu0
      %5599 = vmatprep.mubr.bf16.mxu0 0
      %5600 = vmatmul.mubr.bf16.gmra.mxu0 %v5259
      %v5601 = vpop.f32.mrf.mxu0
      %v5602 = vadd.f32 0.0, %v5601
      %v5603 = vpop.f32.mrf.mxu0
      %v5604 = vpop.f32.mrf.mxu0
      %v5605 = vadd.f32 0.0, %v5604
      %v5606 = vpop.f32.mrf.mxu0
      %5607 = vmatprep.mubr.bf16.mxu0 0
      %5608 = vmatmul.mubr.bf16.gmra.mxu0 %v5262
      %v5609 = vpop.f32.mrf.mxu0
      %v5610 = vadd.f32 0.0, %v5609
      %v5611 = vpop.f32.mrf.mxu0
      %v5612 = vpop.f32.mrf.mxu0
      %v5613 = vadd.f32 0.0, %v5612
      %v5614 = vpop.f32.mrf.mxu0
      %5615 = vmatprep.mubr.bf16.mxu0 0
      %5616 = vmatmul.mubr.bf16.gmra.mxu0 %v5396
      %v5617 = vpop.f32.mrf.mxu0
      %v5618 = vadd.f32 0.0, %v5617
      %v5619 = vpop.f32.mrf.mxu0
      %v5620 = vpop.f32.mrf.mxu0
      %v5621 = vadd.f32 0.0, %v5620
      %v5622 = vpop.f32.mrf.mxu0
      %5623 = vmatprep.mubr.bf16.mxu0 0
      %5624 = vmatmul.mubr.bf16.gmra.mxu0 %v5530
      %v5625 = vpop.f32.mrf.mxu0
      %v5626 = vadd.f32 0.0, %v5625
      %v5627 = vpop.f32.mrf.mxu0
      %v5628 = vpop.f32.mrf.mxu0
      %v5629 = vadd.f32 0.0, %v5628
      %v5630 = vpop.f32.mrf.mxu0
      %5631 = vdwg.mxu0
      %v5632 = vadd.f32 %v5498, %v5570
      %v5633 = vadd.f32 %v5499, %v5573
      %v5634 = vadd.f32 %v5500, %v5578
      %v5635 = vadd.f32 %v5501, %v5581
      %v5636 = vadd.f32 %v5502, %v5586
      %v5637 = vadd.f32 %v5503, %v5589
      %v5638 = vadd.f32 %v5504, %v5594
      %v5639 = vadd.f32 %v5505, %v5597
      %v5640 = vadd.f32 %v5506, %v5602
      %v5641 = vadd.f32 %v5507, %v5605
      %v5642 = vadd.f32 %v5508, %v5610
      %v5643 = vadd.f32 %v5509, %v5613
      %v5644 = vadd.f32 %v5510, %v5618
      %v5645 = vadd.f32 %v5511, %v5621
      %v5646 = vadd.f32 %v5512, %v5626
      %v5647 = vadd.f32 %v5513, %v5629
      %v5648 = vmax.f32 %v5632, 0.0
      %v5649 = vmax.f32 %v5633, 0.0
      %v5650 = vmax.f32 %v5634, 0.0
      %v5651 = vmax.f32 %v5635, 0.0
      %v5652 = vmax.f32 %v5636, 0.0
      %v5653 = vmax.f32 %v5637, 0.0
      %v5654 = vmax.f32 %v5638, 0.0
      %v5655 = vmax.f32 %v5639, 0.0
      %v5656 = vmax.f32 %v5640, 0.0
      %v5657 = vmax.f32 %v5641, 0.0
      %v5658 = vmax.f32 %v5642, 0.0
      %v5659 = vmax.f32 %v5643, 0.0
      %v5660 = vmax.f32 %v5644, 0.0
      %v5661 = vmax.f32 %v5645, 0.0
      %v5662 = vmax.f32 %v5646, 0.0
      %v5663 = vmax.f32 %v5647, 0.0
      %5664 = vst.msk [vmem:[%s170] sm:$0xff] %vm4080, %v5648
      %5665 = vst.msk [vmem:[%s170 + $0x8] sm:$0xff] %vm4080, %v5649
      %5666 = vst.msk [vmem:[%s170 + $0x10] sm:$0xff] %vm4080, %v5650
      %5667 = vst.msk [vmem:[%s170 + $0x18] sm:$0xff] %vm4080, %v5651
      %5668 = vst.msk [vmem:[%s170 + $0x20] sm:$0xff] %vm4080, %v5652
      %5669 = vst.msk [vmem:[%s170 + $0x28] sm:$0xff] %vm4080, %v5653
      %5670 = vst.msk [vmem:[%s170 + $0x30] sm:$0xff] %vm4080, %v5654
      %5671 = vst.msk [vmem:[%s170 + $0x38] sm:$0xff] %vm4080, %v5655
      %5672 = vst.msk [vmem:[%s170 + $0x40] sm:$0xff] %vm4080, %v5656
      %5673 = vst.msk [vmem:[%s170 + $0x48] sm:$0xff] %vm4080, %v5657
      %5674 = vst.msk [vmem:[%s170 + $0x50] sm:$0xff] %vm4080, %v5658
      %5675 = vst.msk [vmem:[%s170 + $0x58] sm:$0xff] %vm4080, %v5659
      %5676 = vst.msk [vmem:[%s170 + $0x60] sm:$0xff] %vm4080, %v5660
      %5677 = vst.msk [vmem:[%s170 + $0x68] sm:$0xff] %vm4080, %v5661
      %5678 = vst.msk [vmem:[%s170 + $0x70] sm:$0xff] %vm4080, %v5662
      %5679 = vst.msk [vmem:[%s170 + $0x78] sm:$0xff] %vm4080, %v5663
      %p5680 = scmp.lt.s32.totalorder %s14, 3
      %s5681 = scalar_select %p5680, %s14, 3
      %s5682 = smul.addr %s5681, 16
      %s5683 = smul.addr %s5682, 8
      %s5684 = scalar_lea.vmem %s3, %s5683
      // Predicated region
      $region33: #{conv_block_forward.1} parent=31 // pred_check
        %p5685 = pneg %p100
      $region34: #{conv_block_forward.1} parent=31 // pred_check_branch
        %5687 = sbr.rel (%p5685) target = $region36
      $region35: #{conv_block_forward.1} parent=31 // pred_region
        _
      $region36: #{conv_block_forward.1} parent=31 // pred_fallthru
        _
    $region32: #{conv_block_forward.1} parent=5 // pred_fallthru
      _
    %p5688 = scmp.le.s32.totalorder 2, %s9
    // Predicated region
    $region37: #{conv_block_forward.1} parent=5 // pred_check
      %p5689 = pneg %p5688
    $region38: #{conv_block_forward.1} parent=5 // pred_check_branch
      %5691 = sbr.rel (%p5689) target = $region40
    $region39: #{conv_block_forward.1} parent=5 // pred_region
      %s5692 = ssub.s32 %s9, 2
      // Predicated region
      $region41: #{conv_block_forward.1} parent=39 // pred_check
        %p5693 = pneg %p106
      $region42: #{conv_block_forward.1} parent=39 // pred_check_branch
        %5695 = sbr.rel (%p5693) target = $region44
      $region43: #{conv_block_forward.1} parent=39 // pred_region
        %p5696 = scmp.lt.s32.totalorder %s15, 3
        %s5697 = scalar_select %p5696, %s15, 3
        %s5698 = smul.addr %s5697, 16
        %s5699 = smul.addr %s5698, 8
        %s5700 = scalar_lea.vmem %s3, %s5699
      $region44: #{conv_block_forward.1} parent=39 // pred_fallthru
        _
    $region40: #{conv_block_forward.1} parent=5 // pred_fallthru
      _
  $region6: #{conv_block_forward.1} parent=0 // loop_footer
    %s13 = sadd.s32 1, %s9
  $region7: #{conv_block_forward.1} parent=0 // loop_footer_branch
    %8 = sbr.rel target = $region3
  $region8: #{conv_block_forward.1} parent=0 // loop_exit
    _

</llo_original>
